<compile_context>
chip_gen: v6e
topology: v6e:2x2x1
jax: 0.10.0
libtpu: 0.0.40
codegen_flags: <defaults>
</compile_context>

<pallas_src>
import jax
import jax.numpy as jnp
from jax.experimental import pallas as pl
from jax.experimental.pallas import tpu as pltpu


# ----------------------------------------------------------------------------
# Single fused kernel: BiLSTM (both directions) + GEI encoder.
# ----------------------------------------------------------------------------
def _gait_fc_kernel(ae_ref, wih_f_ref, whh_f_ref, b_f_ref,
                    wih_b_ref, whh_b_ref, b_b_ref,
                    patches_ref, pool_ref, wc_ref, bc_ref, wfc_ref, bfc_ref,
                    o_ref):
    B = ae_ref.shape[0]
    D = wih_f_ref.shape[0]
    H = whh_f_ref.shape[0]
    T = ae_ref.shape[1] // D

    # Whole sequence + all weights are VMEM-resident for the entire kernel.
    x_all = ae_ref[...]                                     # (B, T*D)
    wih_f = wih_f_ref[...]; whh_f = whh_f_ref[...]; b_f = b_f_ref[...]
    wih_b = wih_b_ref[...]; whh_b = whh_b_ref[...]; b_b = b_b_ref[...]

    def lstm_step(x_t, h, c, wih, whh, b):
        gates = (jnp.dot(x_t, wih, preferred_element_type=jnp.float32)
                 + jnp.dot(h, whh, preferred_element_type=jnp.float32)
                 + b)                                       # (B, 4H) full vreg
        # Two EUP passes over the full gate vector instead of four 32-lane ones.
        sig = jax.nn.sigmoid(gates)
        tnh = jnp.tanh(gates)
        i_g = sig[:, 0 * H:1 * H]
        f_g = sig[:, 1 * H:2 * H]
        g_g = tnh[:, 2 * H:3 * H]
        o_g = sig[:, 3 * H:4 * H]
        c_new = f_g * c + i_g * g_g
        h_new = o_g * jnp.tanh(c_new)
        return h_new, c_new

    zeros = jnp.zeros((B, H), jnp.float32)
    h_f, c_f = zeros, zeros
    h_b, c_b = zeros, zeros

    # Fully unrolled static time loop (T is small & static): no per-step grid /
    # DMA bookkeeping; the two independent recurrences are interleaved so the
    # scheduler can overlap their MXU/EUP work.
    for t in range(T):
        x_fwd = x_all[:, t * D:(t + 1) * D]                 # static 32-lane slice
        x_bwd = x_all[:, (T - 1 - t) * D:(T - t) * D]
        h_f, c_f = lstm_step(x_fwd, h_f, c_f, wih_f, whh_f, b_f)
        h_b, c_b = lstm_step(x_bwd, h_b, c_b, wih_b, whh_b, b_b)

    # GEI encoder: conv3x3 as a single 2-D matmul over the im2col'd patches.
    patches = patches_ref[...]                              # (B*P, C*9)
    conv = (jnp.dot(patches, wc_ref[...], preferred_element_type=jnp.float32)
            + bc_ref[...])                                  # (B*P, C1)
    act = jnp.maximum(conv, 0.0)                            # ReLU
    # Global average pool as a matmul against a block-diagonal (B, B*P)
    # averaging matrix: keeps the P-reduction on the MXU, no in-kernel reshape.
    pooled = jnp.dot(pool_ref[...], act,
                     preferred_element_type=jnp.float32)    # (B, C1)
    gei = (jnp.dot(pooled, wfc_ref[...], preferred_element_type=jnp.float32)
           + bfc_ref[...])                                  # (B, n_feat)

    # Single lane-dense store of the fused feature: [h_fwd | h_bwd | gei_feat].
    o_ref[...] = jnp.concatenate([h_f, h_b, gei], axis=-1)


def _im2col_3x3(x_nchw):
    """NCHW -> (B, H*W, C*9) patch matrix for a padded 3x3 / stride-1 conv."""
    B, C, H, W = x_nchw.shape
    xp = jnp.pad(x_nchw, ((0, 0), (0, 0), (1, 1), (1, 1)))
    cols = []
    for di in range(3):
        for dj in range(3):
            cols.append(xp[:, :, di:di + H, dj:dj + W])
    patches = jnp.stack(cols, axis=-1)                      # (B, C, H, W, 9)
    patches = patches.transpose(0, 2, 3, 1, 4).reshape(B, H * W, C * 9)
    return patches


# ----------------------------------------------------------------------------
# GaitFC forward
# ----------------------------------------------------------------------------
def init_params(key, *, d_in=32, hidden=32, c_in=1, c_conv=16, n_feat=128):
    ks = jax.random.split(key, 10)
    s = 0.05
    params = {
        # forward-direction LSTM
        "wih_f": s * jax.random.normal(ks[0], (d_in, 4 * hidden), jnp.float32),
        "whh_f": s * jax.random.normal(ks[1], (hidden, 4 * hidden), jnp.float32),
        "b_f":   s * jax.random.normal(ks[2], (1, 4 * hidden), jnp.float32),
        # backward-direction LSTM
        "wih_b": s * jax.random.normal(ks[3], (d_in, 4 * hidden), jnp.float32),
        "whh_b": s * jax.random.normal(ks[4], (hidden, 4 * hidden), jnp.float32),
        "b_b":   s * jax.random.normal(ks[5], (1, 4 * hidden), jnp.float32),
        # GEI encoder: conv3x3 (c_in->c_conv) + FC (c_conv->n_feat)
        "wc":  s * jax.random.normal(ks[6], (c_in * 9, c_conv), jnp.float32),
        "bc":  s * jax.random.normal(ks[7], (1, c_conv), jnp.float32),
        "wfc": s * jax.random.normal(ks[8], (c_conv, n_feat), jnp.float32),
        "bfc": s * jax.random.normal(ks[9], (1, n_feat), jnp.float32),
    }
    return params


@jax.jit
def gait_fc_forward(params, ae_feat, gei):
    """ae_feat: (B, T, D) batch-first; gei: (B, C, H, W) NCHW.

    Returns feat = concat([rnn_feat, gei_feat], axis=-1) -> (B, 2*hidden + 128),
    produced by a single fused Pallas kernel launch.
    """
    B, T, D = ae_feat.shape
    H = params["whh_f"].shape[0]
    n_feat = params["wfc"].shape[1]

    # Free row-major reshape; no XLA transpose / relayout of the sequence.
    ae_flat = ae_feat.astype(jnp.float32).reshape(B, T * D)

    # im2col (plain-JAX glue) -> 2-D patch matrix for a single big MXU matmul.
    patches = _im2col_3x3(gei.astype(jnp.float32))          # (B, P, C*9)
    P = patches.shape[1]
    patches2d = patches.reshape(B * P, patches.shape[2])    # (B*P, C*9)
    # Block-diagonal averaging matrix: pool_mat[b, b*P + p] = 1/P.
    pool_mat = jnp.repeat(jnp.eye(B, dtype=jnp.float32), P, axis=1) / float(P)

    vmem_spec = pl.BlockSpec(memory_space=pltpu.MemorySpace.VMEM)
    feat = pl.pallas_call(
        _gait_fc_kernel,
        out_shape=jax.ShapeDtypeStruct((B, 2 * H + n_feat), jnp.float32),
        in_specs=[vmem_spec] * 13,
        out_specs=vmem_spec,
    )(ae_flat,
      params["wih_f"], params["whh_f"], params["b_f"],
      params["wih_b"], params["whh_b"], params["b_b"],
      patches2d, pool_mat,
      params["wc"], params["bc"], params["wfc"], params["bfc"])
    return feat


if __name__ == "__main__":
    key = jax.random.PRNGKey(0)
    k_ae, k_gei, k_p = jax.random.split(key, 3)

    B, T, D, H = 2, 8, 32, 32
    C_IN, IMG = 1, 16

    ae_feat = jax.random.normal(k_ae, (B, T, D), jnp.float32)
    gei = jax.random.normal(k_gei, (B, C_IN, IMG, IMG), jnp.float32)

    params = init_params(k_p, d_in=D, hidden=H, c_in=C_IN, c_conv=16, n_feat=128)

    feat = gait_fc_forward(params, ae_feat, gei)
    jax.block_until_ready(feat)

    assert feat.shape == (B, 2 * H + 128), feat.shape
    assert bool(jnp.all(jnp.isfinite(feat)))
    print("KERNEL_OK")
</pallas_src>

<mosaic_0001>
module attributes {stable_mosaic.version = 11 : i64} {
  func.func @_gait_fc_kernel(%arg0: memref<2x256xf32, #tpu.memory_space<vmem>>, %arg1: memref<32x128xf32, #tpu.memory_space<vmem>>, %arg2: memref<32x128xf32, #tpu.memory_space<vmem>>, %arg3: memref<1x128xf32, #tpu.memory_space<vmem>>, %arg4: memref<32x128xf32, #tpu.memory_space<vmem>>, %arg5: memref<32x128xf32, #tpu.memory_space<vmem>>, %arg6: memref<1x128xf32, #tpu.memory_space<vmem>>, %arg7: memref<512x9xf32, #tpu.memory_space<vmem>>, %arg8: memref<2x512xf32, #tpu.memory_space<vmem>>, %arg9: memref<9x16xf32, #tpu.memory_space<vmem>>, %arg10: memref<1x16xf32, #tpu.memory_space<vmem>>, %arg11: memref<16x128xf32, #tpu.memory_space<vmem>>, %arg12: memref<1x128xf32, #tpu.memory_space<vmem>>, %arg13: memref<2x192xf32, #tpu.memory_space<vmem>>) attributes {dimension_semantics = [], scalar_prefetch = 0 : i64, scratch_operands = 0 : i64, tpu.core_type = #tpu.core_type<tc>} {
    %c0 = arith.constant 0 : index
    %c0_0 = arith.constant 0 : index
    %0 = vector.load %arg0[%c0, %c0_0] : memref<2x256xf32, #tpu.memory_space<vmem>>, vector<2x256xf32>
    %c0_1 = arith.constant 0 : index
    %c0_2 = arith.constant 0 : index
    %1 = vector.load %arg1[%c0_1, %c0_2] : memref<32x128xf32, #tpu.memory_space<vmem>>, vector<32x128xf32>
    %c0_3 = arith.constant 0 : index
    %c0_4 = arith.constant 0 : index
    %2 = vector.load %arg2[%c0_3, %c0_4] : memref<32x128xf32, #tpu.memory_space<vmem>>, vector<32x128xf32>
    %c0_5 = arith.constant 0 : index
    %c0_6 = arith.constant 0 : index
    %3 = vector.load %arg3[%c0_5, %c0_6] : memref<1x128xf32, #tpu.memory_space<vmem>>, vector<1x128xf32>
    %c0_7 = arith.constant 0 : index
    %c0_8 = arith.constant 0 : index
    %4 = vector.load %arg4[%c0_7, %c0_8] : memref<32x128xf32, #tpu.memory_space<vmem>>, vector<32x128xf32>
    %c0_9 = arith.constant 0 : index
    %c0_10 = arith.constant 0 : index
    %5 = vector.load %arg5[%c0_9, %c0_10] : memref<32x128xf32, #tpu.memory_space<vmem>>, vector<32x128xf32>
    %c0_11 = arith.constant 0 : index
    %c0_12 = arith.constant 0 : index
    %6 = vector.load %arg6[%c0_11, %c0_12] : memref<1x128xf32, #tpu.memory_space<vmem>>, vector<1x128xf32>
    %cst = arith.constant 0.000000e+00 : f32
    %7 = vector.broadcast %cst : f32 to vector<2x32xf32>
    %8 = vector.extract_strided_slice %0 {offsets = [0, 0], sizes = [2, 32], strides = [1, 1]} : vector<2x256xf32> to vector<2x32xf32>
    %9 = vector.extract_strided_slice %0 {offsets = [0, 224], sizes = [2, 32], strides = [1, 1]} : vector<2x256xf32> to vector<2x32xf32>
    %cst_13 = arith.constant dense<0.000000e+00> : vector<2x128xf32>
    %10 = tpu.matmul %8, %1, %cst_13 {dimension_numbers = #tpu.dot_dimension_numbers<[1], [0], [0], [1], [0, 0, 1, 1], [], []>} : vector<2x32xf32>, vector<32x128xf32>, vector<2x128xf32> -> vector<2x128xf32>
    %cst_14 = arith.constant dense<0.000000e+00> : vector<2x128xf32>
    %11 = tpu.matmul %7, %2, %cst_14 {dimension_numbers = #tpu.dot_dimension_numbers<[1], [0], [0], [1], [0, 0, 1, 1], [], []>} : vector<2x32xf32>, vector<32x128xf32>, vector<2x128xf32> -> vector<2x128xf32>
    %12 = arith.addf %10, %11 : vector<2x128xf32>
    %13 = vector.broadcast %3 : vector<1x128xf32> to vector<2x128xf32>
    %14 = arith.addf %12, %13 : vector<2x128xf32>
    %15 = arith.negf %14 : vector<2x128xf32>
    %16 = math.exp %15 : vector<2x128xf32>
    %cst_15 = arith.constant 1.000000e+00 : f32
    %17 = vector.broadcast %cst_15 : f32 to vector<2x128xf32>
    %18 = arith.addf %17, %16 : vector<2x128xf32>
    %19 = arith.divf %17, %18 : vector<2x128xf32>
    %20 = math.tanh %14 : vector<2x128xf32>
    %21 = vector.extract_strided_slice %19 {offsets = [0, 0], sizes = [2, 32], strides = [1, 1]} : vector<2x128xf32> to vector<2x32xf32>
    %22 = vector.extract_strided_slice %19 {offsets = [0, 32], sizes = [2, 32], strides = [1, 1]} : vector<2x128xf32> to vector<2x32xf32>
    %23 = vector.extract_strided_slice %20 {offsets = [0, 64], sizes = [2, 32], strides = [1, 1]} : vector<2x128xf32> to vector<2x32xf32>
    %24 = vector.extract_strided_slice %19 {offsets = [0, 96], sizes = [2, 32], strides = [1, 1]} : vector<2x128xf32> to vector<2x32xf32>
    %25 = arith.mulf %22, %7 : vector<2x32xf32>
    %26 = arith.mulf %21, %23 : vector<2x32xf32>
    %27 = arith.addf %25, %26 : vector<2x32xf32>
    %28 = math.tanh %27 : vector<2x32xf32>
    %29 = arith.mulf %24, %28 : vector<2x32xf32>
    %cst_16 = arith.constant dense<0.000000e+00> : vector<2x128xf32>
    %30 = tpu.matmul %9, %4, %cst_16 {dimension_numbers = #tpu.dot_dimension_numbers<[1], [0], [0], [1], [0, 0, 1, 1], [], []>} : vector<2x32xf32>, vector<32x128xf32>, vector<2x128xf32> -> vector<2x128xf32>
    %cst_17 = arith.constant dense<0.000000e+00> : vector<2x128xf32>
    %31 = tpu.matmul %7, %5, %cst_17 {dimension_numbers = #tpu.dot_dimension_numbers<[1], [0], [0], [1], [0, 0, 1, 1], [], []>} : vector<2x32xf32>, vector<32x128xf32>, vector<2x128xf32> -> vector<2x128xf32>
    %32 = arith.addf %30, %31 : vector<2x128xf32>
    %33 = vector.broadcast %6 : vector<1x128xf32> to vector<2x128xf32>
    %34 = arith.addf %32, %33 : vector<2x128xf32>
    %35 = arith.negf %34 : vector<2x128xf32>
    %36 = math.exp %35 : vector<2x128xf32>
    %cst_18 = arith.constant 1.000000e+00 : f32
    %37 = vector.broadcast %cst_18 : f32 to vector<2x128xf32>
    %38 = arith.addf %37, %36 : vector<2x128xf32>
    %39 = arith.divf %37, %38 : vector<2x128xf32>
    %40 = math.tanh %34 : vector<2x128xf32>
    %41 = vector.extract_strided_slice %39 {offsets = [0, 0], sizes = [2, 32], strides = [1, 1]} : vector<2x128xf32> to vector<2x32xf32>
    %42 = vector.extract_strided_slice %39 {offsets = [0, 32], sizes = [2, 32], strides = [1, 1]} : vector<2x128xf32> to vector<2x32xf32>
    %43 = vector.extract_strided_slice %40 {offsets = [0, 64], sizes = [2, 32], strides = [1, 1]} : vector<2x128xf32> to vector<2x32xf32>
    %44 = vector.extract_strided_slice %39 {offsets = [0, 96], sizes = [2, 32], strides = [1, 1]} : vector<2x128xf32> to vector<2x32xf32>
    %45 = arith.mulf %42, %7 : vector<2x32xf32>
    %46 = arith.mulf %41, %43 : vector<2x32xf32>
    %47 = arith.addf %45, %46 : vector<2x32xf32>
    %48 = math.tanh %47 : vector<2x32xf32>
    %49 = arith.mulf %44, %48 : vector<2x32xf32>
    %50 = vector.extract_strided_slice %0 {offsets = [0, 32], sizes = [2, 32], strides = [1, 1]} : vector<2x256xf32> to vector<2x32xf32>
    %51 = vector.extract_strided_slice %0 {offsets = [0, 192], sizes = [2, 32], strides = [1, 1]} : vector<2x256xf32> to vector<2x32xf32>
    %cst_19 = arith.constant dense<0.000000e+00> : vector<2x128xf32>
    %52 = tpu.matmul %50, %1, %cst_19 {dimension_numbers = #tpu.dot_dimension_numbers<[1], [0], [0], [1], [0, 0, 1, 1], [], []>} : vector<2x32xf32>, vector<32x128xf32>, vector<2x128xf32> -> vector<2x128xf32>
    %cst_20 = arith.constant dense<0.000000e+00> : vector<2x128xf32>
    %53 = tpu.matmul %29, %2, %cst_20 {dimension_numbers = #tpu.dot_dimension_numbers<[1], [0], [0], [1], [0, 0, 1, 1], [], []>} : vector<2x32xf32>, vector<32x128xf32>, vector<2x128xf32> -> vector<2x128xf32>
    %54 = arith.addf %52, %53 : vector<2x128xf32>
    %55 = vector.broadcast %3 : vector<1x128xf32> to vector<2x128xf32>
    %56 = arith.addf %54, %55 : vector<2x128xf32>
    %57 = arith.negf %56 : vector<2x128xf32>
    %58 = math.exp %57 : vector<2x128xf32>
    %cst_21 = arith.constant 1.000000e+00 : f32
    %59 = vector.broadcast %cst_21 : f32 to vector<2x128xf32>
    %60 = arith.addf %59, %58 : vector<2x128xf32>
    %61 = arith.divf %59, %60 : vector<2x128xf32>
    %62 = math.tanh %56 : vector<2x128xf32>
    %63 = vector.extract_strided_slice %61 {offsets = [0, 0], sizes = [2, 32], strides = [1, 1]} : vector<2x128xf32> to vector<2x32xf32>
    %64 = vector.extract_strided_slice %61 {offsets = [0, 32], sizes = [2, 32], strides = [1, 1]} : vector<2x128xf32> to vector<2x32xf32>
    %65 = vector.extract_strided_slice %62 {offsets = [0, 64], sizes = [2, 32], strides = [1, 1]} : vector<2x128xf32> to vector<2x32xf32>
    %66 = vector.extract_strided_slice %61 {offsets = [0, 96], sizes = [2, 32], strides = [1, 1]} : vector<2x128xf32> to vector<2x32xf32>
    %67 = arith.mulf %64, %27 : vector<2x32xf32>
    %68 = arith.mulf %63, %65 : vector<2x32xf32>
    %69 = arith.addf %67, %68 : vector<2x32xf32>
    %70 = math.tanh %69 : vector<2x32xf32>
    %71 = arith.mulf %66, %70 : vector<2x32xf32>
    %cst_22 = arith.constant dense<0.000000e+00> : vector<2x128xf32>
    %72 = tpu.matmul %51, %4, %cst_22 {dimension_numbers = #tpu.dot_dimension_numbers<[1], [0], [0], [1], [0, 0, 1, 1], [], []>} : vector<2x32xf32>, vector<32x128xf32>, vector<2x128xf32> -> vector<2x128xf32>
    %cst_23 = arith.constant dense<0.000000e+00> : vector<2x128xf32>
    %73 = tpu.matmul %49, %5, %cst_23 {dimension_numbers = #tpu.dot_dimension_numbers<[1], [0], [0], [1], [0, 0, 1, 1], [], []>} : vector<2x32xf32>, vector<32x128xf32>, vector<2x128xf32> -> vector<2x128xf32>
    %74 = arith.addf %72, %73 : vector<2x128xf32>
    %75 = vector.broadcast %6 : vector<1x128xf32> to vector<2x128xf32>
    %76 = arith.addf %74, %75 : vector<2x128xf32>
    %77 = arith.negf %76 : vector<2x128xf32>
    %78 = math.exp %77 : vector<2x128xf32>
    %cst_24 = arith.constant 1.000000e+00 : f32
    %79 = vector.broadcast %cst_24 : f32 to vector<2x128xf32>
    %80 = arith.addf %79, %78 : vector<2x128xf32>
    %81 = arith.divf %79, %80 : vector<2x128xf32>
    %82 = math.tanh %76 : vector<2x128xf32>
    %83 = vector.extract_strided_slice %81 {offsets = [0, 0], sizes = [2, 32], strides = [1, 1]} : vector<2x128xf32> to vector<2x32xf32>
    %84 = vector.extract_strided_slice %81 {offsets = [0, 32], sizes = [2, 32], strides = [1, 1]} : vector<2x128xf32> to vector<2x32xf32>
    %85 = vector.extract_strided_slice %82 {offsets = [0, 64], sizes = [2, 32], strides = [1, 1]} : vector<2x128xf32> to vector<2x32xf32>
    %86 = vector.extract_strided_slice %81 {offsets = [0, 96], sizes = [2, 32], strides = [1, 1]} : vector<2x128xf32> to vector<2x32xf32>
    %87 = arith.mulf %84, %47 : vector<2x32xf32>
    %88 = arith.mulf %83, %85 : vector<2x32xf32>
    %89 = arith.addf %87, %88 : vector<2x32xf32>
    %90 = math.tanh %89 : vector<2x32xf32>
    %91 = arith.mulf %86, %90 : vector<2x32xf32>
    %92 = vector.extract_strided_slice %0 {offsets = [0, 64], sizes = [2, 32], strides = [1, 1]} : vector<2x256xf32> to vector<2x32xf32>
    %93 = vector.extract_strided_slice %0 {offsets = [0, 160], sizes = [2, 32], strides = [1, 1]} : vector<2x256xf32> to vector<2x32xf32>
    %cst_25 = arith.constant dense<0.000000e+00> : vector<2x128xf32>
    %94 = tpu.matmul %92, %1, %cst_25 {dimension_numbers = #tpu.dot_dimension_numbers<[1], [0], [0], [1], [0, 0, 1, 1], [], []>} : vector<2x32xf32>, vector<32x128xf32>, vector<2x128xf32> -> vector<2x128xf32>
    %cst_26 = arith.constant dense<0.000000e+00> : vector<2x128xf32>
    %95 = tpu.matmul %71, %2, %cst_26 {dimension_numbers = #tpu.dot_dimension_numbers<[1], [0], [0], [1], [0, 0, 1, 1], [], []>} : vector<2x32xf32>, vector<32x128xf32>, vector<2x128xf32> -> vector<2x128xf32>
    %96 = arith.addf %94, %95 : vector<2x128xf32>
    %97 = vector.broadcast %3 : vector<1x128xf32> to vector<2x128xf32>
    %98 = arith.addf %96, %97 : vector<2x128xf32>
    %99 = arith.negf %98 : vector<2x128xf32>
    %100 = math.exp %99 : vector<2x128xf32>
    %cst_27 = arith.constant 1.000000e+00 : f32
    %101 = vector.broadcast %cst_27 : f32 to vector<2x128xf32>
    %102 = arith.addf %101, %100 : vector<2x128xf32>
    %103 = arith.divf %101, %102 : vector<2x128xf32>
    %104 = math.tanh %98 : vector<2x128xf32>
    %105 = vector.extract_strided_slice %103 {offsets = [0, 0], sizes = [2, 32], strides = [1, 1]} : vector<2x128xf32> to vector<2x32xf32>
    %106 = vector.extract_strided_slice %103 {offsets = [0, 32], sizes = [2, 32], strides = [1, 1]} : vector<2x128xf32> to vector<2x32xf32>
    %107 = vector.extract_strided_slice %104 {offsets = [0, 64], sizes = [2, 32], strides = [1, 1]} : vector<2x128xf32> to vector<2x32xf32>
    %108 = vector.extract_strided_slice %103 {offsets = [0, 96], sizes = [2, 32], strides = [1, 1]} : vector<2x128xf32> to vector<2x32xf32>
    %109 = arith.mulf %106, %69 : vector<2x32xf32>
    %110 = arith.mulf %105, %107 : vector<2x32xf32>
    %111 = arith.addf %109, %110 : vector<2x32xf32>
    %112 = math.tanh %111 : vector<2x32xf32>
    %113 = arith.mulf %108, %112 : vector<2x32xf32>
    %cst_28 = arith.constant dense<0.000000e+00> : vector<2x128xf32>
    %114 = tpu.matmul %93, %4, %cst_28 {dimension_numbers = #tpu.dot_dimension_numbers<[1], [0], [0], [1], [0, 0, 1, 1], [], []>} : vector<2x32xf32>, vector<32x128xf32>, vector<2x128xf32> -> vector<2x128xf32>
    %cst_29 = arith.constant dense<0.000000e+00> : vector<2x128xf32>
    %115 = tpu.matmul %91, %5, %cst_29 {dimension_numbers = #tpu.dot_dimension_numbers<[1], [0], [0], [1], [0, 0, 1, 1], [], []>} : vector<2x32xf32>, vector<32x128xf32>, vector<2x128xf32> -> vector<2x128xf32>
    %116 = arith.addf %114, %115 : vector<2x128xf32>
    %117 = vector.broadcast %6 : vector<1x128xf32> to vector<2x128xf32>
    %118 = arith.addf %116, %117 : vector<2x128xf32>
    %119 = arith.negf %118 : vector<2x128xf32>
    %120 = math.exp %119 : vector<2x128xf32>
    %cst_30 = arith.constant 1.000000e+00 : f32
    %121 = vector.broadcast %cst_30 : f32 to vector<2x128xf32>
    %122 = arith.addf %121, %120 : vector<2x128xf32>
    %123 = arith.divf %121, %122 : vector<2x128xf32>
    %124 = math.tanh %118 : vector<2x128xf32>
    %125 = vector.extract_strided_slice %123 {offsets = [0, 0], sizes = [2, 32], strides = [1, 1]} : vector<2x128xf32> to vector<2x32xf32>
    %126 = vector.extract_strided_slice %123 {offsets = [0, 32], sizes = [2, 32], strides = [1, 1]} : vector<2x128xf32> to vector<2x32xf32>
    %127 = vector.extract_strided_slice %124 {offsets = [0, 64], sizes = [2, 32], strides = [1, 1]} : vector<2x128xf32> to vector<2x32xf32>
    %128 = vector.extract_strided_slice %123 {offsets = [0, 96], sizes = [2, 32], strides = [1, 1]} : vector<2x128xf32> to vector<2x32xf32>
    %129 = arith.mulf %126, %89 : vector<2x32xf32>
    %130 = arith.mulf %125, %127 : vector<2x32xf32>
    %131 = arith.addf %129, %130 : vector<2x32xf32>
    %132 = math.tanh %131 : vector<2x32xf32>
    %133 = arith.mulf %128, %132 : vector<2x32xf32>
    %134 = vector.extract_strided_slice %0 {offsets = [0, 96], sizes = [2, 32], strides = [1, 1]} : vector<2x256xf32> to vector<2x32xf32>
    %135 = vector.extract_strided_slice %0 {offsets = [0, 128], sizes = [2, 32], strides = [1, 1]} : vector<2x256xf32> to vector<2x32xf32>
    %cst_31 = arith.constant dense<0.000000e+00> : vector<2x128xf32>
    %136 = tpu.matmul %134, %1, %cst_31 {dimension_numbers = #tpu.dot_dimension_numbers<[1], [0], [0], [1], [0, 0, 1, 1], [], []>} : vector<2x32xf32>, vector<32x128xf32>, vector<2x128xf32> -> vector<2x128xf32>
    %cst_32 = arith.constant dense<0.000000e+00> : vector<2x128xf32>
    %137 = tpu.matmul %113, %2, %cst_32 {dimension_numbers = #tpu.dot_dimension_numbers<[1], [0], [0], [1], [0, 0, 1, 1], [], []>} : vector<2x32xf32>, vector<32x128xf32>, vector<2x128xf32> -> vector<2x128xf32>
    %138 = arith.addf %136, %137 : vector<2x128xf32>
    %139 = vector.broadcast %3 : vector<1x128xf32> to vector<2x128xf32>
    %140 = arith.addf %138, %139 : vector<2x128xf32>
    %141 = arith.negf %140 : vector<2x128xf32>
    %142 = math.exp %141 : vector<2x128xf32>
    %cst_33 = arith.constant 1.000000e+00 : f32
    %143 = vector.broadcast %cst_33 : f32 to vector<2x128xf32>
    %144 = arith.addf %143, %142 : vector<2x128xf32>
    %145 = arith.divf %143, %144 : vector<2x128xf32>
    %146 = math.tanh %140 : vector<2x128xf32>
    %147 = vector.extract_strided_slice %145 {offsets = [0, 0], sizes = [2, 32], strides = [1, 1]} : vector<2x128xf32> to vector<2x32xf32>
    %148 = vector.extract_strided_slice %145 {offsets = [0, 32], sizes = [2, 32], strides = [1, 1]} : vector<2x128xf32> to vector<2x32xf32>
    %149 = vector.extract_strided_slice %146 {offsets = [0, 64], sizes = [2, 32], strides = [1, 1]} : vector<2x128xf32> to vector<2x32xf32>
    %150 = vector.extract_strided_slice %145 {offsets = [0, 96], sizes = [2, 32], strides = [1, 1]} : vector<2x128xf32> to vector<2x32xf32>
    %151 = arith.mulf %148, %111 : vector<2x32xf32>
    %152 = arith.mulf %147, %149 : vector<2x32xf32>
    %153 = arith.addf %151, %152 : vector<2x32xf32>
    %154 = math.tanh %153 : vector<2x32xf32>
    %155 = arith.mulf %150, %154 : vector<2x32xf32>
    %cst_34 = arith.constant dense<0.000000e+00> : vector<2x128xf32>
    %156 = tpu.matmul %135, %4, %cst_34 {dimension_numbers = #tpu.dot_dimension_numbers<[1], [0], [0], [1], [0, 0, 1, 1], [], []>} : vector<2x32xf32>, vector<32x128xf32>, vector<2x128xf32> -> vector<2x128xf32>
    %cst_35 = arith.constant dense<0.000000e+00> : vector<2x128xf32>
    %157 = tpu.matmul %133, %5, %cst_35 {dimension_numbers = #tpu.dot_dimension_numbers<[1], [0], [0], [1], [0, 0, 1, 1], [], []>} : vector<2x32xf32>, vector<32x128xf32>, vector<2x128xf32> -> vector<2x128xf32>
    %158 = arith.addf %156, %157 : vector<2x128xf32>
    %159 = vector.broadcast %6 : vector<1x128xf32> to vector<2x128xf32>
    %160 = arith.addf %158, %159 : vector<2x128xf32>
    %161 = arith.negf %160 : vector<2x128xf32>
    %162 = math.exp %161 : vector<2x128xf32>
    %cst_36 = arith.constant 1.000000e+00 : f32
    %163 = vector.broadcast %cst_36 : f32 to vector<2x128xf32>
    %164 = arith.addf %163, %162 : vector<2x128xf32>
    %165 = arith.divf %163, %164 : vector<2x128xf32>
    %166 = math.tanh %160 : vector<2x128xf32>
    %167 = vector.extract_strided_slice %165 {offsets = [0, 0], sizes = [2, 32], strides = [1, 1]} : vector<2x128xf32> to vector<2x32xf32>
    %168 = vector.extract_strided_slice %165 {offsets = [0, 32], sizes = [2, 32], strides = [1, 1]} : vector<2x128xf32> to vector<2x32xf32>
    %169 = vector.extract_strided_slice %166 {offsets = [0, 64], sizes = [2, 32], strides = [1, 1]} : vector<2x128xf32> to vector<2x32xf32>
    %170 = vector.extract_strided_slice %165 {offsets = [0, 96], sizes = [2, 32], strides = [1, 1]} : vector<2x128xf32> to vector<2x32xf32>
    %171 = arith.mulf %168, %131 : vector<2x32xf32>
    %172 = arith.mulf %167, %169 : vector<2x32xf32>
    %173 = arith.addf %171, %172 : vector<2x32xf32>
    %174 = math.tanh %173 : vector<2x32xf32>
    %175 = arith.mulf %170, %174 : vector<2x32xf32>
    %176 = vector.extract_strided_slice %0 {offsets = [0, 128], sizes = [2, 32], strides = [1, 1]} : vector<2x256xf32> to vector<2x32xf32>
    %177 = vector.extract_strided_slice %0 {offsets = [0, 96], sizes = [2, 32], strides = [1, 1]} : vector<2x256xf32> to vector<2x32xf32>
    %cst_37 = arith.constant dense<0.000000e+00> : vector<2x128xf32>
    %178 = tpu.matmul %176, %1, %cst_37 {dimension_numbers = #tpu.dot_dimension_numbers<[1], [0], [0], [1], [0, 0, 1, 1], [], []>} : vector<2x32xf32>, vector<32x128xf32>, vector<2x128xf32> -> vector<2x128xf32>
    %cst_38 = arith.constant dense<0.000000e+00> : vector<2x128xf32>
    %179 = tpu.matmul %155, %2, %cst_38 {dimension_numbers = #tpu.dot_dimension_numbers<[1], [0], [0], [1], [0, 0, 1, 1], [], []>} : vector<2x32xf32>, vector<32x128xf32>, vector<2x128xf32> -> vector<2x128xf32>
    %180 = arith.addf %178, %179 : vector<2x128xf32>
    %181 = vector.broadcast %3 : vector<1x128xf32> to vector<2x128xf32>
    %182 = arith.addf %180, %181 : vector<2x128xf32>
    %183 = arith.negf %182 : vector<2x128xf32>
    %184 = math.exp %183 : vector<2x128xf32>
    %cst_39 = arith.constant 1.000000e+00 : f32
    %185 = vector.broadcast %cst_39 : f32 to vector<2x128xf32>
    %186 = arith.addf %185, %184 : vector<2x128xf32>
    %187 = arith.divf %185, %186 : vector<2x128xf32>
    %188 = math.tanh %182 : vector<2x128xf32>
    %189 = vector.extract_strided_slice %187 {offsets = [0, 0], sizes = [2, 32], strides = [1, 1]} : vector<2x128xf32> to vector<2x32xf32>
    %190 = vector.extract_strided_slice %187 {offsets = [0, 32], sizes = [2, 32], strides = [1, 1]} : vector<2x128xf32> to vector<2x32xf32>
    %191 = vector.extract_strided_slice %188 {offsets = [0, 64], sizes = [2, 32], strides = [1, 1]} : vector<2x128xf32> to vector<2x32xf32>
    %192 = vector.extract_strided_slice %187 {offsets = [0, 96], sizes = [2, 32], strides = [1, 1]} : vector<2x128xf32> to vector<2x32xf32>
    %193 = arith.mulf %190, %153 : vector<2x32xf32>
    %194 = arith.mulf %189, %191 : vector<2x32xf32>
    %195 = arith.addf %193, %194 : vector<2x32xf32>
    %196 = math.tanh %195 : vector<2x32xf32>
    %197 = arith.mulf %192, %196 : vector<2x32xf32>
    %cst_40 = arith.constant dense<0.000000e+00> : vector<2x128xf32>
    %198 = tpu.matmul %177, %4, %cst_40 {dimension_numbers = #tpu.dot_dimension_numbers<[1], [0], [0], [1], [0, 0, 1, 1], [], []>} : vector<2x32xf32>, vector<32x128xf32>, vector<2x128xf32> -> vector<2x128xf32>
    %cst_41 = arith.constant dense<0.000000e+00> : vector<2x128xf32>
    %199 = tpu.matmul %175, %5, %cst_41 {dimension_numbers = #tpu.dot_dimension_numbers<[1], [0], [0], [1], [0, 0, 1, 1], [], []>} : vector<2x32xf32>, vector<32x128xf32>, vector<2x128xf32> -> vector<2x128xf32>
    %200 = arith.addf %198, %199 : vector<2x128xf32>
    %201 = vector.broadcast %6 : vector<1x128xf32> to vector<2x128xf32>
    %202 = arith.addf %200, %201 : vector<2x128xf32>
    %203 = arith.negf %202 : vector<2x128xf32>
    %204 = math.exp %203 : vector<2x128xf32>
    %cst_42 = arith.constant 1.000000e+00 : f32
    %205 = vector.broadcast %cst_42 : f32 to vector<2x128xf32>
    %206 = arith.addf %205, %204 : vector<2x128xf32>
    %207 = arith.divf %205, %206 : vector<2x128xf32>
    %208 = math.tanh %202 : vector<2x128xf32>
    %209 = vector.extract_strided_slice %207 {offsets = [0, 0], sizes = [2, 32], strides = [1, 1]} : vector<2x128xf32> to vector<2x32xf32>
    %210 = vector.extract_strided_slice %207 {offsets = [0, 32], sizes = [2, 32], strides = [1, 1]} : vector<2x128xf32> to vector<2x32xf32>
    %211 = vector.extract_strided_slice %208 {offsets = [0, 64], sizes = [2, 32], strides = [1, 1]} : vector<2x128xf32> to vector<2x32xf32>
    %212 = vector.extract_strided_slice %207 {offsets = [0, 96], sizes = [2, 32], strides = [1, 1]} : vector<2x128xf32> to vector<2x32xf32>
    %213 = arith.mulf %210, %173 : vector<2x32xf32>
    %214 = arith.mulf %209, %211 : vector<2x32xf32>
    %215 = arith.addf %213, %214 : vector<2x32xf32>
    %216 = math.tanh %215 : vector<2x32xf32>
    %217 = arith.mulf %212, %216 : vector<2x32xf32>
    %218 = vector.extract_strided_slice %0 {offsets = [0, 160], sizes = [2, 32], strides = [1, 1]} : vector<2x256xf32> to vector<2x32xf32>
    %219 = vector.extract_strided_slice %0 {offsets = [0, 64], sizes = [2, 32], strides = [1, 1]} : vector<2x256xf32> to vector<2x32xf32>
    %cst_43 = arith.constant dense<0.000000e+00> : vector<2x128xf32>
    %220 = tpu.matmul %218, %1, %cst_43 {dimension_numbers = #tpu.dot_dimension_numbers<[1], [0], [0], [1], [0, 0, 1, 1], [], []>} : vector<2x32xf32>, vector<32x128xf32>, vector<2x128xf32> -> vector<2x128xf32>
    %cst_44 = arith.constant dense<0.000000e+00> : vector<2x128xf32>
    %221 = tpu.matmul %197, %2, %cst_44 {dimension_numbers = #tpu.dot_dimension_numbers<[1], [0], [0], [1], [0, 0, 1, 1], [], []>} : vector<2x32xf32>, vector<32x128xf32>, vector<2x128xf32> -> vector<2x128xf32>
    %222 = arith.addf %220, %221 : vector<2x128xf32>
    %223 = vector.broadcast %3 : vector<1x128xf32> to vector<2x128xf32>
    %224 = arith.addf %222, %223 : vector<2x128xf32>
    %225 = arith.negf %224 : vector<2x128xf32>
    %226 = math.exp %225 : vector<2x128xf32>
    %cst_45 = arith.constant 1.000000e+00 : f32
    %227 = vector.broadcast %cst_45 : f32 to vector<2x128xf32>
    %228 = arith.addf %227, %226 : vector<2x128xf32>
    %229 = arith.divf %227, %228 : vector<2x128xf32>
    %230 = math.tanh %224 : vector<2x128xf32>
    %231 = vector.extract_strided_slice %229 {offsets = [0, 0], sizes = [2, 32], strides = [1, 1]} : vector<2x128xf32> to vector<2x32xf32>
    %232 = vector.extract_strided_slice %229 {offsets = [0, 32], sizes = [2, 32], strides = [1, 1]} : vector<2x128xf32> to vector<2x32xf32>
    %233 = vector.extract_strided_slice %230 {offsets = [0, 64], sizes = [2, 32], strides = [1, 1]} : vector<2x128xf32> to vector<2x32xf32>
    %234 = vector.extract_strided_slice %229 {offsets = [0, 96], sizes = [2, 32], strides = [1, 1]} : vector<2x128xf32> to vector<2x32xf32>
    %235 = arith.mulf %232, %195 : vector<2x32xf32>
    %236 = arith.mulf %231, %233 : vector<2x32xf32>
    %237 = arith.addf %235, %236 : vector<2x32xf32>
    %238 = math.tanh %237 : vector<2x32xf32>
    %239 = arith.mulf %234, %238 : vector<2x32xf32>
    %cst_46 = arith.constant dense<0.000000e+00> : vector<2x128xf32>
    %240 = tpu.matmul %219, %4, %cst_46 {dimension_numbers = #tpu.dot_dimension_numbers<[1], [0], [0], [1], [0, 0, 1, 1], [], []>} : vector<2x32xf32>, vector<32x128xf32>, vector<2x128xf32> -> vector<2x128xf32>
    %cst_47 = arith.constant dense<0.000000e+00> : vector<2x128xf32>
    %241 = tpu.matmul %217, %5, %cst_47 {dimension_numbers = #tpu.dot_dimension_numbers<[1], [0], [0], [1], [0, 0, 1, 1], [], []>} : vector<2x32xf32>, vector<32x128xf32>, vector<2x128xf32> -> vector<2x128xf32>
    %242 = arith.addf %240, %241 : vector<2x128xf32>
    %243 = vector.broadcast %6 : vector<1x128xf32> to vector<2x128xf32>
    %244 = arith.addf %242, %243 : vector<2x128xf32>
    %245 = arith.negf %244 : vector<2x128xf32>
    %246 = math.exp %245 : vector<2x128xf32>
    %cst_48 = arith.constant 1.000000e+00 : f32
    %247 = vector.broadcast %cst_48 : f32 to vector<2x128xf32>
    %248 = arith.addf %247, %246 : vector<2x128xf32>
    %249 = arith.divf %247, %248 : vector<2x128xf32>
    %250 = math.tanh %244 : vector<2x128xf32>
    %251 = vector.extract_strided_slice %249 {offsets = [0, 0], sizes = [2, 32], strides = [1, 1]} : vector<2x128xf32> to vector<2x32xf32>
    %252 = vector.extract_strided_slice %249 {offsets = [0, 32], sizes = [2, 32], strides = [1, 1]} : vector<2x128xf32> to vector<2x32xf32>
    %253 = vector.extract_strided_slice %250 {offsets = [0, 64], sizes = [2, 32], strides = [1, 1]} : vector<2x128xf32> to vector<2x32xf32>
    %254 = vector.extract_strided_slice %249 {offsets = [0, 96], sizes = [2, 32], strides = [1, 1]} : vector<2x128xf32> to vector<2x32xf32>
    %255 = arith.mulf %252, %215 : vector<2x32xf32>
    %256 = arith.mulf %251, %253 : vector<2x32xf32>
    %257 = arith.addf %255, %256 : vector<2x32xf32>
    %258 = math.tanh %257 : vector<2x32xf32>
    %259 = arith.mulf %254, %258 : vector<2x32xf32>
    %260 = vector.extract_strided_slice %0 {offsets = [0, 192], sizes = [2, 32], strides = [1, 1]} : vector<2x256xf32> to vector<2x32xf32>
    %261 = vector.extract_strided_slice %0 {offsets = [0, 32], sizes = [2, 32], strides = [1, 1]} : vector<2x256xf32> to vector<2x32xf32>
    %cst_49 = arith.constant dense<0.000000e+00> : vector<2x128xf32>
    %262 = tpu.matmul %260, %1, %cst_49 {dimension_numbers = #tpu.dot_dimension_numbers<[1], [0], [0], [1], [0, 0, 1, 1], [], []>} : vector<2x32xf32>, vector<32x128xf32>, vector<2x128xf32> -> vector<2x128xf32>
    %cst_50 = arith.constant dense<0.000000e+00> : vector<2x128xf32>
    %263 = tpu.matmul %239, %2, %cst_50 {dimension_numbers = #tpu.dot_dimension_numbers<[1], [0], [0], [1], [0, 0, 1, 1], [], []>} : vector<2x32xf32>, vector<32x128xf32>, vector<2x128xf32> -> vector<2x128xf32>
    %264 = arith.addf %262, %263 : vector<2x128xf32>
    %265 = vector.broadcast %3 : vector<1x128xf32> to vector<2x128xf32>
    %266 = arith.addf %264, %265 : vector<2x128xf32>
    %267 = arith.negf %266 : vector<2x128xf32>
    %268 = math.exp %267 : vector<2x128xf32>
    %cst_51 = arith.constant 1.000000e+00 : f32
    %269 = vector.broadcast %cst_51 : f32 to vector<2x128xf32>
    %270 = arith.addf %269, %268 : vector<2x128xf32>
    %271 = arith.divf %269, %270 : vector<2x128xf32>
    %272 = math.tanh %266 : vector<2x128xf32>
    %273 = vector.extract_strided_slice %271 {offsets = [0, 0], sizes = [2, 32], strides = [1, 1]} : vector<2x128xf32> to vector<2x32xf32>
    %274 = vector.extract_strided_slice %271 {offsets = [0, 32], sizes = [2, 32], strides = [1, 1]} : vector<2x128xf32> to vector<2x32xf32>
    %275 = vector.extract_strided_slice %272 {offsets = [0, 64], sizes = [2, 32], strides = [1, 1]} : vector<2x128xf32> to vector<2x32xf32>
    %276 = vector.extract_strided_slice %271 {offsets = [0, 96], sizes = [2, 32], strides = [1, 1]} : vector<2x128xf32> to vector<2x32xf32>
    %277 = arith.mulf %274, %237 : vector<2x32xf32>
    %278 = arith.mulf %273, %275 : vector<2x32xf32>
    %279 = arith.addf %277, %278 : vector<2x32xf32>
    %280 = math.tanh %279 : vector<2x32xf32>
    %281 = arith.mulf %276, %280 : vector<2x32xf32>
    %cst_52 = arith.constant dense<0.000000e+00> : vector<2x128xf32>
    %282 = tpu.matmul %261, %4, %cst_52 {dimension_numbers = #tpu.dot_dimension_numbers<[1], [0], [0], [1], [0, 0, 1, 1], [], []>} : vector<2x32xf32>, vector<32x128xf32>, vector<2x128xf32> -> vector<2x128xf32>
    %cst_53 = arith.constant dense<0.000000e+00> : vector<2x128xf32>
    %283 = tpu.matmul %259, %5, %cst_53 {dimension_numbers = #tpu.dot_dimension_numbers<[1], [0], [0], [1], [0, 0, 1, 1], [], []>} : vector<2x32xf32>, vector<32x128xf32>, vector<2x128xf32> -> vector<2x128xf32>
    %284 = arith.addf %282, %283 : vector<2x128xf32>
    %285 = vector.broadcast %6 : vector<1x128xf32> to vector<2x128xf32>
    %286 = arith.addf %284, %285 : vector<2x128xf32>
    %287 = arith.negf %286 : vector<2x128xf32>
    %288 = math.exp %287 : vector<2x128xf32>
    %cst_54 = arith.constant 1.000000e+00 : f32
    %289 = vector.broadcast %cst_54 : f32 to vector<2x128xf32>
    %290 = arith.addf %289, %288 : vector<2x128xf32>
    %291 = arith.divf %289, %290 : vector<2x128xf32>
    %292 = math.tanh %286 : vector<2x128xf32>
    %293 = vector.extract_strided_slice %291 {offsets = [0, 0], sizes = [2, 32], strides = [1, 1]} : vector<2x128xf32> to vector<2x32xf32>
    %294 = vector.extract_strided_slice %291 {offsets = [0, 32], sizes = [2, 32], strides = [1, 1]} : vector<2x128xf32> to vector<2x32xf32>
    %295 = vector.extract_strided_slice %292 {offsets = [0, 64], sizes = [2, 32], strides = [1, 1]} : vector<2x128xf32> to vector<2x32xf32>
    %296 = vector.extract_strided_slice %291 {offsets = [0, 96], sizes = [2, 32], strides = [1, 1]} : vector<2x128xf32> to vector<2x32xf32>
    %297 = arith.mulf %294, %257 : vector<2x32xf32>
    %298 = arith.mulf %293, %295 : vector<2x32xf32>
    %299 = arith.addf %297, %298 : vector<2x32xf32>
    %300 = math.tanh %299 : vector<2x32xf32>
    %301 = arith.mulf %296, %300 : vector<2x32xf32>
    %302 = vector.extract_strided_slice %0 {offsets = [0, 224], sizes = [2, 32], strides = [1, 1]} : vector<2x256xf32> to vector<2x32xf32>
    %303 = vector.extract_strided_slice %0 {offsets = [0, 0], sizes = [2, 32], strides = [1, 1]} : vector<2x256xf32> to vector<2x32xf32>
    %cst_55 = arith.constant dense<0.000000e+00> : vector<2x128xf32>
    %304 = tpu.matmul %302, %1, %cst_55 {dimension_numbers = #tpu.dot_dimension_numbers<[1], [0], [0], [1], [0, 0, 1, 1], [], []>} : vector<2x32xf32>, vector<32x128xf32>, vector<2x128xf32> -> vector<2x128xf32>
    %cst_56 = arith.constant dense<0.000000e+00> : vector<2x128xf32>
    %305 = tpu.matmul %281, %2, %cst_56 {dimension_numbers = #tpu.dot_dimension_numbers<[1], [0], [0], [1], [0, 0, 1, 1], [], []>} : vector<2x32xf32>, vector<32x128xf32>, vector<2x128xf32> -> vector<2x128xf32>
    %306 = arith.addf %304, %305 : vector<2x128xf32>
    %307 = vector.broadcast %3 : vector<1x128xf32> to vector<2x128xf32>
    %308 = arith.addf %306, %307 : vector<2x128xf32>
    %309 = arith.negf %308 : vector<2x128xf32>
    %310 = math.exp %309 : vector<2x128xf32>
    %cst_57 = arith.constant 1.000000e+00 : f32
    %311 = vector.broadcast %cst_57 : f32 to vector<2x128xf32>
    %312 = arith.addf %311, %310 : vector<2x128xf32>
    %313 = arith.divf %311, %312 : vector<2x128xf32>
    %314 = math.tanh %308 : vector<2x128xf32>
    %315 = vector.extract_strided_slice %313 {offsets = [0, 0], sizes = [2, 32], strides = [1, 1]} : vector<2x128xf32> to vector<2x32xf32>
    %316 = vector.extract_strided_slice %313 {offsets = [0, 32], sizes = [2, 32], strides = [1, 1]} : vector<2x128xf32> to vector<2x32xf32>
    %317 = vector.extract_strided_slice %314 {offsets = [0, 64], sizes = [2, 32], strides = [1, 1]} : vector<2x128xf32> to vector<2x32xf32>
    %318 = vector.extract_strided_slice %313 {offsets = [0, 96], sizes = [2, 32], strides = [1, 1]} : vector<2x128xf32> to vector<2x32xf32>
    %319 = arith.mulf %316, %279 : vector<2x32xf32>
    %320 = arith.mulf %315, %317 : vector<2x32xf32>
    %321 = arith.addf %319, %320 : vector<2x32xf32>
    %322 = math.tanh %321 : vector<2x32xf32>
    %323 = arith.mulf %318, %322 : vector<2x32xf32>
    %cst_58 = arith.constant dense<0.000000e+00> : vector<2x128xf32>
    %324 = tpu.matmul %303, %4, %cst_58 {dimension_numbers = #tpu.dot_dimension_numbers<[1], [0], [0], [1], [0, 0, 1, 1], [], []>} : vector<2x32xf32>, vector<32x128xf32>, vector<2x128xf32> -> vector<2x128xf32>
    %cst_59 = arith.constant dense<0.000000e+00> : vector<2x128xf32>
    %325 = tpu.matmul %301, %5, %cst_59 {dimension_numbers = #tpu.dot_dimension_numbers<[1], [0], [0], [1], [0, 0, 1, 1], [], []>} : vector<2x32xf32>, vector<32x128xf32>, vector<2x128xf32> -> vector<2x128xf32>
    %326 = arith.addf %324, %325 : vector<2x128xf32>
    %327 = vector.broadcast %6 : vector<1x128xf32> to vector<2x128xf32>
    %328 = arith.addf %326, %327 : vector<2x128xf32>
    %329 = arith.negf %328 : vector<2x128xf32>
    %330 = math.exp %329 : vector<2x128xf32>
    %cst_60 = arith.constant 1.000000e+00 : f32
    %331 = vector.broadcast %cst_60 : f32 to vector<2x128xf32>
    %332 = arith.addf %331, %330 : vector<2x128xf32>
    %333 = arith.divf %331, %332 : vector<2x128xf32>
    %334 = math.tanh %328 : vector<2x128xf32>
    %335 = vector.extract_strided_slice %333 {offsets = [0, 0], sizes = [2, 32], strides = [1, 1]} : vector<2x128xf32> to vector<2x32xf32>
    %336 = vector.extract_strided_slice %333 {offsets = [0, 32], sizes = [2, 32], strides = [1, 1]} : vector<2x128xf32> to vector<2x32xf32>
    %337 = vector.extract_strided_slice %334 {offsets = [0, 64], sizes = [2, 32], strides = [1, 1]} : vector<2x128xf32> to vector<2x32xf32>
    %338 = vector.extract_strided_slice %333 {offsets = [0, 96], sizes = [2, 32], strides = [1, 1]} : vector<2x128xf32> to vector<2x32xf32>
    %339 = arith.mulf %336, %299 : vector<2x32xf32>
    %340 = arith.mulf %335, %337 : vector<2x32xf32>
    %341 = arith.addf %339, %340 : vector<2x32xf32>
    %342 = math.tanh %341 : vector<2x32xf32>
    %343 = arith.mulf %338, %342 : vector<2x32xf32>
    %c0_61 = arith.constant 0 : index
    %c0_62 = arith.constant 0 : index
    %344 = vector.load %arg7[%c0_61, %c0_62] : memref<512x9xf32, #tpu.memory_space<vmem>>, vector<512x9xf32>
    %c0_63 = arith.constant 0 : index
    %c0_64 = arith.constant 0 : index
    %345 = vector.load %arg9[%c0_63, %c0_64] : memref<9x16xf32, #tpu.memory_space<vmem>>, vector<9x16xf32>
    %cst_65 = arith.constant dense<0.000000e+00> : vector<512x16xf32>
    %346 = tpu.matmul %344, %345, %cst_65 {dimension_numbers = #tpu.dot_dimension_numbers<[1], [0], [0], [1], [0, 0, 1, 1], [], []>} : vector<512x9xf32>, vector<9x16xf32>, vector<512x16xf32> -> vector<512x16xf32>
    %c0_66 = arith.constant 0 : index
    %c0_67 = arith.constant 0 : index
    %347 = vector.load %arg10[%c0_66, %c0_67] : memref<1x16xf32, #tpu.memory_space<vmem>>, vector<1x16xf32>
    %348 = vector.broadcast %347 : vector<1x16xf32> to vector<512x16xf32>
    %349 = arith.addf %346, %348 : vector<512x16xf32>
    %cst_68 = arith.constant 0.000000e+00 : f32
    %350 = vector.broadcast %cst_68 : f32 to vector<512x16xf32>
    %351 = arith.maximumf %349, %350 : vector<512x16xf32>
    %c0_69 = arith.constant 0 : index
    %c0_70 = arith.constant 0 : index
    %352 = vector.load %arg8[%c0_69, %c0_70] : memref<2x512xf32, #tpu.memory_space<vmem>>, vector<2x512xf32>
    %cst_71 = arith.constant dense<0.000000e+00> : vector<2x16xf32>
    %353 = tpu.matmul %352, %351, %cst_71 {dimension_numbers = #tpu.dot_dimension_numbers<[1], [0], [0], [1], [0, 0, 1, 1], [], []>} : vector<2x512xf32>, vector<512x16xf32>, vector<2x16xf32> -> vector<2x16xf32>
    %c0_72 = arith.constant 0 : index
    %c0_73 = arith.constant 0 : index
    %354 = vector.load %arg11[%c0_72, %c0_73] : memref<16x128xf32, #tpu.memory_space<vmem>>, vector<16x128xf32>
    %cst_74 = arith.constant dense<0.000000e+00> : vector<2x128xf32>
    %355 = tpu.matmul %353, %354, %cst_74 {dimension_numbers = #tpu.dot_dimension_numbers<[1], [0], [0], [1], [0, 0, 1, 1], [], []>} : vector<2x16xf32>, vector<16x128xf32>, vector<2x128xf32> -> vector<2x128xf32>
    %c0_75 = arith.constant 0 : index
    %c0_76 = arith.constant 0 : index
    %356 = vector.load %arg12[%c0_75, %c0_76] : memref<1x128xf32, #tpu.memory_space<vmem>>, vector<1x128xf32>
    %357 = vector.broadcast %356 : vector<1x128xf32> to vector<2x128xf32>
    %358 = arith.addf %355, %357 : vector<2x128xf32>
    %359 = tpu.concatenate %323, %343, %358 in 1 : vector<2x32xf32>, vector<2x32xf32>, vector<2x128xf32> -> vector<2x192xf32>
    %c0_77 = arith.constant 0 : index
    %c0_78 = arith.constant 0 : index
    %360 = vector.load %arg13[%c0_77, %c0_78] : memref<2x192xf32, #tpu.memory_space<vmem>>, vector<2x192xf32>
    tpu.vector_store %arg13[%c0_77, %c0_78], %359 {strides = array<i32>} : memref<2x192xf32, #tpu.memory_space<vmem>>, vector<2x192xf32>,
    return
  }
}

</mosaic_0001>

<llo_original>
// kernel: gait_fc_forward.1
$region0: #{gait_fc_forward.1}
  #allocation0 [shape = 'u32[]', space=smem, size = 0x4, offset = 0x4, fixed_abs, tag = 'smem constant byte address 0x4 - core index']
  #allocation1 [shape = 'u32[144,128]{1,0:T(1,128)}', space=vmem, size = 0x12000, scoped, tag = 'internal scratch']
  %s0 = inlined_call_operand.vmem [shape: f32[2,256], index: 0, kind: input, shape index: {}]
  %s1 = inlined_call_operand.vmem [shape: f32[32,128], index: 1, kind: input, shape index: {}]
  %s2 = inlined_call_operand.vmem [shape: f32[32,128], index: 2, kind: input, shape index: {}]
  %s3 = inlined_call_operand.vmem [shape: f32[1,128], index: 3, kind: input, shape index: {}]
  %s4 = inlined_call_operand.vmem [shape: f32[32,128], index: 4, kind: input, shape index: {}]
  %s5 = inlined_call_operand.vmem [shape: f32[32,128], index: 5, kind: input, shape index: {}]
  %s6 = inlined_call_operand.vmem [shape: f32[1,128], index: 6, kind: input, shape index: {}]
  %s7 = inlined_call_operand.vmem [shape: f32[512,9], index: 7, kind: input, shape index: {}]
  %s8 = inlined_call_operand.vmem [shape: f32[2,512], index: 8, kind: input, shape index: {}]
  %s9 = inlined_call_operand.vmem [shape: f32[9,16], index: 9, kind: input, shape index: {}]
  %s10 = inlined_call_operand.vmem [shape: f32[1,16], index: 10, kind: input, shape index: {}]
  %s11 = inlined_call_operand.vmem [shape: f32[16,128], index: 11, kind: input, shape index: {}]
  %s12 = inlined_call_operand.vmem [shape: f32[1,128], index: 12, kind: input, shape index: {}]
  %s13 = inlined_call_operand.hbm [shape: f32[2,192], index: 13, kind: output, shape index: {}]
  %s14 = sld [smem:[#allocation0]]
  $region62: #{gait_fc_forward.1} parent=0
    _
  %s16 = ssub.s32 1, %s14
  %s17 = scalar_select 0, %s16, %s14
  $region1: #{gait_fc_forward.1} parent=0
    #allocation2 [shape = 'u8[2048]{0}', space=vmem, size = 0x800, scoped, tag = 'output window, operand 0, single buffered']
    #allocation3 [shape = 's32[1]{0}', space=sflag, size = 0x4, scoped, tag = 'scoped memory for gait_fc_forward.1']
    %18 = vsyncpa [#allocation3], 0
    // Predicated region
    $region2: #{gait_fc_forward.1} parent=1 // pred_check
      _
    $region3: #{gait_fc_forward.1} parent=1 // pred_check_branch
      %20 = sbr.rel (0) target = $region5
    $region4: #{gait_fc_forward.1} parent=1 // pred_region
      _
    $region5: #{gait_fc_forward.1} parent=1 // pred_fallthru
      _
    // Predicated region
    $region6: #{gait_fc_forward.1} parent=1 // pred_check
      _
    $region7: #{gait_fc_forward.1} parent=1 // pred_check_branch
      %22 = sbr.rel (0) target = $region9
    $region8: #{gait_fc_forward.1} parent=1 // pred_region
      _
    $region9: #{gait_fc_forward.1} parent=1 // pred_fallthru
      _
    // Predicated region
    $region10: #{gait_fc_forward.1} parent=1 // pred_check
      _
    $region11: #{gait_fc_forward.1} parent=1 // pred_check_branch
      %24 = sbr.rel (0) target = $region13
    $region12: #{gait_fc_forward.1} parent=1 // pred_region
      _
    $region13: #{gait_fc_forward.1} parent=1 // pred_fallthru
      _
    // Predicated region
    $region14: #{gait_fc_forward.1} parent=1 // pred_check
      _
    $region15: #{gait_fc_forward.1} parent=1 // pred_check_branch
      %26 = sbr.rel (0) target = $region17
    $region16: #{gait_fc_forward.1} parent=1 // pred_region
      _
    $region17: #{gait_fc_forward.1} parent=1 // pred_fallthru
      _
    // Predicated region
    $region18: #{gait_fc_forward.1} parent=1 // pred_check
      _
    $region19: #{gait_fc_forward.1} parent=1 // pred_check_branch
      %28 = sbr.rel (0) target = $region21
    $region20: #{gait_fc_forward.1} parent=1 // pred_region
      _
    $region21: #{gait_fc_forward.1} parent=1 // pred_fallthru
      _
    // Predicated region
    $region22: #{gait_fc_forward.1} parent=1 // pred_check
      _
    $region23: #{gait_fc_forward.1} parent=1 // pred_check_branch
      %30 = sbr.rel (0) target = $region25
    $region24: #{gait_fc_forward.1} parent=1 // pred_region
      _
    $region25: #{gait_fc_forward.1} parent=1 // pred_fallthru
      _
    // Predicated region
    $region26: #{gait_fc_forward.1} parent=1 // pred_check
      _
    $region27: #{gait_fc_forward.1} parent=1 // pred_check_branch
      %32 = sbr.rel (0) target = $region29
    $region28: #{gait_fc_forward.1} parent=1 // pred_region
      _
    $region29: #{gait_fc_forward.1} parent=1 // pred_fallthru
      _
    // Predicated region
    $region30: #{gait_fc_forward.1} parent=1 // pred_check
      _
    $region31: #{gait_fc_forward.1} parent=1 // pred_check_branch
      %34 = sbr.rel (0) target = $region33
    $region32: #{gait_fc_forward.1} parent=1 // pred_region
      _
    $region33: #{gait_fc_forward.1} parent=1 // pred_fallthru
      _
    // Predicated region
    $region34: #{gait_fc_forward.1} parent=1 // pred_check
      _
    $region35: #{gait_fc_forward.1} parent=1 // pred_check_branch
      %36 = sbr.rel (0) target = $region37
    $region36: #{gait_fc_forward.1} parent=1 // pred_region
      _
    $region37: #{gait_fc_forward.1} parent=1 // pred_fallthru
      _
    // Predicated region
    $region38: #{gait_fc_forward.1} parent=1 // pred_check
      _
    $region39: #{gait_fc_forward.1} parent=1 // pred_check_branch
      %38 = sbr.rel (0) target = $region41
    $region40: #{gait_fc_forward.1} parent=1 // pred_region
      _
    $region41: #{gait_fc_forward.1} parent=1 // pred_fallthru
      _
    // Predicated region
    $region42: #{gait_fc_forward.1} parent=1 // pred_check
      _
    $region43: #{gait_fc_forward.1} parent=1 // pred_check_branch
      %40 = sbr.rel (0) target = $region45
    $region44: #{gait_fc_forward.1} parent=1 // pred_region
      _
    $region45: #{gait_fc_forward.1} parent=1 // pred_fallthru
      _
    // Predicated region
    $region46: #{gait_fc_forward.1} parent=1 // pred_check
      _
    $region47: #{gait_fc_forward.1} parent=1 // pred_check_branch
      %42 = sbr.rel (0) target = $region49
    $region48: #{gait_fc_forward.1} parent=1 // pred_region
      _
    $region49: #{gait_fc_forward.1} parent=1 // pred_fallthru
      _
    // Predicated region
    $region50: #{gait_fc_forward.1} parent=1 // pred_check
      _
    $region51: #{gait_fc_forward.1} parent=1 // pred_check_branch
      %44 = sbr.rel (0) target = $region53
    $region52: #{gait_fc_forward.1} parent=1 // pred_region
      _
    $region53: #{gait_fc_forward.1} parent=1 // pred_fallthru
      _
    %v45 = vld [vmem:[%s0] sm:$0xf]
    %v46 = vld [vmem:[%s1] sm:$0xff]
    %v47 = vld [vmem:[%s1 + $0x8] sm:$0xff]
    %v48 = vld [vmem:[%s1 + $0x10] sm:$0xff]
    %v49 = vld [vmem:[%s1 + $0x18] sm:$0xff]
    %v50 = vld [vmem:[%s2] sm:$0xff]
    %v51 = vld [vmem:[%s2 + $0x8] sm:$0xff]
    %v52 = vld [vmem:[%s2 + $0x10] sm:$0xff]
    %v53 = vld [vmem:[%s2 + $0x18] sm:$0xff]
    %v54 = vld [vmem:[%s3] sm:$0x1]
    %v55 = vld [vmem:[%s4] sm:$0xff]
    %v56 = vld [vmem:[%s4 + $0x8] sm:$0xff]
    %v57 = vld [vmem:[%s4 + $0x10] sm:$0xff]
    %v58 = vld [vmem:[%s4 + $0x18] sm:$0xff]
    %v59 = vld [vmem:[%s5] sm:$0xff]
    %v60 = vld [vmem:[%s5 + $0x8] sm:$0xff]
    %v61 = vld [vmem:[%s5 + $0x10] sm:$0xff]
    %v62 = vld [vmem:[%s5 + $0x18] sm:$0xff]
    %v63 = vld [vmem:[%s6] sm:$0x1]
    %vm64 = vcmask 261120
    %v66 = vsel %vm64, 0.0, 0
    %68 = vmatprep.subr.mxu0 0.0
    %69 = vmatpush1.msra.mxu0 0.0
    %70 = vmatprep.subr.mxu0 0.0
    %71 = vmatpush1.msra.mxu0 0.0
    %72 = vmatprep.subr.mxu0 0.0
    %73 = vmatpush1.msra.mxu0 0.0
    %74 = vmatprep.subr.mxu0 0.0
    %75 = vmatpush1.msra.mxu0 0.0
    %76 = vmatprep.subr.mxu0 0.0
    %77 = vmatpush1.msra.mxu0 0.0
    %78 = vmatprep.subr.mxu0 0.0
    %79 = vmatpush1.msra.mxu0 0.0
    %80 = vmatprep.subr.mxu0 0.0
    %81 = vmatpush1.msra.mxu0 0.0
    %82 = vmatprep.subr.mxu0 0.0
    %83 = vmatpush1.msra.mxu0 0.0
    %84 = vmatprep.subr.mxu0 0.0
    %85 = vmatpush1.msra.mxu0 0.0
    %86 = vmatprep.subr.mxu0 0.0
    %87 = vmatpush1.msra.mxu0 0.0
    %88 = vmatprep.subr.mxu0 0.0
    %89 = vmatpush1.msra.mxu0 0.0
    %90 = vmatprep.subr.mxu0 0.0
    %91 = vmatpush1.msra.mxu0 0.0
    %92 = vmatprep.subr.mxu0 0.0
    %93 = vmatpush1.msra.mxu0 %v53
    %94 = vmatprep.subr.mxu0 0.0
    %95 = vmatpush1.msra.mxu0 %v52
    %96 = vmatprep.subr.mxu0 0.0
    %97 = vmatpush1.msra.mxu0 %v51
    %98 = vmatprep.subr.mxu0 0.0
    %99 = vmatpush1.msra.mxu0 %v50
    %100 = vmatprep.subr.mxu0 0.0
    %101 = vmatpush2.msra.mxu0 0.0
    %102 = vmatprep.subr.mxu0 0.0
    %103 = vmatpush2.msra.mxu0 0.0
    %104 = vmatprep.subr.mxu0 0.0
    %105 = vmatpush2.msra.mxu0 0.0
    %106 = vmatprep.subr.mxu0 0.0
    %107 = vmatpush2.msra.mxu0 0.0
    %108 = vmatprep.subr.mxu0 0.0
    %109 = vmatpush2.msra.mxu0 0.0
    %110 = vmatprep.subr.mxu0 0.0
    %111 = vmatpush2.msra.mxu0 0.0
    %112 = vmatprep.subr.mxu0 0.0
    %113 = vmatpush2.msra.mxu0 0.0
    %114 = vmatprep.subr.mxu0 0.0
    %115 = vmatpush2.msra.mxu0 0.0
    %116 = vmatprep.subr.mxu0 0.0
    %117 = vmatpush2.msra.mxu0 0.0
    %118 = vmatprep.subr.mxu0 0.0
    %119 = vmatpush2.msra.mxu0 0.0
    %120 = vmatprep.subr.mxu0 0.0
    %121 = vmatpush2.msra.mxu0 0.0
    %122 = vmatprep.subr.mxu0 0.0
    %123 = vmatpush2.msra.mxu0 0.0
    %124 = vmatprep.subr.mxu0 0.0
    %125 = vmatpush2.msra.mxu0 0.0
    %126 = vmatprep.subr.mxu0 0.0
    %127 = vmatpush2.msra.mxu0 0.0
    %128 = vmatprep.subr.mxu0 0.0
    %129 = vmatpush2.msra.mxu0 0.0
    %130 = vmatprep.subr.mxu0 0.0
    %131 = vmatpush2.msra.mxu0 0.0
    %132 = vmatprep.mubr.f32.mxu0 0.0
    %133 = vmatmul.mubr.f32.gmra.mxu0 %v66
    %v134 = vpop.f32.mrf.mxu0
    %v135 = vadd.f32 0.0, %v134
    %v136 = vpop.f32.mrf.mxu0
    %137 = vdwg.mxu0
    %v139 = vsel %vm64, %v45, 0
    %141 = vmatprep.subr.mxu0 0.0
    %142 = vmatpush1.msra.mxu0 0.0
    %143 = vmatprep.subr.mxu0 0.0
    %144 = vmatpush1.msra.mxu0 0.0
    %145 = vmatprep.subr.mxu0 0.0
    %146 = vmatpush1.msra.mxu0 0.0
    %147 = vmatprep.subr.mxu0 0.0
    %148 = vmatpush1.msra.mxu0 0.0
    %149 = vmatprep.subr.mxu0 0.0
    %150 = vmatpush1.msra.mxu0 0.0
    %151 = vmatprep.subr.mxu0 0.0
    %152 = vmatpush1.msra.mxu0 0.0
    %153 = vmatprep.subr.mxu0 0.0
    %154 = vmatpush1.msra.mxu0 0.0
    %155 = vmatprep.subr.mxu0 0.0
    %156 = vmatpush1.msra.mxu0 0.0
    %157 = vmatprep.subr.mxu0 0.0
    %158 = vmatpush1.msra.mxu0 0.0
    %159 = vmatprep.subr.mxu0 0.0
    %160 = vmatpush1.msra.mxu0 0.0
    %161 = vmatprep.subr.mxu0 0.0
    %162 = vmatpush1.msra.mxu0 0.0
    %163 = vmatprep.subr.mxu0 0.0
    %164 = vmatpush1.msra.mxu0 0.0
    %165 = vmatprep.subr.mxu0 0.0
    %166 = vmatpush1.msra.mxu0 %v49
    %167 = vmatprep.subr.mxu0 0.0
    %168 = vmatpush1.msra.mxu0 %v48
    %169 = vmatprep.subr.mxu0 0.0
    %170 = vmatpush1.msra.mxu0 %v47
    %171 = vmatprep.subr.mxu0 0.0
    %172 = vmatpush1.msra.mxu0 %v46
    %173 = vmatprep.subr.mxu0 0.0
    %174 = vmatpush2.msra.mxu0 0.0
    %175 = vmatprep.subr.mxu0 0.0
    %176 = vmatpush2.msra.mxu0 0.0
    %177 = vmatprep.subr.mxu0 0.0
    %178 = vmatpush2.msra.mxu0 0.0
    %179 = vmatprep.subr.mxu0 0.0
    %180 = vmatpush2.msra.mxu0 0.0
    %181 = vmatprep.subr.mxu0 0.0
    %182 = vmatpush2.msra.mxu0 0.0
    %183 = vmatprep.subr.mxu0 0.0
    %184 = vmatpush2.msra.mxu0 0.0
    %185 = vmatprep.subr.mxu0 0.0
    %186 = vmatpush2.msra.mxu0 0.0
    %187 = vmatprep.subr.mxu0 0.0
    %188 = vmatpush2.msra.mxu0 0.0
    %189 = vmatprep.subr.mxu0 0.0
    %190 = vmatpush2.msra.mxu0 0.0
    %191 = vmatprep.subr.mxu0 0.0
    %192 = vmatpush2.msra.mxu0 0.0
    %193 = vmatprep.subr.mxu0 0.0
    %194 = vmatpush2.msra.mxu0 0.0
    %195 = vmatprep.subr.mxu0 0.0
    %196 = vmatpush2.msra.mxu0 0.0
    %197 = vmatprep.subr.mxu0 0.0
    %198 = vmatpush2.msra.mxu0 0.0
    %199 = vmatprep.subr.mxu0 0.0
    %200 = vmatpush2.msra.mxu0 0.0
    %201 = vmatprep.subr.mxu0 0.0
    %202 = vmatpush2.msra.mxu0 0.0
    %203 = vmatprep.subr.mxu0 0.0
    %204 = vmatpush2.msra.mxu0 0.0
    %205 = vmatprep.mubr.f32.mxu0 0.0
    %206 = vmatmul.mubr.f32.gmra.mxu0 %v139
    %v207 = vpop.f32.mrf.mxu0
    %v208 = vadd.f32 %v135, %v207
    %v209 = vpop.f32.mrf.mxu0
    %210 = vdwg.mxu0
    %v212 = vlaneseq
    %v213 = vshrl.u32 %v212, 7
    %v214 = vsub.s32 0, %v213
    %v215 = vrot.slane %v54, %v214
    %v217 = vadd.f32 %v208, %v215
    %v218 = vxor.u32 %v217, 2147483648
    %v219 = vmul.f32 %v218, 1.442695
    %v220 = vpow.pop %v219
    %v221 = vadd.f32 %v220, 1.0
    %v222 = vrcp.pop %v221
    %v223 = vmul.f32 1.0, %v222
    %v224 = vtanh.pop %v217
    %v225 = vmul.f32 %v223, 0.0
    %227 = vrot.lane.b32.xlu0 %v224, 64
    %v228 = vpop.permute.xlu0 %227
    %v230 = vmul.f32 %v223, %v228
    %232 = vrot.lane.b32.xlu0 %v230, 32
    %v233 = vpop.permute.xlu0 %232
    %v235 = vadd.f32 %v225, %v233
    %v236 = vtanh.pop %v235
    %238 = vrot.lane.b32.xlu0 %v236, 64
    %v239 = vpop.permute.xlu0 %238
    %v241 = vmul.f32 %v223, %v239
    %242 = vmatprep.subr.mxu0 0.0
    %243 = vmatpush1.msra.mxu0 0.0
    %244 = vmatprep.subr.mxu0 0.0
    %245 = vmatpush1.msra.mxu0 0.0
    %246 = vmatprep.subr.mxu0 0.0
    %247 = vmatpush1.msra.mxu0 0.0
    %248 = vmatprep.subr.mxu0 0.0
    %249 = vmatpush1.msra.mxu0 0.0
    %250 = vmatprep.subr.mxu0 0.0
    %251 = vmatpush1.msra.mxu0 0.0
    %252 = vmatprep.subr.mxu0 0.0
    %253 = vmatpush1.msra.mxu0 0.0
    %254 = vmatprep.subr.mxu0 0.0
    %255 = vmatpush1.msra.mxu0 0.0
    %256 = vmatprep.subr.mxu0 0.0
    %257 = vmatpush1.msra.mxu0 0.0
    %258 = vmatprep.subr.mxu0 0.0
    %259 = vmatpush1.msra.mxu0 0.0
    %260 = vmatprep.subr.mxu0 0.0
    %261 = vmatpush1.msra.mxu0 0.0
    %262 = vmatprep.subr.mxu0 0.0
    %263 = vmatpush1.msra.mxu0 0.0
    %264 = vmatprep.subr.mxu0 0.0
    %265 = vmatpush1.msra.mxu0 0.0
    %266 = vmatprep.subr.mxu0 0.0
    %267 = vmatpush1.msra.mxu0 %v62
    %268 = vmatprep.subr.mxu0 0.0
    %269 = vmatpush1.msra.mxu0 %v61
    %270 = vmatprep.subr.mxu0 0.0
    %271 = vmatpush1.msra.mxu0 %v60
    %272 = vmatprep.subr.mxu0 0.0
    %273 = vmatpush1.msra.mxu0 %v59
    %274 = vmatprep.subr.mxu0 0.0
    %275 = vmatpush2.msra.mxu0 0.0
    %276 = vmatprep.subr.mxu0 0.0
    %277 = vmatpush2.msra.mxu0 0.0
    %278 = vmatprep.subr.mxu0 0.0
    %279 = vmatpush2.msra.mxu0 0.0
    %280 = vmatprep.subr.mxu0 0.0
    %281 = vmatpush2.msra.mxu0 0.0
    %282 = vmatprep.subr.mxu0 0.0
    %283 = vmatpush2.msra.mxu0 0.0
    %284 = vmatprep.subr.mxu0 0.0
    %285 = vmatpush2.msra.mxu0 0.0
    %286 = vmatprep.subr.mxu0 0.0
    %287 = vmatpush2.msra.mxu0 0.0
    %288 = vmatprep.subr.mxu0 0.0
    %289 = vmatpush2.msra.mxu0 0.0
    %290 = vmatprep.subr.mxu0 0.0
    %291 = vmatpush2.msra.mxu0 0.0
    %292 = vmatprep.subr.mxu0 0.0
    %293 = vmatpush2.msra.mxu0 0.0
    %294 = vmatprep.subr.mxu0 0.0
    %295 = vmatpush2.msra.mxu0 0.0
    %296 = vmatprep.subr.mxu0 0.0
    %297 = vmatpush2.msra.mxu0 0.0
    %298 = vmatprep.subr.mxu0 0.0
    %299 = vmatpush2.msra.mxu0 0.0
    %300 = vmatprep.subr.mxu0 0.0
    %301 = vmatpush2.msra.mxu0 0.0
    %302 = vmatprep.subr.mxu0 0.0
    %303 = vmatpush2.msra.mxu0 0.0
    %304 = vmatprep.subr.mxu0 0.0
    %305 = vmatpush2.msra.mxu0 0.0
    %306 = vmatprep.mubr.f32.mxu0 0.0
    %307 = vmatmul.mubr.f32.gmra.mxu0 %v66
    %v308 = vpop.f32.mrf.mxu0
    %v309 = vadd.f32 0.0, %v308
    %v310 = vpop.f32.mrf.mxu0
    %311 = vdwg.mxu0
    %v313 = vunpack.c.l.s4 1983009808
    %v314 = vunpack.c.0.s8 %v313
    %v315 = vlaneseq
    %v316 = vshrl.u32 %v315, 7
    %v317 = vsub.s32 %v314, %v316
    %v318 = vrot.slane %v45, %v317
    %v319 = vcombine.high %v318, %v318
    %320 = vrot.lane.b32.xlu0 %v319, 32
    %v321 = vpop.permute.xlu0 %320
    %v322 = vsel %vm64, %v321, 0
    %324 = vmatprep.subr.mxu0 0.0
    %325 = vmatpush1.msra.mxu0 0.0
    %326 = vmatprep.subr.mxu0 0.0
    %327 = vmatpush1.msra.mxu0 0.0
    %328 = vmatprep.subr.mxu0 0.0
    %329 = vmatpush1.msra.mxu0 0.0
    %330 = vmatprep.subr.mxu0 0.0
    %331 = vmatpush1.msra.mxu0 0.0
    %332 = vmatprep.subr.mxu0 0.0
    %333 = vmatpush1.msra.mxu0 0.0
    %334 = vmatprep.subr.mxu0 0.0
    %335 = vmatpush1.msra.mxu0 0.0
    %336 = vmatprep.subr.mxu0 0.0
    %337 = vmatpush1.msra.mxu0 0.0
    %338 = vmatprep.subr.mxu0 0.0
    %339 = vmatpush1.msra.mxu0 0.0
    %340 = vmatprep.subr.mxu0 0.0
    %341 = vmatpush1.msra.mxu0 0.0
    %342 = vmatprep.subr.mxu0 0.0
    %343 = vmatpush1.msra.mxu0 0.0
    %344 = vmatprep.subr.mxu0 0.0
    %345 = vmatpush1.msra.mxu0 0.0
    %346 = vmatprep.subr.mxu0 0.0
    %347 = vmatpush1.msra.mxu0 0.0
    %348 = vmatprep.subr.mxu0 0.0
    %349 = vmatpush1.msra.mxu0 %v58
    %350 = vmatprep.subr.mxu0 0.0
    %351 = vmatpush1.msra.mxu0 %v57
    %352 = vmatprep.subr.mxu0 0.0
    %353 = vmatpush1.msra.mxu0 %v56
    %354 = vmatprep.subr.mxu0 0.0
    %355 = vmatpush1.msra.mxu0 %v55
    %356 = vmatprep.subr.mxu0 0.0
    %357 = vmatpush2.msra.mxu0 0.0
    %358 = vmatprep.subr.mxu0 0.0
    %359 = vmatpush2.msra.mxu0 0.0
    %360 = vmatprep.subr.mxu0 0.0
    %361 = vmatpush2.msra.mxu0 0.0
    %362 = vmatprep.subr.mxu0 0.0
    %363 = vmatpush2.msra.mxu0 0.0
    %364 = vmatprep.subr.mxu0 0.0
    %365 = vmatpush2.msra.mxu0 0.0
    %366 = vmatprep.subr.mxu0 0.0
    %367 = vmatpush2.msra.mxu0 0.0
    %368 = vmatprep.subr.mxu0 0.0
    %369 = vmatpush2.msra.mxu0 0.0
    %370 = vmatprep.subr.mxu0 0.0
    %371 = vmatpush2.msra.mxu0 0.0
    %372 = vmatprep.subr.mxu0 0.0
    %373 = vmatpush2.msra.mxu0 0.0
    %374 = vmatprep.subr.mxu0 0.0
    %375 = vmatpush2.msra.mxu0 0.0
    %376 = vmatprep.subr.mxu0 0.0
    %377 = vmatpush2.msra.mxu0 0.0
    %378 = vmatprep.subr.mxu0 0.0
    %379 = vmatpush2.msra.mxu0 0.0
    %380 = vmatprep.subr.mxu0 0.0
    %381 = vmatpush2.msra.mxu0 0.0
    %382 = vmatprep.subr.mxu0 0.0
    %383 = vmatpush2.msra.mxu0 0.0
    %384 = vmatprep.subr.mxu0 0.0
    %385 = vmatpush2.msra.mxu0 0.0
    %386 = vmatprep.subr.mxu0 0.0
    %387 = vmatpush2.msra.mxu0 0.0
    %388 = vmatprep.mubr.f32.mxu0 0.0
    %389 = vmatmul.mubr.f32.gmra.mxu0 %v322
    %v390 = vpop.f32.mrf.mxu0
    %v391 = vadd.f32 %v309, %v390
    %v392 = vpop.f32.mrf.mxu0
    %393 = vdwg.mxu0
    %v395 = vlaneseq
    %v396 = vshrl.u32 %v395, 7
    %v397 = vsub.s32 0, %v396
    %v398 = vrot.slane %v63, %v397
    %v400 = vadd.f32 %v391, %v398
    %v401 = vxor.u32 %v400, 2147483648
    %v402 = vmul.f32 %v401, 1.442695
    %v403 = vpow.pop %v402
    %v404 = vadd.f32 %v403, 1.0
    %v405 = vrcp.pop %v404
    %v406 = vmul.f32 1.0, %v405
    %v407 = vtanh.pop %v400
    %v408 = vmul.f32 %v406, 0.0
    %410 = vrot.lane.b32.xlu0 %v407, 64
    %v411 = vpop.permute.xlu0 %410
    %v413 = vmul.f32 %v406, %v411
    %415 = vrot.lane.b32.xlu0 %v413, 32
    %v416 = vpop.permute.xlu0 %415
    %v418 = vadd.f32 %v408, %v416
    %v419 = vtanh.pop %v418
    %421 = vrot.lane.b32.xlu0 %v419, 64
    %v422 = vpop.permute.xlu0 %421
    %v424 = vmul.f32 %v406, %v422
    %426 = vrot.lane.b32.xlu0 %v241, 32
    %v427 = vpop.permute.xlu0 %426
    %v428 = vsel %vm64, %v427, 0
    %430 = vmatprep.subr.mxu0 0.0
    %431 = vmatpush1.msra.mxu0 0.0
    %432 = vmatprep.subr.mxu0 0.0
    %433 = vmatpush1.msra.mxu0 0.0
    %434 = vmatprep.subr.mxu0 0.0
    %435 = vmatpush1.msra.mxu0 0.0
    %436 = vmatprep.subr.mxu0 0.0
    %437 = vmatpush1.msra.mxu0 0.0
    %438 = vmatprep.subr.mxu0 0.0
    %439 = vmatpush1.msra.mxu0 0.0
    %440 = vmatprep.subr.mxu0 0.0
    %441 = vmatpush1.msra.mxu0 0.0
    %442 = vmatprep.subr.mxu0 0.0
    %443 = vmatpush1.msra.mxu0 0.0
    %444 = vmatprep.subr.mxu0 0.0
    %445 = vmatpush1.msra.mxu0 0.0
    %446 = vmatprep.subr.mxu0 0.0
    %447 = vmatpush1.msra.mxu0 0.0
    %448 = vmatprep.subr.mxu0 0.0
    %449 = vmatpush1.msra.mxu0 0.0
    %450 = vmatprep.subr.mxu0 0.0
    %451 = vmatpush1.msra.mxu0 0.0
    %452 = vmatprep.subr.mxu0 0.0
    %453 = vmatpush1.msra.mxu0 0.0
    %454 = vmatprep.subr.mxu0 0.0
    %455 = vmatpush1.msra.mxu0 %v53
    %456 = vmatprep.subr.mxu0 0.0
    %457 = vmatpush1.msra.mxu0 %v52
    %458 = vmatprep.subr.mxu0 0.0
    %459 = vmatpush1.msra.mxu0 %v51
    %460 = vmatprep.subr.mxu0 0.0
    %461 = vmatpush1.msra.mxu0 %v50
    %462 = vmatprep.subr.mxu0 0.0
    %463 = vmatpush2.msra.mxu0 0.0
    %464 = vmatprep.subr.mxu0 0.0
    %465 = vmatpush2.msra.mxu0 0.0
    %466 = vmatprep.subr.mxu0 0.0
    %467 = vmatpush2.msra.mxu0 0.0
    %468 = vmatprep.subr.mxu0 0.0
    %469 = vmatpush2.msra.mxu0 0.0
    %470 = vmatprep.subr.mxu0 0.0
    %471 = vmatpush2.msra.mxu0 0.0
    %472 = vmatprep.subr.mxu0 0.0
    %473 = vmatpush2.msra.mxu0 0.0
    %474 = vmatprep.subr.mxu0 0.0
    %475 = vmatpush2.msra.mxu0 0.0
    %476 = vmatprep.subr.mxu0 0.0
    %477 = vmatpush2.msra.mxu0 0.0
    %478 = vmatprep.subr.mxu0 0.0
    %479 = vmatpush2.msra.mxu0 0.0
    %480 = vmatprep.subr.mxu0 0.0
    %481 = vmatpush2.msra.mxu0 0.0
    %482 = vmatprep.subr.mxu0 0.0
    %483 = vmatpush2.msra.mxu0 0.0
    %484 = vmatprep.subr.mxu0 0.0
    %485 = vmatpush2.msra.mxu0 0.0
    %486 = vmatprep.subr.mxu0 0.0
    %487 = vmatpush2.msra.mxu0 0.0
    %488 = vmatprep.subr.mxu0 0.0
    %489 = vmatpush2.msra.mxu0 0.0
    %490 = vmatprep.subr.mxu0 0.0
    %491 = vmatpush2.msra.mxu0 0.0
    %492 = vmatprep.subr.mxu0 0.0
    %493 = vmatpush2.msra.mxu0 0.0
    %494 = vmatprep.mubr.f32.mxu0 0.0
    %495 = vmatmul.mubr.f32.gmra.mxu0 %v428
    %v496 = vpop.f32.mrf.mxu0
    %v497 = vadd.f32 0.0, %v496
    %v498 = vpop.f32.mrf.mxu0
    %499 = vdwg.mxu0
    %500 = vrot.lane.b32.xlu0 %v318, 96
    %v501 = vpop.permute.xlu0 %500
    %v502 = vsel %vm64, %v501, 0
    %504 = vmatprep.subr.mxu0 0.0
    %505 = vmatpush1.msra.mxu0 0.0
    %506 = vmatprep.subr.mxu0 0.0
    %507 = vmatpush1.msra.mxu0 0.0
    %508 = vmatprep.subr.mxu0 0.0
    %509 = vmatpush1.msra.mxu0 0.0
    %510 = vmatprep.subr.mxu0 0.0
    %511 = vmatpush1.msra.mxu0 0.0
    %512 = vmatprep.subr.mxu0 0.0
    %513 = vmatpush1.msra.mxu0 0.0
    %514 = vmatprep.subr.mxu0 0.0
    %515 = vmatpush1.msra.mxu0 0.0
    %516 = vmatprep.subr.mxu0 0.0
    %517 = vmatpush1.msra.mxu0 0.0
    %518 = vmatprep.subr.mxu0 0.0
    %519 = vmatpush1.msra.mxu0 0.0
    %520 = vmatprep.subr.mxu0 0.0
    %521 = vmatpush1.msra.mxu0 0.0
    %522 = vmatprep.subr.mxu0 0.0
    %523 = vmatpush1.msra.mxu0 0.0
    %524 = vmatprep.subr.mxu0 0.0
    %525 = vmatpush1.msra.mxu0 0.0
    %526 = vmatprep.subr.mxu0 0.0
    %527 = vmatpush1.msra.mxu0 0.0
    %528 = vmatprep.subr.mxu0 0.0
    %529 = vmatpush1.msra.mxu0 %v49
    %530 = vmatprep.subr.mxu0 0.0
    %531 = vmatpush1.msra.mxu0 %v48
    %532 = vmatprep.subr.mxu0 0.0
    %533 = vmatpush1.msra.mxu0 %v47
    %534 = vmatprep.subr.mxu0 0.0
    %535 = vmatpush1.msra.mxu0 %v46
    %536 = vmatprep.subr.mxu0 0.0
    %537 = vmatpush2.msra.mxu0 0.0
    %538 = vmatprep.subr.mxu0 0.0
    %539 = vmatpush2.msra.mxu0 0.0
    %540 = vmatprep.subr.mxu0 0.0
    %541 = vmatpush2.msra.mxu0 0.0
    %542 = vmatprep.subr.mxu0 0.0
    %543 = vmatpush2.msra.mxu0 0.0
    %544 = vmatprep.subr.mxu0 0.0
    %545 = vmatpush2.msra.mxu0 0.0
    %546 = vmatprep.subr.mxu0 0.0
    %547 = vmatpush2.msra.mxu0 0.0
    %548 = vmatprep.subr.mxu0 0.0
    %549 = vmatpush2.msra.mxu0 0.0
    %550 = vmatprep.subr.mxu0 0.0
    %551 = vmatpush2.msra.mxu0 0.0
    %552 = vmatprep.subr.mxu0 0.0
    %553 = vmatpush2.msra.mxu0 0.0
    %554 = vmatprep.subr.mxu0 0.0
    %555 = vmatpush2.msra.mxu0 0.0
    %556 = vmatprep.subr.mxu0 0.0
    %557 = vmatpush2.msra.mxu0 0.0
    %558 = vmatprep.subr.mxu0 0.0
    %559 = vmatpush2.msra.mxu0 0.0
    %560 = vmatprep.subr.mxu0 0.0
    %561 = vmatpush2.msra.mxu0 0.0
    %562 = vmatprep.subr.mxu0 0.0
    %563 = vmatpush2.msra.mxu0 0.0
    %564 = vmatprep.subr.mxu0 0.0
    %565 = vmatpush2.msra.mxu0 0.0
    %566 = vmatprep.subr.mxu0 0.0
    %567 = vmatpush2.msra.mxu0 0.0
    %568 = vmatprep.mubr.f32.mxu0 0.0
    %569 = vmatmul.mubr.f32.gmra.mxu0 %v502
    %v570 = vpop.f32.mrf.mxu0
    %v571 = vadd.f32 %v497, %v570
    %v572 = vpop.f32.mrf.mxu0
    %573 = vdwg.mxu0
    %v574 = vadd.f32 %v571, %v215
    %v575 = vxor.u32 %v574, 2147483648
    %v576 = vmul.f32 %v575, 1.442695
    %v577 = vpow.pop %v576
    %v578 = vadd.f32 %v577, 1.0
    %v579 = vrcp.pop %v578
    %v580 = vmul.f32 1.0, %v579
    %v581 = vtanh.pop %v574
    %v582 = vmul.f32 %v580, %v235
    %584 = vrot.lane.b32.xlu0 %v581, 64
    %v585 = vpop.permute.xlu0 %584
    %v587 = vmul.f32 %v580, %v585
    %589 = vrot.lane.b32.xlu0 %v587, 32
    %v590 = vpop.permute.xlu0 %589
    %v592 = vadd.f32 %v582, %v590
    %v593 = vtanh.pop %v592
    %595 = vrot.lane.b32.xlu0 %v593, 64
    %v596 = vpop.permute.xlu0 %595
    %v598 = vmul.f32 %v580, %v596
    %600 = vrot.lane.b32.xlu0 %v424, 32
    %v601 = vpop.permute.xlu0 %600
    %v602 = vsel %vm64, %v601, 0
    %604 = vmatprep.subr.mxu0 0.0
    %605 = vmatpush1.msra.mxu0 0.0
    %606 = vmatprep.subr.mxu0 0.0
    %607 = vmatpush1.msra.mxu0 0.0
    %608 = vmatprep.subr.mxu0 0.0
    %609 = vmatpush1.msra.mxu0 0.0
    %610 = vmatprep.subr.mxu0 0.0
    %611 = vmatpush1.msra.mxu0 0.0
    %612 = vmatprep.subr.mxu0 0.0
    %613 = vmatpush1.msra.mxu0 0.0
    %614 = vmatprep.subr.mxu0 0.0
    %615 = vmatpush1.msra.mxu0 0.0
    %616 = vmatprep.subr.mxu0 0.0
    %617 = vmatpush1.msra.mxu0 0.0
    %618 = vmatprep.subr.mxu0 0.0
    %619 = vmatpush1.msra.mxu0 0.0
    %620 = vmatprep.subr.mxu0 0.0
    %621 = vmatpush1.msra.mxu0 0.0
    %622 = vmatprep.subr.mxu0 0.0
    %623 = vmatpush1.msra.mxu0 0.0
    %624 = vmatprep.subr.mxu0 0.0
    %625 = vmatpush1.msra.mxu0 0.0
    %626 = vmatprep.subr.mxu0 0.0
    %627 = vmatpush1.msra.mxu0 0.0
    %628 = vmatprep.subr.mxu0 0.0
    %629 = vmatpush1.msra.mxu0 %v62
    %630 = vmatprep.subr.mxu0 0.0
    %631 = vmatpush1.msra.mxu0 %v61
    %632 = vmatprep.subr.mxu0 0.0
    %633 = vmatpush1.msra.mxu0 %v60
    %634 = vmatprep.subr.mxu0 0.0
    %635 = vmatpush1.msra.mxu0 %v59
    %636 = vmatprep.subr.mxu0 0.0
    %637 = vmatpush2.msra.mxu0 0.0
    %638 = vmatprep.subr.mxu0 0.0
    %639 = vmatpush2.msra.mxu0 0.0
    %640 = vmatprep.subr.mxu0 0.0
    %641 = vmatpush2.msra.mxu0 0.0
    %642 = vmatprep.subr.mxu0 0.0
    %643 = vmatpush2.msra.mxu0 0.0
    %644 = vmatprep.subr.mxu0 0.0
    %645 = vmatpush2.msra.mxu0 0.0
    %646 = vmatprep.subr.mxu0 0.0
    %647 = vmatpush2.msra.mxu0 0.0
    %648 = vmatprep.subr.mxu0 0.0
    %649 = vmatpush2.msra.mxu0 0.0
    %650 = vmatprep.subr.mxu0 0.0
    %651 = vmatpush2.msra.mxu0 0.0
    %652 = vmatprep.subr.mxu0 0.0
    %653 = vmatpush2.msra.mxu0 0.0
    %654 = vmatprep.subr.mxu0 0.0
    %655 = vmatpush2.msra.mxu0 0.0
    %656 = vmatprep.subr.mxu0 0.0
    %657 = vmatpush2.msra.mxu0 0.0
    %658 = vmatprep.subr.mxu0 0.0
    %659 = vmatpush2.msra.mxu0 0.0
    %660 = vmatprep.subr.mxu0 0.0
    %661 = vmatpush2.msra.mxu0 0.0
    %662 = vmatprep.subr.mxu0 0.0
    %663 = vmatpush2.msra.mxu0 0.0
    %664 = vmatprep.subr.mxu0 0.0
    %665 = vmatpush2.msra.mxu0 0.0
    %666 = vmatprep.subr.mxu0 0.0
    %667 = vmatpush2.msra.mxu0 0.0
    %668 = vmatprep.mubr.f32.mxu0 0.0
    %669 = vmatmul.mubr.f32.gmra.mxu0 %v602
    %v670 = vpop.f32.mrf.mxu0
    %v671 = vadd.f32 0.0, %v670
    %v672 = vpop.f32.mrf.mxu0
    %673 = vdwg.mxu0
    %674 = vrot.lane.b32.xlu0 %v319, 64
    %v675 = vpop.permute.xlu0 %674
    %v676 = vsel %vm64, %v675, 0
    %678 = vmatprep.subr.mxu0 0.0
    %679 = vmatpush1.msra.mxu0 0.0
    %680 = vmatprep.subr.mxu0 0.0
    %681 = vmatpush1.msra.mxu0 0.0
    %682 = vmatprep.subr.mxu0 0.0
    %683 = vmatpush1.msra.mxu0 0.0
    %684 = vmatprep.subr.mxu0 0.0
    %685 = vmatpush1.msra.mxu0 0.0
    %686 = vmatprep.subr.mxu0 0.0
    %687 = vmatpush1.msra.mxu0 0.0
    %688 = vmatprep.subr.mxu0 0.0
    %689 = vmatpush1.msra.mxu0 0.0
    %690 = vmatprep.subr.mxu0 0.0
    %691 = vmatpush1.msra.mxu0 0.0
    %692 = vmatprep.subr.mxu0 0.0
    %693 = vmatpush1.msra.mxu0 0.0
    %694 = vmatprep.subr.mxu0 0.0
    %695 = vmatpush1.msra.mxu0 0.0
    %696 = vmatprep.subr.mxu0 0.0
    %697 = vmatpush1.msra.mxu0 0.0
    %698 = vmatprep.subr.mxu0 0.0
    %699 = vmatpush1.msra.mxu0 0.0
    %700 = vmatprep.subr.mxu0 0.0
    %701 = vmatpush1.msra.mxu0 0.0
    %702 = vmatprep.subr.mxu0 0.0
    %703 = vmatpush1.msra.mxu0 %v58
    %704 = vmatprep.subr.mxu0 0.0
    %705 = vmatpush1.msra.mxu0 %v57
    %706 = vmatprep.subr.mxu0 0.0
    %707 = vmatpush1.msra.mxu0 %v56
    %708 = vmatprep.subr.mxu0 0.0
    %709 = vmatpush1.msra.mxu0 %v55
    %710 = vmatprep.subr.mxu0 0.0
    %711 = vmatpush2.msra.mxu0 0.0
    %712 = vmatprep.subr.mxu0 0.0
    %713 = vmatpush2.msra.mxu0 0.0
    %714 = vmatprep.subr.mxu0 0.0
    %715 = vmatpush2.msra.mxu0 0.0
    %716 = vmatprep.subr.mxu0 0.0
    %717 = vmatpush2.msra.mxu0 0.0
    %718 = vmatprep.subr.mxu0 0.0
    %719 = vmatpush2.msra.mxu0 0.0
    %720 = vmatprep.subr.mxu0 0.0
    %721 = vmatpush2.msra.mxu0 0.0
    %722 = vmatprep.subr.mxu0 0.0
    %723 = vmatpush2.msra.mxu0 0.0
    %724 = vmatprep.subr.mxu0 0.0
    %725 = vmatpush2.msra.mxu0 0.0
    %726 = vmatprep.subr.mxu0 0.0
    %727 = vmatpush2.msra.mxu0 0.0
    %728 = vmatprep.subr.mxu0 0.0
    %729 = vmatpush2.msra.mxu0 0.0
    %730 = vmatprep.subr.mxu0 0.0
    %731 = vmatpush2.msra.mxu0 0.0
    %732 = vmatprep.subr.mxu0 0.0
    %733 = vmatpush2.msra.mxu0 0.0
    %734 = vmatprep.subr.mxu0 0.0
    %735 = vmatpush2.msra.mxu0 0.0
    %736 = vmatprep.subr.mxu0 0.0
    %737 = vmatpush2.msra.mxu0 0.0
    %738 = vmatprep.subr.mxu0 0.0
    %739 = vmatpush2.msra.mxu0 0.0
    %740 = vmatprep.subr.mxu0 0.0
    %741 = vmatpush2.msra.mxu0 0.0
    %742 = vmatprep.mubr.f32.mxu0 0.0
    %743 = vmatmul.mubr.f32.gmra.mxu0 %v676
    %v744 = vpop.f32.mrf.mxu0
    %v745 = vadd.f32 %v671, %v744
    %v746 = vpop.f32.mrf.mxu0
    %747 = vdwg.mxu0
    %v748 = vadd.f32 %v745, %v398
    %v749 = vxor.u32 %v748, 2147483648
    %v750 = vmul.f32 %v749, 1.442695
    %v751 = vpow.pop %v750
    %v752 = vadd.f32 %v751, 1.0
    %v753 = vrcp.pop %v752
    %v754 = vmul.f32 1.0, %v753
    %v755 = vtanh.pop %v748
    %v756 = vmul.f32 %v754, %v418
    %758 = vrot.lane.b32.xlu0 %v755, 64
    %v759 = vpop.permute.xlu0 %758
    %v761 = vmul.f32 %v754, %v759
    %763 = vrot.lane.b32.xlu0 %v761, 32
    %v764 = vpop.permute.xlu0 %763
    %v766 = vadd.f32 %v756, %v764
    %v767 = vtanh.pop %v766
    %769 = vrot.lane.b32.xlu0 %v767, 64
    %v770 = vpop.permute.xlu0 %769
    %v772 = vmul.f32 %v754, %v770
    %774 = vrot.lane.b32.xlu0 %v598, 32
    %v775 = vpop.permute.xlu0 %774
    %v776 = vsel %vm64, %v775, 0
    %778 = vmatprep.subr.mxu0 0.0
    %779 = vmatpush1.msra.mxu0 0.0
    %780 = vmatprep.subr.mxu0 0.0
    %781 = vmatpush1.msra.mxu0 0.0
    %782 = vmatprep.subr.mxu0 0.0
    %783 = vmatpush1.msra.mxu0 0.0
    %784 = vmatprep.subr.mxu0 0.0
    %785 = vmatpush1.msra.mxu0 0.0
    %786 = vmatprep.subr.mxu0 0.0
    %787 = vmatpush1.msra.mxu0 0.0
    %788 = vmatprep.subr.mxu0 0.0
    %789 = vmatpush1.msra.mxu0 0.0
    %790 = vmatprep.subr.mxu0 0.0
    %791 = vmatpush1.msra.mxu0 0.0
    %792 = vmatprep.subr.mxu0 0.0
    %793 = vmatpush1.msra.mxu0 0.0
    %794 = vmatprep.subr.mxu0 0.0
    %795 = vmatpush1.msra.mxu0 0.0
    %796 = vmatprep.subr.mxu0 0.0
    %797 = vmatpush1.msra.mxu0 0.0
    %798 = vmatprep.subr.mxu0 0.0
    %799 = vmatpush1.msra.mxu0 0.0
    %800 = vmatprep.subr.mxu0 0.0
    %801 = vmatpush1.msra.mxu0 0.0
    %802 = vmatprep.subr.mxu0 0.0
    %803 = vmatpush1.msra.mxu0 %v53
    %804 = vmatprep.subr.mxu0 0.0
    %805 = vmatpush1.msra.mxu0 %v52
    %806 = vmatprep.subr.mxu0 0.0
    %807 = vmatpush1.msra.mxu0 %v51
    %808 = vmatprep.subr.mxu0 0.0
    %809 = vmatpush1.msra.mxu0 %v50
    %810 = vmatprep.subr.mxu0 0.0
    %811 = vmatpush2.msra.mxu0 0.0
    %812 = vmatprep.subr.mxu0 0.0
    %813 = vmatpush2.msra.mxu0 0.0
    %814 = vmatprep.subr.mxu0 0.0
    %815 = vmatpush2.msra.mxu0 0.0
    %816 = vmatprep.subr.mxu0 0.0
    %817 = vmatpush2.msra.mxu0 0.0
    %818 = vmatprep.subr.mxu0 0.0
    %819 = vmatpush2.msra.mxu0 0.0
    %820 = vmatprep.subr.mxu0 0.0
    %821 = vmatpush2.msra.mxu0 0.0
    %822 = vmatprep.subr.mxu0 0.0
    %823 = vmatpush2.msra.mxu0 0.0
    %824 = vmatprep.subr.mxu0 0.0
    %825 = vmatpush2.msra.mxu0 0.0
    %826 = vmatprep.subr.mxu0 0.0
    %827 = vmatpush2.msra.mxu0 0.0
    %828 = vmatprep.subr.mxu0 0.0
    %829 = vmatpush2.msra.mxu0 0.0
    %830 = vmatprep.subr.mxu0 0.0
    %831 = vmatpush2.msra.mxu0 0.0
    %832 = vmatprep.subr.mxu0 0.0
    %833 = vmatpush2.msra.mxu0 0.0
    %834 = vmatprep.subr.mxu0 0.0
    %835 = vmatpush2.msra.mxu0 0.0
    %836 = vmatprep.subr.mxu0 0.0
    %837 = vmatpush2.msra.mxu0 0.0
    %838 = vmatprep.subr.mxu0 0.0
    %839 = vmatpush2.msra.mxu0 0.0
    %840 = vmatprep.subr.mxu0 0.0
    %841 = vmatpush2.msra.mxu0 0.0
    %842 = vmatprep.mubr.f32.mxu0 0.0
    %843 = vmatmul.mubr.f32.gmra.mxu0 %v776
    %v844 = vpop.f32.mrf.mxu0
    %v845 = vadd.f32 0.0, %v844
    %v846 = vpop.f32.mrf.mxu0
    %847 = vdwg.mxu0
    %848 = vrot.lane.b32.xlu0 %v318, 64
    %v849 = vpop.permute.xlu0 %848
    %v850 = vsel %vm64, %v849, 0
    %852 = vmatprep.subr.mxu0 0.0
    %853 = vmatpush1.msra.mxu0 0.0
    %854 = vmatprep.subr.mxu0 0.0
    %855 = vmatpush1.msra.mxu0 0.0
    %856 = vmatprep.subr.mxu0 0.0
    %857 = vmatpush1.msra.mxu0 0.0
    %858 = vmatprep.subr.mxu0 0.0
    %859 = vmatpush1.msra.mxu0 0.0
    %860 = vmatprep.subr.mxu0 0.0
    %861 = vmatpush1.msra.mxu0 0.0
    %862 = vmatprep.subr.mxu0 0.0
    %863 = vmatpush1.msra.mxu0 0.0
    %864 = vmatprep.subr.mxu0 0.0
    %865 = vmatpush1.msra.mxu0 0.0
    %866 = vmatprep.subr.mxu0 0.0
    %867 = vmatpush1.msra.mxu0 0.0
    %868 = vmatprep.subr.mxu0 0.0
    %869 = vmatpush1.msra.mxu0 0.0
    %870 = vmatprep.subr.mxu0 0.0
    %871 = vmatpush1.msra.mxu0 0.0
    %872 = vmatprep.subr.mxu0 0.0
    %873 = vmatpush1.msra.mxu0 0.0
    %874 = vmatprep.subr.mxu0 0.0
    %875 = vmatpush1.msra.mxu0 0.0
    %876 = vmatprep.subr.mxu0 0.0
    %877 = vmatpush1.msra.mxu0 %v49
    %878 = vmatprep.subr.mxu0 0.0
    %879 = vmatpush1.msra.mxu0 %v48
    %880 = vmatprep.subr.mxu0 0.0
    %881 = vmatpush1.msra.mxu0 %v47
    %882 = vmatprep.subr.mxu0 0.0
    %883 = vmatpush1.msra.mxu0 %v46
    %884 = vmatprep.subr.mxu0 0.0
    %885 = vmatpush2.msra.mxu0 0.0
    %886 = vmatprep.subr.mxu0 0.0
    %887 = vmatpush2.msra.mxu0 0.0
    %888 = vmatprep.subr.mxu0 0.0
    %889 = vmatpush2.msra.mxu0 0.0
    %890 = vmatprep.subr.mxu0 0.0
    %891 = vmatpush2.msra.mxu0 0.0
    %892 = vmatprep.subr.mxu0 0.0
    %893 = vmatpush2.msra.mxu0 0.0
    %894 = vmatprep.subr.mxu0 0.0
    %895 = vmatpush2.msra.mxu0 0.0
    %896 = vmatprep.subr.mxu0 0.0
    %897 = vmatpush2.msra.mxu0 0.0
    %898 = vmatprep.subr.mxu0 0.0
    %899 = vmatpush2.msra.mxu0 0.0
    %900 = vmatprep.subr.mxu0 0.0
    %901 = vmatpush2.msra.mxu0 0.0
    %902 = vmatprep.subr.mxu0 0.0
    %903 = vmatpush2.msra.mxu0 0.0
    %904 = vmatprep.subr.mxu0 0.0
    %905 = vmatpush2.msra.mxu0 0.0
    %906 = vmatprep.subr.mxu0 0.0
    %907 = vmatpush2.msra.mxu0 0.0
    %908 = vmatprep.subr.mxu0 0.0
    %909 = vmatpush2.msra.mxu0 0.0
    %910 = vmatprep.subr.mxu0 0.0
    %911 = vmatpush2.msra.mxu0 0.0
    %912 = vmatprep.subr.mxu0 0.0
    %913 = vmatpush2.msra.mxu0 0.0
    %914 = vmatprep.subr.mxu0 0.0
    %915 = vmatpush2.msra.mxu0 0.0
    %916 = vmatprep.mubr.f32.mxu0 0.0
    %917 = vmatmul.mubr.f32.gmra.mxu0 %v850
    %v918 = vpop.f32.mrf.mxu0
    %v919 = vadd.f32 %v845, %v918
    %v920 = vpop.f32.mrf.mxu0
    %921 = vdwg.mxu0
    %v922 = vadd.f32 %v919, %v215
    %v923 = vxor.u32 %v922, 2147483648
    %v924 = vmul.f32 %v923, 1.442695
    %v925 = vpow.pop %v924
    %v926 = vadd.f32 %v925, 1.0
    %v927 = vrcp.pop %v926
    %v928 = vmul.f32 1.0, %v927
    %v929 = vtanh.pop %v922
    %v930 = vmul.f32 %v928, %v592
    %932 = vrot.lane.b32.xlu0 %v929, 64
    %v933 = vpop.permute.xlu0 %932
    %v935 = vmul.f32 %v928, %v933
    %937 = vrot.lane.b32.xlu0 %v935, 32
    %v938 = vpop.permute.xlu0 %937
    %v940 = vadd.f32 %v930, %v938
    %v941 = vtanh.pop %v940
    %943 = vrot.lane.b32.xlu0 %v941, 64
    %v944 = vpop.permute.xlu0 %943
    %v946 = vmul.f32 %v928, %v944
    %948 = vrot.lane.b32.xlu0 %v772, 32
    %v949 = vpop.permute.xlu0 %948
    %v950 = vsel %vm64, %v949, 0
    %952 = vmatprep.subr.mxu0 0.0
    %953 = vmatpush1.msra.mxu0 0.0
    %954 = vmatprep.subr.mxu0 0.0
    %955 = vmatpush1.msra.mxu0 0.0
    %956 = vmatprep.subr.mxu0 0.0
    %957 = vmatpush1.msra.mxu0 0.0
    %958 = vmatprep.subr.mxu0 0.0
    %959 = vmatpush1.msra.mxu0 0.0
    %960 = vmatprep.subr.mxu0 0.0
    %961 = vmatpush1.msra.mxu0 0.0
    %962 = vmatprep.subr.mxu0 0.0
    %963 = vmatpush1.msra.mxu0 0.0
    %964 = vmatprep.subr.mxu0 0.0
    %965 = vmatpush1.msra.mxu0 0.0
    %966 = vmatprep.subr.mxu0 0.0
    %967 = vmatpush1.msra.mxu0 0.0
    %968 = vmatprep.subr.mxu0 0.0
    %969 = vmatpush1.msra.mxu0 0.0
    %970 = vmatprep.subr.mxu0 0.0
    %971 = vmatpush1.msra.mxu0 0.0
    %972 = vmatprep.subr.mxu0 0.0
    %973 = vmatpush1.msra.mxu0 0.0
    %974 = vmatprep.subr.mxu0 0.0
    %975 = vmatpush1.msra.mxu0 0.0
    %976 = vmatprep.subr.mxu0 0.0
    %977 = vmatpush1.msra.mxu0 %v62
    %978 = vmatprep.subr.mxu0 0.0
    %979 = vmatpush1.msra.mxu0 %v61
    %980 = vmatprep.subr.mxu0 0.0
    %981 = vmatpush1.msra.mxu0 %v60
    %982 = vmatprep.subr.mxu0 0.0
    %983 = vmatpush1.msra.mxu0 %v59
    %984 = vmatprep.subr.mxu0 0.0
    %985 = vmatpush2.msra.mxu0 0.0
    %986 = vmatprep.subr.mxu0 0.0
    %987 = vmatpush2.msra.mxu0 0.0
    %988 = vmatprep.subr.mxu0 0.0
    %989 = vmatpush2.msra.mxu0 0.0
    %990 = vmatprep.subr.mxu0 0.0
    %991 = vmatpush2.msra.mxu0 0.0
    %992 = vmatprep.subr.mxu0 0.0
    %993 = vmatpush2.msra.mxu0 0.0
    %994 = vmatprep.subr.mxu0 0.0
    %995 = vmatpush2.msra.mxu0 0.0
    %996 = vmatprep.subr.mxu0 0.0
    %997 = vmatpush2.msra.mxu0 0.0
    %998 = vmatprep.subr.mxu0 0.0
    %999 = vmatpush2.msra.mxu0 0.0
    %1000 = vmatprep.subr.mxu0 0.0
    %1001 = vmatpush2.msra.mxu0 0.0
    %1002 = vmatprep.subr.mxu0 0.0
    %1003 = vmatpush2.msra.mxu0 0.0
    %1004 = vmatprep.subr.mxu0 0.0
    %1005 = vmatpush2.msra.mxu0 0.0
    %1006 = vmatprep.subr.mxu0 0.0
    %1007 = vmatpush2.msra.mxu0 0.0
    %1008 = vmatprep.subr.mxu0 0.0
    %1009 = vmatpush2.msra.mxu0 0.0
    %1010 = vmatprep.subr.mxu0 0.0
    %1011 = vmatpush2.msra.mxu0 0.0
    %1012 = vmatprep.subr.mxu0 0.0
    %1013 = vmatpush2.msra.mxu0 0.0
    %1014 = vmatprep.subr.mxu0 0.0
    %1015 = vmatpush2.msra.mxu0 0.0
    %1016 = vmatprep.mubr.f32.mxu0 0.0
    %1017 = vmatmul.mubr.f32.gmra.mxu0 %v950
    %v1018 = vpop.f32.mrf.mxu0
    %v1019 = vadd.f32 0.0, %v1018
    %v1020 = vpop.f32.mrf.mxu0
    %1021 = vdwg.mxu0
    %1022 = vrot.lane.b32.xlu0 %v319, 96
    %v1023 = vpop.permute.xlu0 %1022
    %v1024 = vsel %vm64, %v1023, 0
    %1026 = vmatprep.subr.mxu0 0.0
    %1027 = vmatpush1.msra.mxu0 0.0
    %1028 = vmatprep.subr.mxu0 0.0
    %1029 = vmatpush1.msra.mxu0 0.0
    %1030 = vmatprep.subr.mxu0 0.0
    %1031 = vmatpush1.msra.mxu0 0.0
    %1032 = vmatprep.subr.mxu0 0.0
    %1033 = vmatpush1.msra.mxu0 0.0
    %1034 = vmatprep.subr.mxu0 0.0
    %1035 = vmatpush1.msra.mxu0 0.0
    %1036 = vmatprep.subr.mxu0 0.0
    %1037 = vmatpush1.msra.mxu0 0.0
    %1038 = vmatprep.subr.mxu0 0.0
    %1039 = vmatpush1.msra.mxu0 0.0
    %1040 = vmatprep.subr.mxu0 0.0
    %1041 = vmatpush1.msra.mxu0 0.0
    %1042 = vmatprep.subr.mxu0 0.0
    %1043 = vmatpush1.msra.mxu0 0.0
    %1044 = vmatprep.subr.mxu0 0.0
    %1045 = vmatpush1.msra.mxu0 0.0
    %1046 = vmatprep.subr.mxu0 0.0
    %1047 = vmatpush1.msra.mxu0 0.0
    %1048 = vmatprep.subr.mxu0 0.0
    %1049 = vmatpush1.msra.mxu0 0.0
    %1050 = vmatprep.subr.mxu0 0.0
    %1051 = vmatpush1.msra.mxu0 %v58
    %1052 = vmatprep.subr.mxu0 0.0
    %1053 = vmatpush1.msra.mxu0 %v57
    %1054 = vmatprep.subr.mxu0 0.0
    %1055 = vmatpush1.msra.mxu0 %v56
    %1056 = vmatprep.subr.mxu0 0.0
    %1057 = vmatpush1.msra.mxu0 %v55
    %1058 = vmatprep.subr.mxu0 0.0
    %1059 = vmatpush2.msra.mxu0 0.0
    %1060 = vmatprep.subr.mxu0 0.0
    %1061 = vmatpush2.msra.mxu0 0.0
    %1062 = vmatprep.subr.mxu0 0.0
    %1063 = vmatpush2.msra.mxu0 0.0
    %1064 = vmatprep.subr.mxu0 0.0
    %1065 = vmatpush2.msra.mxu0 0.0
    %1066 = vmatprep.subr.mxu0 0.0
    %1067 = vmatpush2.msra.mxu0 0.0
    %1068 = vmatprep.subr.mxu0 0.0
    %1069 = vmatpush2.msra.mxu0 0.0
    %1070 = vmatprep.subr.mxu0 0.0
    %1071 = vmatpush2.msra.mxu0 0.0
    %1072 = vmatprep.subr.mxu0 0.0
    %1073 = vmatpush2.msra.mxu0 0.0
    %1074 = vmatprep.subr.mxu0 0.0
    %1075 = vmatpush2.msra.mxu0 0.0
    %1076 = vmatprep.subr.mxu0 0.0
    %1077 = vmatpush2.msra.mxu0 0.0
    %1078 = vmatprep.subr.mxu0 0.0
    %1079 = vmatpush2.msra.mxu0 0.0
    %1080 = vmatprep.subr.mxu0 0.0
    %1081 = vmatpush2.msra.mxu0 0.0
    %1082 = vmatprep.subr.mxu0 0.0
    %1083 = vmatpush2.msra.mxu0 0.0
    %1084 = vmatprep.subr.mxu0 0.0
    %1085 = vmatpush2.msra.mxu0 0.0
    %1086 = vmatprep.subr.mxu0 0.0
    %1087 = vmatpush2.msra.mxu0 0.0
    %1088 = vmatprep.subr.mxu0 0.0
    %1089 = vmatpush2.msra.mxu0 0.0
    %1090 = vmatprep.mubr.f32.mxu0 0.0
    %1091 = vmatmul.mubr.f32.gmra.mxu0 %v1024
    %v1092 = vpop.f32.mrf.mxu0
    %v1093 = vadd.f32 %v1019, %v1092
    %v1094 = vpop.f32.mrf.mxu0
    %1095 = vdwg.mxu0
    %v1096 = vadd.f32 %v1093, %v398
    %v1097 = vxor.u32 %v1096, 2147483648
    %v1098 = vmul.f32 %v1097, 1.442695
    %v1099 = vpow.pop %v1098
    %v1100 = vadd.f32 %v1099, 1.0
    %v1101 = vrcp.pop %v1100
    %v1102 = vmul.f32 1.0, %v1101
    %v1103 = vtanh.pop %v1096
    %v1104 = vmul.f32 %v1102, %v766
    %1106 = vrot.lane.b32.xlu0 %v1103, 64
    %v1107 = vpop.permute.xlu0 %1106
    %v1109 = vmul.f32 %v1102, %v1107
    %1111 = vrot.lane.b32.xlu0 %v1109, 32
    %v1112 = vpop.permute.xlu0 %1111
    %v1114 = vadd.f32 %v1104, %v1112
    %v1115 = vtanh.pop %v1114
    %1117 = vrot.lane.b32.xlu0 %v1115, 64
    %v1118 = vpop.permute.xlu0 %1117
    %v1120 = vmul.f32 %v1102, %v1118
    %1122 = vrot.lane.b32.xlu0 %v946, 32
    %v1123 = vpop.permute.xlu0 %1122
    %v1124 = vsel %vm64, %v1123, 0
    %1126 = vmatprep.subr.mxu0 0.0
    %1127 = vmatpush1.msra.mxu0 0.0
    %1128 = vmatprep.subr.mxu0 0.0
    %1129 = vmatpush1.msra.mxu0 0.0
    %1130 = vmatprep.subr.mxu0 0.0
    %1131 = vmatpush1.msra.mxu0 0.0
    %1132 = vmatprep.subr.mxu0 0.0
    %1133 = vmatpush1.msra.mxu0 0.0
    %1134 = vmatprep.subr.mxu0 0.0
    %1135 = vmatpush1.msra.mxu0 0.0
    %1136 = vmatprep.subr.mxu0 0.0
    %1137 = vmatpush1.msra.mxu0 0.0
    %1138 = vmatprep.subr.mxu0 0.0
    %1139 = vmatpush1.msra.mxu0 0.0
    %1140 = vmatprep.subr.mxu0 0.0
    %1141 = vmatpush1.msra.mxu0 0.0
    %1142 = vmatprep.subr.mxu0 0.0
    %1143 = vmatpush1.msra.mxu0 0.0
    %1144 = vmatprep.subr.mxu0 0.0
    %1145 = vmatpush1.msra.mxu0 0.0
    %1146 = vmatprep.subr.mxu0 0.0
    %1147 = vmatpush1.msra.mxu0 0.0
    %1148 = vmatprep.subr.mxu0 0.0
    %1149 = vmatpush1.msra.mxu0 0.0
    %1150 = vmatprep.subr.mxu0 0.0
    %1151 = vmatpush1.msra.mxu0 %v53
    %1152 = vmatprep.subr.mxu0 0.0
    %1153 = vmatpush1.msra.mxu0 %v52
    %1154 = vmatprep.subr.mxu0 0.0
    %1155 = vmatpush1.msra.mxu0 %v51
    %1156 = vmatprep.subr.mxu0 0.0
    %1157 = vmatpush1.msra.mxu0 %v50
    %1158 = vmatprep.subr.mxu0 0.0
    %1159 = vmatpush2.msra.mxu0 0.0
    %1160 = vmatprep.subr.mxu0 0.0
    %1161 = vmatpush2.msra.mxu0 0.0
    %1162 = vmatprep.subr.mxu0 0.0
    %1163 = vmatpush2.msra.mxu0 0.0
    %1164 = vmatprep.subr.mxu0 0.0
    %1165 = vmatpush2.msra.mxu0 0.0
    %1166 = vmatprep.subr.mxu0 0.0
    %1167 = vmatpush2.msra.mxu0 0.0
    %1168 = vmatprep.subr.mxu0 0.0
    %1169 = vmatpush2.msra.mxu0 0.0
    %1170 = vmatprep.subr.mxu0 0.0
    %1171 = vmatpush2.msra.mxu0 0.0
    %1172 = vmatprep.subr.mxu0 0.0
    %1173 = vmatpush2.msra.mxu0 0.0
    %1174 = vmatprep.subr.mxu0 0.0
    %1175 = vmatpush2.msra.mxu0 0.0
    %1176 = vmatprep.subr.mxu0 0.0
    %1177 = vmatpush2.msra.mxu0 0.0
    %1178 = vmatprep.subr.mxu0 0.0
    %1179 = vmatpush2.msra.mxu0 0.0
    %1180 = vmatprep.subr.mxu0 0.0
    %1181 = vmatpush2.msra.mxu0 0.0
    %1182 = vmatprep.subr.mxu0 0.0
    %1183 = vmatpush2.msra.mxu0 0.0
    %1184 = vmatprep.subr.mxu0 0.0
    %1185 = vmatpush2.msra.mxu0 0.0
    %1186 = vmatprep.subr.mxu0 0.0
    %1187 = vmatpush2.msra.mxu0 0.0
    %1188 = vmatprep.subr.mxu0 0.0
    %1189 = vmatpush2.msra.mxu0 0.0
    %1190 = vmatprep.mubr.f32.mxu0 0.0
    %1191 = vmatmul.mubr.f32.gmra.mxu0 %v1124
    %v1192 = vpop.f32.mrf.mxu0
    %v1193 = vadd.f32 0.0, %v1192
    %v1194 = vpop.f32.mrf.mxu0
    %1195 = vdwg.mxu0
    %1196 = vrot.lane.b32.xlu0 %v318, 32
    %v1197 = vpop.permute.xlu0 %1196
    %v1198 = vsel %vm64, %v1197, 0
    %1200 = vmatprep.subr.mxu0 0.0
    %1201 = vmatpush1.msra.mxu0 0.0
    %1202 = vmatprep.subr.mxu0 0.0
    %1203 = vmatpush1.msra.mxu0 0.0
    %1204 = vmatprep.subr.mxu0 0.0
    %1205 = vmatpush1.msra.mxu0 0.0
    %1206 = vmatprep.subr.mxu0 0.0
    %1207 = vmatpush1.msra.mxu0 0.0
    %1208 = vmatprep.subr.mxu0 0.0
    %1209 = vmatpush1.msra.mxu0 0.0
    %1210 = vmatprep.subr.mxu0 0.0
    %1211 = vmatpush1.msra.mxu0 0.0
    %1212 = vmatprep.subr.mxu0 0.0
    %1213 = vmatpush1.msra.mxu0 0.0
    %1214 = vmatprep.subr.mxu0 0.0
    %1215 = vmatpush1.msra.mxu0 0.0
    %1216 = vmatprep.subr.mxu0 0.0
    %1217 = vmatpush1.msra.mxu0 0.0
    %1218 = vmatprep.subr.mxu0 0.0
    %1219 = vmatpush1.msra.mxu0 0.0
    %1220 = vmatprep.subr.mxu0 0.0
    %1221 = vmatpush1.msra.mxu0 0.0
    %1222 = vmatprep.subr.mxu0 0.0
    %1223 = vmatpush1.msra.mxu0 0.0
    %1224 = vmatprep.subr.mxu0 0.0
    %1225 = vmatpush1.msra.mxu0 %v49
    %1226 = vmatprep.subr.mxu0 0.0
    %1227 = vmatpush1.msra.mxu0 %v48
    %1228 = vmatprep.subr.mxu0 0.0
    %1229 = vmatpush1.msra.mxu0 %v47
    %1230 = vmatprep.subr.mxu0 0.0
    %1231 = vmatpush1.msra.mxu0 %v46
    %1232 = vmatprep.subr.mxu0 0.0
    %1233 = vmatpush2.msra.mxu0 0.0
    %1234 = vmatprep.subr.mxu0 0.0
    %1235 = vmatpush2.msra.mxu0 0.0
    %1236 = vmatprep.subr.mxu0 0.0
    %1237 = vmatpush2.msra.mxu0 0.0
    %1238 = vmatprep.subr.mxu0 0.0
    %1239 = vmatpush2.msra.mxu0 0.0
    %1240 = vmatprep.subr.mxu0 0.0
    %1241 = vmatpush2.msra.mxu0 0.0
    %1242 = vmatprep.subr.mxu0 0.0
    %1243 = vmatpush2.msra.mxu0 0.0
    %1244 = vmatprep.subr.mxu0 0.0
    %1245 = vmatpush2.msra.mxu0 0.0
    %1246 = vmatprep.subr.mxu0 0.0
    %1247 = vmatpush2.msra.mxu0 0.0
    %1248 = vmatprep.subr.mxu0 0.0
    %1249 = vmatpush2.msra.mxu0 0.0
    %1250 = vmatprep.subr.mxu0 0.0
    %1251 = vmatpush2.msra.mxu0 0.0
    %1252 = vmatprep.subr.mxu0 0.0
    %1253 = vmatpush2.msra.mxu0 0.0
    %1254 = vmatprep.subr.mxu0 0.0
    %1255 = vmatpush2.msra.mxu0 0.0
    %1256 = vmatprep.subr.mxu0 0.0
    %1257 = vmatpush2.msra.mxu0 0.0
    %1258 = vmatprep.subr.mxu0 0.0
    %1259 = vmatpush2.msra.mxu0 0.0
    %1260 = vmatprep.subr.mxu0 0.0
    %1261 = vmatpush2.msra.mxu0 0.0
    %1262 = vmatprep.subr.mxu0 0.0
    %1263 = vmatpush2.msra.mxu0 0.0
    %1264 = vmatprep.mubr.f32.mxu0 0.0
    %1265 = vmatmul.mubr.f32.gmra.mxu0 %v1198
    %v1266 = vpop.f32.mrf.mxu0
    %v1267 = vadd.f32 %v1193, %v1266
    %v1268 = vpop.f32.mrf.mxu0
    %1269 = vdwg.mxu0
    %v1270 = vadd.f32 %v1267, %v215
    %v1271 = vxor.u32 %v1270, 2147483648
    %v1272 = vmul.f32 %v1271, 1.442695
    %v1273 = vpow.pop %v1272
    %v1274 = vadd.f32 %v1273, 1.0
    %v1275 = vrcp.pop %v1274
    %v1276 = vmul.f32 1.0, %v1275
    %v1277 = vtanh.pop %v1270
    %v1278 = vmul.f32 %v1276, %v940
    %1280 = vrot.lane.b32.xlu0 %v1277, 64
    %v1281 = vpop.permute.xlu0 %1280
    %v1283 = vmul.f32 %v1276, %v1281
    %1285 = vrot.lane.b32.xlu0 %v1283, 32
    %v1286 = vpop.permute.xlu0 %1285
    %v1288 = vadd.f32 %v1278, %v1286
    %v1289 = vtanh.pop %v1288
    %1291 = vrot.lane.b32.xlu0 %v1289, 64
    %v1292 = vpop.permute.xlu0 %1291
    %v1294 = vmul.f32 %v1276, %v1292
    %1296 = vrot.lane.b32.xlu0 %v1120, 32
    %v1297 = vpop.permute.xlu0 %1296
    %v1298 = vsel %vm64, %v1297, 0
    %1300 = vmatprep.subr.mxu0 0.0
    %1301 = vmatpush1.msra.mxu0 0.0
    %1302 = vmatprep.subr.mxu0 0.0
    %1303 = vmatpush1.msra.mxu0 0.0
    %1304 = vmatprep.subr.mxu0 0.0
    %1305 = vmatpush1.msra.mxu0 0.0
    %1306 = vmatprep.subr.mxu0 0.0
    %1307 = vmatpush1.msra.mxu0 0.0
    %1308 = vmatprep.subr.mxu0 0.0
    %1309 = vmatpush1.msra.mxu0 0.0
    %1310 = vmatprep.subr.mxu0 0.0
    %1311 = vmatpush1.msra.mxu0 0.0
    %1312 = vmatprep.subr.mxu0 0.0
    %1313 = vmatpush1.msra.mxu0 0.0
    %1314 = vmatprep.subr.mxu0 0.0
    %1315 = vmatpush1.msra.mxu0 0.0
    %1316 = vmatprep.subr.mxu0 0.0
    %1317 = vmatpush1.msra.mxu0 0.0
    %1318 = vmatprep.subr.mxu0 0.0
    %1319 = vmatpush1.msra.mxu0 0.0
    %1320 = vmatprep.subr.mxu0 0.0
    %1321 = vmatpush1.msra.mxu0 0.0
    %1322 = vmatprep.subr.mxu0 0.0
    %1323 = vmatpush1.msra.mxu0 0.0
    %1324 = vmatprep.subr.mxu0 0.0
    %1325 = vmatpush1.msra.mxu0 %v62
    %1326 = vmatprep.subr.mxu0 0.0
    %1327 = vmatpush1.msra.mxu0 %v61
    %1328 = vmatprep.subr.mxu0 0.0
    %1329 = vmatpush1.msra.mxu0 %v60
    %1330 = vmatprep.subr.mxu0 0.0
    %1331 = vmatpush1.msra.mxu0 %v59
    %1332 = vmatprep.subr.mxu0 0.0
    %1333 = vmatpush2.msra.mxu0 0.0
    %1334 = vmatprep.subr.mxu0 0.0
    %1335 = vmatpush2.msra.mxu0 0.0
    %1336 = vmatprep.subr.mxu0 0.0
    %1337 = vmatpush2.msra.mxu0 0.0
    %1338 = vmatprep.subr.mxu0 0.0
    %1339 = vmatpush2.msra.mxu0 0.0
    %1340 = vmatprep.subr.mxu0 0.0
    %1341 = vmatpush2.msra.mxu0 0.0
    %1342 = vmatprep.subr.mxu0 0.0
    %1343 = vmatpush2.msra.mxu0 0.0
    %1344 = vmatprep.subr.mxu0 0.0
    %1345 = vmatpush2.msra.mxu0 0.0
    %1346 = vmatprep.subr.mxu0 0.0
    %1347 = vmatpush2.msra.mxu0 0.0
    %1348 = vmatprep.subr.mxu0 0.0
    %1349 = vmatpush2.msra.mxu0 0.0
    %1350 = vmatprep.subr.mxu0 0.0
    %1351 = vmatpush2.msra.mxu0 0.0
    %1352 = vmatprep.subr.mxu0 0.0
    %1353 = vmatpush2.msra.mxu0 0.0
    %1354 = vmatprep.subr.mxu0 0.0
    %1355 = vmatpush2.msra.mxu0 0.0
    %1356 = vmatprep.subr.mxu0 0.0
    %1357 = vmatpush2.msra.mxu0 0.0
    %1358 = vmatprep.subr.mxu0 0.0
    %1359 = vmatpush2.msra.mxu0 0.0
    %1360 = vmatprep.subr.mxu0 0.0
    %1361 = vmatpush2.msra.mxu0 0.0
    %1362 = vmatprep.subr.mxu0 0.0
    %1363 = vmatpush2.msra.mxu0 0.0
    %1364 = vmatprep.mubr.f32.mxu0 0.0
    %1365 = vmatmul.mubr.f32.gmra.mxu0 %v1298
    %v1366 = vpop.f32.mrf.mxu0
    %v1367 = vadd.f32 0.0, %v1366
    %v1368 = vpop.f32.mrf.mxu0
    %1369 = vdwg.mxu0
    %v1370 = vsel %vm64, %v319, 0
    %1372 = vmatprep.subr.mxu0 0.0
    %1373 = vmatpush1.msra.mxu0 0.0
    %1374 = vmatprep.subr.mxu0 0.0
    %1375 = vmatpush1.msra.mxu0 0.0
    %1376 = vmatprep.subr.mxu0 0.0
    %1377 = vmatpush1.msra.mxu0 0.0
    %1378 = vmatprep.subr.mxu0 0.0
    %1379 = vmatpush1.msra.mxu0 0.0
    %1380 = vmatprep.subr.mxu0 0.0
    %1381 = vmatpush1.msra.mxu0 0.0
    %1382 = vmatprep.subr.mxu0 0.0
    %1383 = vmatpush1.msra.mxu0 0.0
    %1384 = vmatprep.subr.mxu0 0.0
    %1385 = vmatpush1.msra.mxu0 0.0
    %1386 = vmatprep.subr.mxu0 0.0
    %1387 = vmatpush1.msra.mxu0 0.0
    %1388 = vmatprep.subr.mxu0 0.0
    %1389 = vmatpush1.msra.mxu0 0.0
    %1390 = vmatprep.subr.mxu0 0.0
    %1391 = vmatpush1.msra.mxu0 0.0
    %1392 = vmatprep.subr.mxu0 0.0
    %1393 = vmatpush1.msra.mxu0 0.0
    %1394 = vmatprep.subr.mxu0 0.0
    %1395 = vmatpush1.msra.mxu0 0.0
    %1396 = vmatprep.subr.mxu0 0.0
    %1397 = vmatpush1.msra.mxu0 %v58
    %1398 = vmatprep.subr.mxu0 0.0
    %1399 = vmatpush1.msra.mxu0 %v57
    %1400 = vmatprep.subr.mxu0 0.0
    %1401 = vmatpush1.msra.mxu0 %v56
    %1402 = vmatprep.subr.mxu0 0.0
    %1403 = vmatpush1.msra.mxu0 %v55
    %1404 = vmatprep.subr.mxu0 0.0
    %1405 = vmatpush2.msra.mxu0 0.0
    %1406 = vmatprep.subr.mxu0 0.0
    %1407 = vmatpush2.msra.mxu0 0.0
    %1408 = vmatprep.subr.mxu0 0.0
    %1409 = vmatpush2.msra.mxu0 0.0
    %1410 = vmatprep.subr.mxu0 0.0
    %1411 = vmatpush2.msra.mxu0 0.0
    %1412 = vmatprep.subr.mxu0 0.0
    %1413 = vmatpush2.msra.mxu0 0.0
    %1414 = vmatprep.subr.mxu0 0.0
    %1415 = vmatpush2.msra.mxu0 0.0
    %1416 = vmatprep.subr.mxu0 0.0
    %1417 = vmatpush2.msra.mxu0 0.0
    %1418 = vmatprep.subr.mxu0 0.0
    %1419 = vmatpush2.msra.mxu0 0.0
    %1420 = vmatprep.subr.mxu0 0.0
    %1421 = vmatpush2.msra.mxu0 0.0
    %1422 = vmatprep.subr.mxu0 0.0
    %1423 = vmatpush2.msra.mxu0 0.0
    %1424 = vmatprep.subr.mxu0 0.0
    %1425 = vmatpush2.msra.mxu0 0.0
    %1426 = vmatprep.subr.mxu0 0.0
    %1427 = vmatpush2.msra.mxu0 0.0
    %1428 = vmatprep.subr.mxu0 0.0
    %1429 = vmatpush2.msra.mxu0 0.0
    %1430 = vmatprep.subr.mxu0 0.0
    %1431 = vmatpush2.msra.mxu0 0.0
    %1432 = vmatprep.subr.mxu0 0.0
    %1433 = vmatpush2.msra.mxu0 0.0
    %1434 = vmatprep.subr.mxu0 0.0
    %1435 = vmatpush2.msra.mxu0 0.0
    %1436 = vmatprep.mubr.f32.mxu0 0.0
    %1437 = vmatmul.mubr.f32.gmra.mxu0 %v1370
    %v1438 = vpop.f32.mrf.mxu0
    %v1439 = vadd.f32 %v1367, %v1438
    %v1440 = vpop.f32.mrf.mxu0
    %1441 = vdwg.mxu0
    %v1442 = vadd.f32 %v1439, %v398
    %v1443 = vxor.u32 %v1442, 2147483648
    %v1444 = vmul.f32 %v1443, 1.442695
    %v1445 = vpow.pop %v1444
    %v1446 = vadd.f32 %v1445, 1.0
    %v1447 = vrcp.pop %v1446
    %v1448 = vmul.f32 1.0, %v1447
    %v1449 = vtanh.pop %v1442
    %v1450 = vmul.f32 %v1448, %v1114
    %1452 = vrot.lane.b32.xlu0 %v1449, 64
    %v1453 = vpop.permute.xlu0 %1452
    %v1455 = vmul.f32 %v1448, %v1453
    %1457 = vrot.lane.b32.xlu0 %v1455, 32
    %v1458 = vpop.permute.xlu0 %1457
    %v1460 = vadd.f32 %v1450, %v1458
    %v1461 = vtanh.pop %v1460
    %1463 = vrot.lane.b32.xlu0 %v1461, 64
    %v1464 = vpop.permute.xlu0 %1463
    %v1466 = vmul.f32 %v1448, %v1464
    %1468 = vrot.lane.b32.xlu0 %v1294, 32
    %v1469 = vpop.permute.xlu0 %1468
    %v1470 = vsel %vm64, %v1469, 0
    %1472 = vmatprep.subr.mxu0 0.0
    %1473 = vmatpush1.msra.mxu0 0.0
    %1474 = vmatprep.subr.mxu0 0.0
    %1475 = vmatpush1.msra.mxu0 0.0
    %1476 = vmatprep.subr.mxu0 0.0
    %1477 = vmatpush1.msra.mxu0 0.0
    %1478 = vmatprep.subr.mxu0 0.0
    %1479 = vmatpush1.msra.mxu0 0.0
    %1480 = vmatprep.subr.mxu0 0.0
    %1481 = vmatpush1.msra.mxu0 0.0
    %1482 = vmatprep.subr.mxu0 0.0
    %1483 = vmatpush1.msra.mxu0 0.0
    %1484 = vmatprep.subr.mxu0 0.0
    %1485 = vmatpush1.msra.mxu0 0.0
    %1486 = vmatprep.subr.mxu0 0.0
    %1487 = vmatpush1.msra.mxu0 0.0
    %1488 = vmatprep.subr.mxu0 0.0
    %1489 = vmatpush1.msra.mxu0 0.0
    %1490 = vmatprep.subr.mxu0 0.0
    %1491 = vmatpush1.msra.mxu0 0.0
    %1492 = vmatprep.subr.mxu0 0.0
    %1493 = vmatpush1.msra.mxu0 0.0
    %1494 = vmatprep.subr.mxu0 0.0
    %1495 = vmatpush1.msra.mxu0 0.0
    %1496 = vmatprep.subr.mxu0 0.0
    %1497 = vmatpush1.msra.mxu0 %v53
    %1498 = vmatprep.subr.mxu0 0.0
    %1499 = vmatpush1.msra.mxu0 %v52
    %1500 = vmatprep.subr.mxu0 0.0
    %1501 = vmatpush1.msra.mxu0 %v51
    %1502 = vmatprep.subr.mxu0 0.0
    %1503 = vmatpush1.msra.mxu0 %v50
    %1504 = vmatprep.subr.mxu0 0.0
    %1505 = vmatpush2.msra.mxu0 0.0
    %1506 = vmatprep.subr.mxu0 0.0
    %1507 = vmatpush2.msra.mxu0 0.0
    %1508 = vmatprep.subr.mxu0 0.0
    %1509 = vmatpush2.msra.mxu0 0.0
    %1510 = vmatprep.subr.mxu0 0.0
    %1511 = vmatpush2.msra.mxu0 0.0
    %1512 = vmatprep.subr.mxu0 0.0
    %1513 = vmatpush2.msra.mxu0 0.0
    %1514 = vmatprep.subr.mxu0 0.0
    %1515 = vmatpush2.msra.mxu0 0.0
    %1516 = vmatprep.subr.mxu0 0.0
    %1517 = vmatpush2.msra.mxu0 0.0
    %1518 = vmatprep.subr.mxu0 0.0
    %1519 = vmatpush2.msra.mxu0 0.0
    %1520 = vmatprep.subr.mxu0 0.0
    %1521 = vmatpush2.msra.mxu0 0.0
    %1522 = vmatprep.subr.mxu0 0.0
    %1523 = vmatpush2.msra.mxu0 0.0
    %1524 = vmatprep.subr.mxu0 0.0
    %1525 = vmatpush2.msra.mxu0 0.0
    %1526 = vmatprep.subr.mxu0 0.0
    %1527 = vmatpush2.msra.mxu0 0.0
    %1528 = vmatprep.subr.mxu0 0.0
    %1529 = vmatpush2.msra.mxu0 0.0
    %1530 = vmatprep.subr.mxu0 0.0
    %1531 = vmatpush2.msra.mxu0 0.0
    %1532 = vmatprep.subr.mxu0 0.0
    %1533 = vmatpush2.msra.mxu0 0.0
    %1534 = vmatprep.subr.mxu0 0.0
    %1535 = vmatpush2.msra.mxu0 0.0
    %1536 = vmatprep.mubr.f32.mxu0 0.0
    %1537 = vmatmul.mubr.f32.gmra.mxu0 %v1470
    %v1538 = vpop.f32.mrf.mxu0
    %v1539 = vadd.f32 0.0, %v1538
    %v1540 = vpop.f32.mrf.mxu0
    %1541 = vdwg.mxu0
    %1542 = vmatprep.subr.mxu0 0.0
    %1543 = vmatpush1.msra.mxu0 0.0
    %1544 = vmatprep.subr.mxu0 0.0
    %1545 = vmatpush1.msra.mxu0 0.0
    %1546 = vmatprep.subr.mxu0 0.0
    %1547 = vmatpush1.msra.mxu0 0.0
    %1548 = vmatprep.subr.mxu0 0.0
    %1549 = vmatpush1.msra.mxu0 0.0
    %1550 = vmatprep.subr.mxu0 0.0
    %1551 = vmatpush1.msra.mxu0 0.0
    %1552 = vmatprep.subr.mxu0 0.0
    %1553 = vmatpush1.msra.mxu0 0.0
    %1554 = vmatprep.subr.mxu0 0.0
    %1555 = vmatpush1.msra.mxu0 0.0
    %1556 = vmatprep.subr.mxu0 0.0
    %1557 = vmatpush1.msra.mxu0 0.0
    %1558 = vmatprep.subr.mxu0 0.0
    %1559 = vmatpush1.msra.mxu0 0.0
    %1560 = vmatprep.subr.mxu0 0.0
    %1561 = vmatpush1.msra.mxu0 0.0
    %1562 = vmatprep.subr.mxu0 0.0
    %1563 = vmatpush1.msra.mxu0 0.0
    %1564 = vmatprep.subr.mxu0 0.0
    %1565 = vmatpush1.msra.mxu0 0.0
    %1566 = vmatprep.subr.mxu0 0.0
    %1567 = vmatpush1.msra.mxu0 %v49
    %1568 = vmatprep.subr.mxu0 0.0
    %1569 = vmatpush1.msra.mxu0 %v48
    %1570 = vmatprep.subr.mxu0 0.0
    %1571 = vmatpush1.msra.mxu0 %v47
    %1572 = vmatprep.subr.mxu0 0.0
    %1573 = vmatpush1.msra.mxu0 %v46
    %1574 = vmatprep.subr.mxu0 0.0
    %1575 = vmatpush2.msra.mxu0 0.0
    %1576 = vmatprep.subr.mxu0 0.0
    %1577 = vmatpush2.msra.mxu0 0.0
    %1578 = vmatprep.subr.mxu0 0.0
    %1579 = vmatpush2.msra.mxu0 0.0
    %1580 = vmatprep.subr.mxu0 0.0
    %1581 = vmatpush2.msra.mxu0 0.0
    %1582 = vmatprep.subr.mxu0 0.0
    %1583 = vmatpush2.msra.mxu0 0.0
    %1584 = vmatprep.subr.mxu0 0.0
    %1585 = vmatpush2.msra.mxu0 0.0
    %1586 = vmatprep.subr.mxu0 0.0
    %1587 = vmatpush2.msra.mxu0 0.0
    %1588 = vmatprep.subr.mxu0 0.0
    %1589 = vmatpush2.msra.mxu0 0.0
    %1590 = vmatprep.subr.mxu0 0.0
    %1591 = vmatpush2.msra.mxu0 0.0
    %1592 = vmatprep.subr.mxu0 0.0
    %1593 = vmatpush2.msra.mxu0 0.0
    %1594 = vmatprep.subr.mxu0 0.0
    %1595 = vmatpush2.msra.mxu0 0.0
    %1596 = vmatprep.subr.mxu0 0.0
    %1597 = vmatpush2.msra.mxu0 0.0
    %1598 = vmatprep.subr.mxu0 0.0
    %1599 = vmatpush2.msra.mxu0 0.0
    %1600 = vmatprep.subr.mxu0 0.0
    %1601 = vmatpush2.msra.mxu0 0.0
    %1602 = vmatprep.subr.mxu0 0.0
    %1603 = vmatpush2.msra.mxu0 0.0
    %1604 = vmatprep.subr.mxu0 0.0
    %1605 = vmatpush2.msra.mxu0 0.0
    %1606 = vmatprep.mubr.f32.mxu0 0.0
    %1607 = vmatmul.mubr.f32.gmra.mxu0 %v1370
    %v1608 = vpop.f32.mrf.mxu0
    %v1609 = vadd.f32 %v1539, %v1608
    %v1610 = vpop.f32.mrf.mxu0
    %1611 = vdwg.mxu0
    %v1612 = vadd.f32 %v1609, %v215
    %v1613 = vxor.u32 %v1612, 2147483648
    %v1614 = vmul.f32 %v1613, 1.442695
    %v1615 = vpow.pop %v1614
    %v1616 = vadd.f32 %v1615, 1.0
    %v1617 = vrcp.pop %v1616
    %v1618 = vmul.f32 1.0, %v1617
    %v1619 = vtanh.pop %v1612
    %v1620 = vmul.f32 %v1618, %v1288
    %1622 = vrot.lane.b32.xlu0 %v1619, 64
    %v1623 = vpop.permute.xlu0 %1622
    %v1625 = vmul.f32 %v1618, %v1623
    %1627 = vrot.lane.b32.xlu0 %v1625, 32
    %v1628 = vpop.permute.xlu0 %1627
    %v1630 = vadd.f32 %v1620, %v1628
    %v1631 = vtanh.pop %v1630
    %1633 = vrot.lane.b32.xlu0 %v1631, 64
    %v1634 = vpop.permute.xlu0 %1633
    %v1636 = vmul.f32 %v1618, %v1634
    %1638 = vrot.lane.b32.xlu0 %v1466, 32
    %v1639 = vpop.permute.xlu0 %1638
    %v1640 = vsel %vm64, %v1639, 0
    %1642 = vmatprep.subr.mxu0 0.0
    %1643 = vmatpush1.msra.mxu0 0.0
    %1644 = vmatprep.subr.mxu0 0.0
    %1645 = vmatpush1.msra.mxu0 0.0
    %1646 = vmatprep.subr.mxu0 0.0
    %1647 = vmatpush1.msra.mxu0 0.0
    %1648 = vmatprep.subr.mxu0 0.0
    %1649 = vmatpush1.msra.mxu0 0.0
    %1650 = vmatprep.subr.mxu0 0.0
    %1651 = vmatpush1.msra.mxu0 0.0
    %1652 = vmatprep.subr.mxu0 0.0
    %1653 = vmatpush1.msra.mxu0 0.0
    %1654 = vmatprep.subr.mxu0 0.0
    %1655 = vmatpush1.msra.mxu0 0.0
    %1656 = vmatprep.subr.mxu0 0.0
    %1657 = vmatpush1.msra.mxu0 0.0
    %1658 = vmatprep.subr.mxu0 0.0
    %1659 = vmatpush1.msra.mxu0 0.0
    %1660 = vmatprep.subr.mxu0 0.0
    %1661 = vmatpush1.msra.mxu0 0.0
    %1662 = vmatprep.subr.mxu0 0.0
    %1663 = vmatpush1.msra.mxu0 0.0
    %1664 = vmatprep.subr.mxu0 0.0
    %1665 = vmatpush1.msra.mxu0 0.0
    %1666 = vmatprep.subr.mxu0 0.0
    %1667 = vmatpush1.msra.mxu0 %v62
    %1668 = vmatprep.subr.mxu0 0.0
    %1669 = vmatpush1.msra.mxu0 %v61
    %1670 = vmatprep.subr.mxu0 0.0
    %1671 = vmatpush1.msra.mxu0 %v60
    %1672 = vmatprep.subr.mxu0 0.0
    %1673 = vmatpush1.msra.mxu0 %v59
    %1674 = vmatprep.subr.mxu0 0.0
    %1675 = vmatpush2.msra.mxu0 0.0
    %1676 = vmatprep.subr.mxu0 0.0
    %1677 = vmatpush2.msra.mxu0 0.0
    %1678 = vmatprep.subr.mxu0 0.0
    %1679 = vmatpush2.msra.mxu0 0.0
    %1680 = vmatprep.subr.mxu0 0.0
    %1681 = vmatpush2.msra.mxu0 0.0
    %1682 = vmatprep.subr.mxu0 0.0
    %1683 = vmatpush2.msra.mxu0 0.0
    %1684 = vmatprep.subr.mxu0 0.0
    %1685 = vmatpush2.msra.mxu0 0.0
    %1686 = vmatprep.subr.mxu0 0.0
    %1687 = vmatpush2.msra.mxu0 0.0
    %1688 = vmatprep.subr.mxu0 0.0
    %1689 = vmatpush2.msra.mxu0 0.0
    %1690 = vmatprep.subr.mxu0 0.0
    %1691 = vmatpush2.msra.mxu0 0.0
    %1692 = vmatprep.subr.mxu0 0.0
    %1693 = vmatpush2.msra.mxu0 0.0
    %1694 = vmatprep.subr.mxu0 0.0
    %1695 = vmatpush2.msra.mxu0 0.0
    %1696 = vmatprep.subr.mxu0 0.0
    %1697 = vmatpush2.msra.mxu0 0.0
    %1698 = vmatprep.subr.mxu0 0.0
    %1699 = vmatpush2.msra.mxu0 0.0
    %1700 = vmatprep.subr.mxu0 0.0
    %1701 = vmatpush2.msra.mxu0 0.0
    %1702 = vmatprep.subr.mxu0 0.0
    %1703 = vmatpush2.msra.mxu0 0.0
    %1704 = vmatprep.subr.mxu0 0.0
    %1705 = vmatpush2.msra.mxu0 0.0
    %1706 = vmatprep.mubr.f32.mxu0 0.0
    %1707 = vmatmul.mubr.f32.gmra.mxu0 %v1640
    %v1708 = vpop.f32.mrf.mxu0
    %v1709 = vadd.f32 0.0, %v1708
    %v1710 = vpop.f32.mrf.mxu0
    %1711 = vdwg.mxu0
    %1712 = vmatprep.subr.mxu0 0.0
    %1713 = vmatpush1.msra.mxu0 0.0
    %1714 = vmatprep.subr.mxu0 0.0
    %1715 = vmatpush1.msra.mxu0 0.0
    %1716 = vmatprep.subr.mxu0 0.0
    %1717 = vmatpush1.msra.mxu0 0.0
    %1718 = vmatprep.subr.mxu0 0.0
    %1719 = vmatpush1.msra.mxu0 0.0
    %1720 = vmatprep.subr.mxu0 0.0
    %1721 = vmatpush1.msra.mxu0 0.0
    %1722 = vmatprep.subr.mxu0 0.0
    %1723 = vmatpush1.msra.mxu0 0.0
    %1724 = vmatprep.subr.mxu0 0.0
    %1725 = vmatpush1.msra.mxu0 0.0
    %1726 = vmatprep.subr.mxu0 0.0
    %1727 = vmatpush1.msra.mxu0 0.0
    %1728 = vmatprep.subr.mxu0 0.0
    %1729 = vmatpush1.msra.mxu0 0.0
    %1730 = vmatprep.subr.mxu0 0.0
    %1731 = vmatpush1.msra.mxu0 0.0
    %1732 = vmatprep.subr.mxu0 0.0
    %1733 = vmatpush1.msra.mxu0 0.0
    %1734 = vmatprep.subr.mxu0 0.0
    %1735 = vmatpush1.msra.mxu0 0.0
    %1736 = vmatprep.subr.mxu0 0.0
    %1737 = vmatpush1.msra.mxu0 %v58
    %1738 = vmatprep.subr.mxu0 0.0
    %1739 = vmatpush1.msra.mxu0 %v57
    %1740 = vmatprep.subr.mxu0 0.0
    %1741 = vmatpush1.msra.mxu0 %v56
    %1742 = vmatprep.subr.mxu0 0.0
    %1743 = vmatpush1.msra.mxu0 %v55
    %1744 = vmatprep.subr.mxu0 0.0
    %1745 = vmatpush2.msra.mxu0 0.0
    %1746 = vmatprep.subr.mxu0 0.0
    %1747 = vmatpush2.msra.mxu0 0.0
    %1748 = vmatprep.subr.mxu0 0.0
    %1749 = vmatpush2.msra.mxu0 0.0
    %1750 = vmatprep.subr.mxu0 0.0
    %1751 = vmatpush2.msra.mxu0 0.0
    %1752 = vmatprep.subr.mxu0 0.0
    %1753 = vmatpush2.msra.mxu0 0.0
    %1754 = vmatprep.subr.mxu0 0.0
    %1755 = vmatpush2.msra.mxu0 0.0
    %1756 = vmatprep.subr.mxu0 0.0
    %1757 = vmatpush2.msra.mxu0 0.0
    %1758 = vmatprep.subr.mxu0 0.0
    %1759 = vmatpush2.msra.mxu0 0.0
    %1760 = vmatprep.subr.mxu0 0.0
    %1761 = vmatpush2.msra.mxu0 0.0
    %1762 = vmatprep.subr.mxu0 0.0
    %1763 = vmatpush2.msra.mxu0 0.0
    %1764 = vmatprep.subr.mxu0 0.0
    %1765 = vmatpush2.msra.mxu0 0.0
    %1766 = vmatprep.subr.mxu0 0.0
    %1767 = vmatpush2.msra.mxu0 0.0
    %1768 = vmatprep.subr.mxu0 0.0
    %1769 = vmatpush2.msra.mxu0 0.0
    %1770 = vmatprep.subr.mxu0 0.0
    %1771 = vmatpush2.msra.mxu0 0.0
    %1772 = vmatprep.subr.mxu0 0.0
    %1773 = vmatpush2.msra.mxu0 0.0
    %1774 = vmatprep.subr.mxu0 0.0
    %1775 = vmatpush2.msra.mxu0 0.0
    %1776 = vmatprep.mubr.f32.mxu0 0.0
    %1777 = vmatmul.mubr.f32.gmra.mxu0 %v1198
    %v1778 = vpop.f32.mrf.mxu0
    %v1779 = vadd.f32 %v1709, %v1778
    %v1780 = vpop.f32.mrf.mxu0
    %1781 = vdwg.mxu0
    %v1782 = vadd.f32 %v1779, %v398
    %v1783 = vxor.u32 %v1782, 2147483648
    %v1784 = vmul.f32 %v1783, 1.442695
    %v1785 = vpow.pop %v1784
    %v1786 = vadd.f32 %v1785, 1.0
    %v1787 = vrcp.pop %v1786
    %v1788 = vmul.f32 1.0, %v1787
    %v1789 = vtanh.pop %v1782
    %v1790 = vmul.f32 %v1788, %v1460
    %1792 = vrot.lane.b32.xlu0 %v1789, 64
    %v1793 = vpop.permute.xlu0 %1792
    %v1795 = vmul.f32 %v1788, %v1793
    %1797 = vrot.lane.b32.xlu0 %v1795, 32
    %v1798 = vpop.permute.xlu0 %1797
    %v1800 = vadd.f32 %v1790, %v1798
    %v1801 = vtanh.pop %v1800
    %1803 = vrot.lane.b32.xlu0 %v1801, 64
    %v1804 = vpop.permute.xlu0 %1803
    %v1806 = vmul.f32 %v1788, %v1804
    %1808 = vrot.lane.b32.xlu0 %v1636, 32
    %v1809 = vpop.permute.xlu0 %1808
    %v1810 = vsel %vm64, %v1809, 0
    %1812 = vmatprep.subr.mxu0 0.0
    %1813 = vmatpush1.msra.mxu0 0.0
    %1814 = vmatprep.subr.mxu0 0.0
    %1815 = vmatpush1.msra.mxu0 0.0
    %1816 = vmatprep.subr.mxu0 0.0
    %1817 = vmatpush1.msra.mxu0 0.0
    %1818 = vmatprep.subr.mxu0 0.0
    %1819 = vmatpush1.msra.mxu0 0.0
    %1820 = vmatprep.subr.mxu0 0.0
    %1821 = vmatpush1.msra.mxu0 0.0
    %1822 = vmatprep.subr.mxu0 0.0
    %1823 = vmatpush1.msra.mxu0 0.0
    %1824 = vmatprep.subr.mxu0 0.0
    %1825 = vmatpush1.msra.mxu0 0.0
    %1826 = vmatprep.subr.mxu0 0.0
    %1827 = vmatpush1.msra.mxu0 0.0
    %1828 = vmatprep.subr.mxu0 0.0
    %1829 = vmatpush1.msra.mxu0 0.0
    %1830 = vmatprep.subr.mxu0 0.0
    %1831 = vmatpush1.msra.mxu0 0.0
    %1832 = vmatprep.subr.mxu0 0.0
    %1833 = vmatpush1.msra.mxu0 0.0
    %1834 = vmatprep.subr.mxu0 0.0
    %1835 = vmatpush1.msra.mxu0 0.0
    %1836 = vmatprep.subr.mxu0 0.0
    %1837 = vmatpush1.msra.mxu0 %v53
    %1838 = vmatprep.subr.mxu0 0.0
    %1839 = vmatpush1.msra.mxu0 %v52
    %1840 = vmatprep.subr.mxu0 0.0
    %1841 = vmatpush1.msra.mxu0 %v51
    %1842 = vmatprep.subr.mxu0 0.0
    %1843 = vmatpush1.msra.mxu0 %v50
    %1844 = vmatprep.subr.mxu0 0.0
    %1845 = vmatpush2.msra.mxu0 0.0
    %1846 = vmatprep.subr.mxu0 0.0
    %1847 = vmatpush2.msra.mxu0 0.0
    %1848 = vmatprep.subr.mxu0 0.0
    %1849 = vmatpush2.msra.mxu0 0.0
    %1850 = vmatprep.subr.mxu0 0.0
    %1851 = vmatpush2.msra.mxu0 0.0
    %1852 = vmatprep.subr.mxu0 0.0
    %1853 = vmatpush2.msra.mxu0 0.0
    %1854 = vmatprep.subr.mxu0 0.0
    %1855 = vmatpush2.msra.mxu0 0.0
    %1856 = vmatprep.subr.mxu0 0.0
    %1857 = vmatpush2.msra.mxu0 0.0
    %1858 = vmatprep.subr.mxu0 0.0
    %1859 = vmatpush2.msra.mxu0 0.0
    %1860 = vmatprep.subr.mxu0 0.0
    %1861 = vmatpush2.msra.mxu0 0.0
    %1862 = vmatprep.subr.mxu0 0.0
    %1863 = vmatpush2.msra.mxu0 0.0
    %1864 = vmatprep.subr.mxu0 0.0
    %1865 = vmatpush2.msra.mxu0 0.0
    %1866 = vmatprep.subr.mxu0 0.0
    %1867 = vmatpush2.msra.mxu0 0.0
    %1868 = vmatprep.subr.mxu0 0.0
    %1869 = vmatpush2.msra.mxu0 0.0
    %1870 = vmatprep.subr.mxu0 0.0
    %1871 = vmatpush2.msra.mxu0 0.0
    %1872 = vmatprep.subr.mxu0 0.0
    %1873 = vmatpush2.msra.mxu0 0.0
    %1874 = vmatprep.subr.mxu0 0.0
    %1875 = vmatpush2.msra.mxu0 0.0
    %1876 = vmatprep.mubr.f32.mxu0 0.0
    %1877 = vmatmul.mubr.f32.gmra.mxu0 %v1810
    %v1878 = vpop.f32.mrf.mxu0
    %v1879 = vadd.f32 0.0, %v1878
    %v1880 = vpop.f32.mrf.mxu0
    %1881 = vdwg.mxu0
    %1882 = vmatprep.subr.mxu0 0.0
    %1883 = vmatpush1.msra.mxu0 0.0
    %1884 = vmatprep.subr.mxu0 0.0
    %1885 = vmatpush1.msra.mxu0 0.0
    %1886 = vmatprep.subr.mxu0 0.0
    %1887 = vmatpush1.msra.mxu0 0.0
    %1888 = vmatprep.subr.mxu0 0.0
    %1889 = vmatpush1.msra.mxu0 0.0
    %1890 = vmatprep.subr.mxu0 0.0
    %1891 = vmatpush1.msra.mxu0 0.0
    %1892 = vmatprep.subr.mxu0 0.0
    %1893 = vmatpush1.msra.mxu0 0.0
    %1894 = vmatprep.subr.mxu0 0.0
    %1895 = vmatpush1.msra.mxu0 0.0
    %1896 = vmatprep.subr.mxu0 0.0
    %1897 = vmatpush1.msra.mxu0 0.0
    %1898 = vmatprep.subr.mxu0 0.0
    %1899 = vmatpush1.msra.mxu0 0.0
    %1900 = vmatprep.subr.mxu0 0.0
    %1901 = vmatpush1.msra.mxu0 0.0
    %1902 = vmatprep.subr.mxu0 0.0
    %1903 = vmatpush1.msra.mxu0 0.0
    %1904 = vmatprep.subr.mxu0 0.0
    %1905 = vmatpush1.msra.mxu0 0.0
    %1906 = vmatprep.subr.mxu0 0.0
    %1907 = vmatpush1.msra.mxu0 %v49
    %1908 = vmatprep.subr.mxu0 0.0
    %1909 = vmatpush1.msra.mxu0 %v48
    %1910 = vmatprep.subr.mxu0 0.0
    %1911 = vmatpush1.msra.mxu0 %v47
    %1912 = vmatprep.subr.mxu0 0.0
    %1913 = vmatpush1.msra.mxu0 %v46
    %1914 = vmatprep.subr.mxu0 0.0
    %1915 = vmatpush2.msra.mxu0 0.0
    %1916 = vmatprep.subr.mxu0 0.0
    %1917 = vmatpush2.msra.mxu0 0.0
    %1918 = vmatprep.subr.mxu0 0.0
    %1919 = vmatpush2.msra.mxu0 0.0
    %1920 = vmatprep.subr.mxu0 0.0
    %1921 = vmatpush2.msra.mxu0 0.0
    %1922 = vmatprep.subr.mxu0 0.0
    %1923 = vmatpush2.msra.mxu0 0.0
    %1924 = vmatprep.subr.mxu0 0.0
    %1925 = vmatpush2.msra.mxu0 0.0
    %1926 = vmatprep.subr.mxu0 0.0
    %1927 = vmatpush2.msra.mxu0 0.0
    %1928 = vmatprep.subr.mxu0 0.0
    %1929 = vmatpush2.msra.mxu0 0.0
    %1930 = vmatprep.subr.mxu0 0.0
    %1931 = vmatpush2.msra.mxu0 0.0
    %1932 = vmatprep.subr.mxu0 0.0
    %1933 = vmatpush2.msra.mxu0 0.0
    %1934 = vmatprep.subr.mxu0 0.0
    %1935 = vmatpush2.msra.mxu0 0.0
    %1936 = vmatprep.subr.mxu0 0.0
    %1937 = vmatpush2.msra.mxu0 0.0
    %1938 = vmatprep.subr.mxu0 0.0
    %1939 = vmatpush2.msra.mxu0 0.0
    %1940 = vmatprep.subr.mxu0 0.0
    %1941 = vmatpush2.msra.mxu0 0.0
    %1942 = vmatprep.subr.mxu0 0.0
    %1943 = vmatpush2.msra.mxu0 0.0
    %1944 = vmatprep.subr.mxu0 0.0
    %1945 = vmatpush2.msra.mxu0 0.0
    %1946 = vmatprep.mubr.f32.mxu0 0.0
    %1947 = vmatmul.mubr.f32.gmra.mxu0 %v1024
    %v1948 = vpop.f32.mrf.mxu0
    %v1949 = vadd.f32 %v1879, %v1948
    %v1950 = vpop.f32.mrf.mxu0
    %1951 = vdwg.mxu0
    %v1952 = vadd.f32 %v1949, %v215
    %v1953 = vxor.u32 %v1952, 2147483648
    %v1954 = vmul.f32 %v1953, 1.442695
    %v1955 = vpow.pop %v1954
    %v1956 = vadd.f32 %v1955, 1.0
    %v1957 = vrcp.pop %v1956
    %v1958 = vmul.f32 1.0, %v1957
    %v1959 = vtanh.pop %v1952
    %v1960 = vmul.f32 %v1958, %v1630
    %1962 = vrot.lane.b32.xlu0 %v1959, 64
    %v1963 = vpop.permute.xlu0 %1962
    %v1965 = vmul.f32 %v1958, %v1963
    %1967 = vrot.lane.b32.xlu0 %v1965, 32
    %v1968 = vpop.permute.xlu0 %1967
    %v1970 = vadd.f32 %v1960, %v1968
    %v1971 = vtanh.pop %v1970
    %1973 = vrot.lane.b32.xlu0 %v1971, 64
    %v1974 = vpop.permute.xlu0 %1973
    %v1976 = vmul.f32 %v1958, %v1974
    %1978 = vrot.lane.b32.xlu0 %v1806, 32
    %v1979 = vpop.permute.xlu0 %1978
    %v1980 = vsel %vm64, %v1979, 0
    %1982 = vmatprep.subr.mxu0 0.0
    %1983 = vmatpush1.msra.mxu0 0.0
    %1984 = vmatprep.subr.mxu0 0.0
    %1985 = vmatpush1.msra.mxu0 0.0
    %1986 = vmatprep.subr.mxu0 0.0
    %1987 = vmatpush1.msra.mxu0 0.0
    %1988 = vmatprep.subr.mxu0 0.0
    %1989 = vmatpush1.msra.mxu0 0.0
    %1990 = vmatprep.subr.mxu0 0.0
    %1991 = vmatpush1.msra.mxu0 0.0
    %1992 = vmatprep.subr.mxu0 0.0
    %1993 = vmatpush1.msra.mxu0 0.0
    %1994 = vmatprep.subr.mxu0 0.0
    %1995 = vmatpush1.msra.mxu0 0.0
    %1996 = vmatprep.subr.mxu0 0.0
    %1997 = vmatpush1.msra.mxu0 0.0
    %1998 = vmatprep.subr.mxu0 0.0
    %1999 = vmatpush1.msra.mxu0 0.0
    %2000 = vmatprep.subr.mxu0 0.0
    %2001 = vmatpush1.msra.mxu0 0.0
    %2002 = vmatprep.subr.mxu0 0.0
    %2003 = vmatpush1.msra.mxu0 0.0
    %2004 = vmatprep.subr.mxu0 0.0
    %2005 = vmatpush1.msra.mxu0 0.0
    %2006 = vmatprep.subr.mxu0 0.0
    %2007 = vmatpush1.msra.mxu0 %v62
    %2008 = vmatprep.subr.mxu0 0.0
    %2009 = vmatpush1.msra.mxu0 %v61
    %2010 = vmatprep.subr.mxu0 0.0
    %2011 = vmatpush1.msra.mxu0 %v60
    %2012 = vmatprep.subr.mxu0 0.0
    %2013 = vmatpush1.msra.mxu0 %v59
    %2014 = vmatprep.subr.mxu0 0.0
    %2015 = vmatpush2.msra.mxu0 0.0
    %2016 = vmatprep.subr.mxu0 0.0
    %2017 = vmatpush2.msra.mxu0 0.0
    %2018 = vmatprep.subr.mxu0 0.0
    %2019 = vmatpush2.msra.mxu0 0.0
    %2020 = vmatprep.subr.mxu0 0.0
    %2021 = vmatpush2.msra.mxu0 0.0
    %2022 = vmatprep.subr.mxu0 0.0
    %2023 = vmatpush2.msra.mxu0 0.0
    %2024 = vmatprep.subr.mxu0 0.0
    %2025 = vmatpush2.msra.mxu0 0.0
    %2026 = vmatprep.subr.mxu0 0.0
    %2027 = vmatpush2.msra.mxu0 0.0
    %2028 = vmatprep.subr.mxu0 0.0
    %2029 = vmatpush2.msra.mxu0 0.0
    %2030 = vmatprep.subr.mxu0 0.0
    %2031 = vmatpush2.msra.mxu0 0.0
    %2032 = vmatprep.subr.mxu0 0.0
    %2033 = vmatpush2.msra.mxu0 0.0
    %2034 = vmatprep.subr.mxu0 0.0
    %2035 = vmatpush2.msra.mxu0 0.0
    %2036 = vmatprep.subr.mxu0 0.0
    %2037 = vmatpush2.msra.mxu0 0.0
    %2038 = vmatprep.subr.mxu0 0.0
    %2039 = vmatpush2.msra.mxu0 0.0
    %2040 = vmatprep.subr.mxu0 0.0
    %2041 = vmatpush2.msra.mxu0 0.0
    %2042 = vmatprep.subr.mxu0 0.0
    %2043 = vmatpush2.msra.mxu0 0.0
    %2044 = vmatprep.subr.mxu0 0.0
    %2045 = vmatpush2.msra.mxu0 0.0
    %2046 = vmatprep.mubr.f32.mxu0 0.0
    %2047 = vmatmul.mubr.f32.gmra.mxu0 %v1980
    %v2048 = vpop.f32.mrf.mxu0
    %v2049 = vadd.f32 0.0, %v2048
    %v2050 = vpop.f32.mrf.mxu0
    %2051 = vdwg.mxu0
    %2052 = vmatprep.subr.mxu0 0.0
    %2053 = vmatpush1.msra.mxu0 0.0
    %2054 = vmatprep.subr.mxu0 0.0
    %2055 = vmatpush1.msra.mxu0 0.0
    %2056 = vmatprep.subr.mxu0 0.0
    %2057 = vmatpush1.msra.mxu0 0.0
    %2058 = vmatprep.subr.mxu0 0.0
    %2059 = vmatpush1.msra.mxu0 0.0
    %2060 = vmatprep.subr.mxu0 0.0
    %2061 = vmatpush1.msra.mxu0 0.0
    %2062 = vmatprep.subr.mxu0 0.0
    %2063 = vmatpush1.msra.mxu0 0.0
    %2064 = vmatprep.subr.mxu0 0.0
    %2065 = vmatpush1.msra.mxu0 0.0
    %2066 = vmatprep.subr.mxu0 0.0
    %2067 = vmatpush1.msra.mxu0 0.0
    %2068 = vmatprep.subr.mxu0 0.0
    %2069 = vmatpush1.msra.mxu0 0.0
    %2070 = vmatprep.subr.mxu0 0.0
    %2071 = vmatpush1.msra.mxu0 0.0
    %2072 = vmatprep.subr.mxu0 0.0
    %2073 = vmatpush1.msra.mxu0 0.0
    %2074 = vmatprep.subr.mxu0 0.0
    %2075 = vmatpush1.msra.mxu0 0.0
    %2076 = vmatprep.subr.mxu0 0.0
    %2077 = vmatpush1.msra.mxu0 %v58
    %2078 = vmatprep.subr.mxu0 0.0
    %2079 = vmatpush1.msra.mxu0 %v57
    %2080 = vmatprep.subr.mxu0 0.0
    %2081 = vmatpush1.msra.mxu0 %v56
    %2082 = vmatprep.subr.mxu0 0.0
    %2083 = vmatpush1.msra.mxu0 %v55
    %2084 = vmatprep.subr.mxu0 0.0
    %2085 = vmatpush2.msra.mxu0 0.0
    %2086 = vmatprep.subr.mxu0 0.0
    %2087 = vmatpush2.msra.mxu0 0.0
    %2088 = vmatprep.subr.mxu0 0.0
    %2089 = vmatpush2.msra.mxu0 0.0
    %2090 = vmatprep.subr.mxu0 0.0
    %2091 = vmatpush2.msra.mxu0 0.0
    %2092 = vmatprep.subr.mxu0 0.0
    %2093 = vmatpush2.msra.mxu0 0.0
    %2094 = vmatprep.subr.mxu0 0.0
    %2095 = vmatpush2.msra.mxu0 0.0
    %2096 = vmatprep.subr.mxu0 0.0
    %2097 = vmatpush2.msra.mxu0 0.0
    %2098 = vmatprep.subr.mxu0 0.0
    %2099 = vmatpush2.msra.mxu0 0.0
    %2100 = vmatprep.subr.mxu0 0.0
    %2101 = vmatpush2.msra.mxu0 0.0
    %2102 = vmatprep.subr.mxu0 0.0
    %2103 = vmatpush2.msra.mxu0 0.0
    %2104 = vmatprep.subr.mxu0 0.0
    %2105 = vmatpush2.msra.mxu0 0.0
    %2106 = vmatprep.subr.mxu0 0.0
    %2107 = vmatpush2.msra.mxu0 0.0
    %2108 = vmatprep.subr.mxu0 0.0
    %2109 = vmatpush2.msra.mxu0 0.0
    %2110 = vmatprep.subr.mxu0 0.0
    %2111 = vmatpush2.msra.mxu0 0.0
    %2112 = vmatprep.subr.mxu0 0.0
    %2113 = vmatpush2.msra.mxu0 0.0
    %2114 = vmatprep.subr.mxu0 0.0
    %2115 = vmatpush2.msra.mxu0 0.0
    %2116 = vmatprep.mubr.f32.mxu0 0.0
    %2117 = vmatmul.mubr.f32.gmra.mxu0 %v850
    %v2118 = vpop.f32.mrf.mxu0
    %v2119 = vadd.f32 %v2049, %v2118
    %v2120 = vpop.f32.mrf.mxu0
    %2121 = vdwg.mxu0
    %v2122 = vadd.f32 %v2119, %v398
    %v2123 = vxor.u32 %v2122, 2147483648
    %v2124 = vmul.f32 %v2123, 1.442695
    %v2125 = vpow.pop %v2124
    %v2126 = vadd.f32 %v2125, 1.0
    %v2127 = vrcp.pop %v2126
    %v2128 = vmul.f32 1.0, %v2127
    %v2129 = vtanh.pop %v2122
    %v2130 = vmul.f32 %v2128, %v1800
    %2132 = vrot.lane.b32.xlu0 %v2129, 64
    %v2133 = vpop.permute.xlu0 %2132
    %v2135 = vmul.f32 %v2128, %v2133
    %2137 = vrot.lane.b32.xlu0 %v2135, 32
    %v2138 = vpop.permute.xlu0 %2137
    %v2140 = vadd.f32 %v2130, %v2138
    %v2141 = vtanh.pop %v2140
    %2143 = vrot.lane.b32.xlu0 %v2141, 64
    %v2144 = vpop.permute.xlu0 %2143
    %v2146 = vmul.f32 %v2128, %v2144
    %2148 = vrot.lane.b32.xlu0 %v1976, 32
    %v2149 = vpop.permute.xlu0 %2148
    %v2150 = vsel %vm64, %v2149, 0
    %2152 = vmatprep.subr.mxu0 0.0
    %2153 = vmatpush1.msra.mxu0 0.0
    %2154 = vmatprep.subr.mxu0 0.0
    %2155 = vmatpush1.msra.mxu0 0.0
    %2156 = vmatprep.subr.mxu0 0.0
    %2157 = vmatpush1.msra.mxu0 0.0
    %2158 = vmatprep.subr.mxu0 0.0
    %2159 = vmatpush1.msra.mxu0 0.0
    %2160 = vmatprep.subr.mxu0 0.0
    %2161 = vmatpush1.msra.mxu0 0.0
    %2162 = vmatprep.subr.mxu0 0.0
    %2163 = vmatpush1.msra.mxu0 0.0
    %2164 = vmatprep.subr.mxu0 0.0
    %2165 = vmatpush1.msra.mxu0 0.0
    %2166 = vmatprep.subr.mxu0 0.0
    %2167 = vmatpush1.msra.mxu0 0.0
    %2168 = vmatprep.subr.mxu0 0.0
    %2169 = vmatpush1.msra.mxu0 0.0
    %2170 = vmatprep.subr.mxu0 0.0
    %2171 = vmatpush1.msra.mxu0 0.0
    %2172 = vmatprep.subr.mxu0 0.0
    %2173 = vmatpush1.msra.mxu0 0.0
    %2174 = vmatprep.subr.mxu0 0.0
    %2175 = vmatpush1.msra.mxu0 0.0
    %2176 = vmatprep.subr.mxu0 0.0
    %2177 = vmatpush1.msra.mxu0 %v53
    %2178 = vmatprep.subr.mxu0 0.0
    %2179 = vmatpush1.msra.mxu0 %v52
    %2180 = vmatprep.subr.mxu0 0.0
    %2181 = vmatpush1.msra.mxu0 %v51
    %2182 = vmatprep.subr.mxu0 0.0
    %2183 = vmatpush1.msra.mxu0 %v50
    %2184 = vmatprep.subr.mxu0 0.0
    %2185 = vmatpush2.msra.mxu0 0.0
    %2186 = vmatprep.subr.mxu0 0.0
    %2187 = vmatpush2.msra.mxu0 0.0
    %2188 = vmatprep.subr.mxu0 0.0
    %2189 = vmatpush2.msra.mxu0 0.0
    %2190 = vmatprep.subr.mxu0 0.0
    %2191 = vmatpush2.msra.mxu0 0.0
    %2192 = vmatprep.subr.mxu0 0.0
    %2193 = vmatpush2.msra.mxu0 0.0
    %2194 = vmatprep.subr.mxu0 0.0
    %2195 = vmatpush2.msra.mxu0 0.0
    %2196 = vmatprep.subr.mxu0 0.0
    %2197 = vmatpush2.msra.mxu0 0.0
    %2198 = vmatprep.subr.mxu0 0.0
    %2199 = vmatpush2.msra.mxu0 0.0
    %2200 = vmatprep.subr.mxu0 0.0
    %2201 = vmatpush2.msra.mxu0 0.0
    %2202 = vmatprep.subr.mxu0 0.0
    %2203 = vmatpush2.msra.mxu0 0.0
    %2204 = vmatprep.subr.mxu0 0.0
    %2205 = vmatpush2.msra.mxu0 0.0
    %2206 = vmatprep.subr.mxu0 0.0
    %2207 = vmatpush2.msra.mxu0 0.0
    %2208 = vmatprep.subr.mxu0 0.0
    %2209 = vmatpush2.msra.mxu0 0.0
    %2210 = vmatprep.subr.mxu0 0.0
    %2211 = vmatpush2.msra.mxu0 0.0
    %2212 = vmatprep.subr.mxu0 0.0
    %2213 = vmatpush2.msra.mxu0 0.0
    %2214 = vmatprep.subr.mxu0 0.0
    %2215 = vmatpush2.msra.mxu0 0.0
    %2216 = vmatprep.mubr.f32.mxu0 0.0
    %2217 = vmatmul.mubr.f32.gmra.mxu0 %v2150
    %v2218 = vpop.f32.mrf.mxu0
    %v2219 = vadd.f32 0.0, %v2218
    %v2220 = vpop.f32.mrf.mxu0
    %2221 = vdwg.mxu0
    %2222 = vmatprep.subr.mxu0 0.0
    %2223 = vmatpush1.msra.mxu0 0.0
    %2224 = vmatprep.subr.mxu0 0.0
    %2225 = vmatpush1.msra.mxu0 0.0
    %2226 = vmatprep.subr.mxu0 0.0
    %2227 = vmatpush1.msra.mxu0 0.0
    %2228 = vmatprep.subr.mxu0 0.0
    %2229 = vmatpush1.msra.mxu0 0.0
    %2230 = vmatprep.subr.mxu0 0.0
    %2231 = vmatpush1.msra.mxu0 0.0
    %2232 = vmatprep.subr.mxu0 0.0
    %2233 = vmatpush1.msra.mxu0 0.0
    %2234 = vmatprep.subr.mxu0 0.0
    %2235 = vmatpush1.msra.mxu0 0.0
    %2236 = vmatprep.subr.mxu0 0.0
    %2237 = vmatpush1.msra.mxu0 0.0
    %2238 = vmatprep.subr.mxu0 0.0
    %2239 = vmatpush1.msra.mxu0 0.0
    %2240 = vmatprep.subr.mxu0 0.0
    %2241 = vmatpush1.msra.mxu0 0.0
    %2242 = vmatprep.subr.mxu0 0.0
    %2243 = vmatpush1.msra.mxu0 0.0
    %2244 = vmatprep.subr.mxu0 0.0
    %2245 = vmatpush1.msra.mxu0 0.0
    %2246 = vmatprep.subr.mxu0 0.0
    %2247 = vmatpush1.msra.mxu0 %v49
    %2248 = vmatprep.subr.mxu0 0.0
    %2249 = vmatpush1.msra.mxu0 %v48
    %2250 = vmatprep.subr.mxu0 0.0
    %2251 = vmatpush1.msra.mxu0 %v47
    %2252 = vmatprep.subr.mxu0 0.0
    %2253 = vmatpush1.msra.mxu0 %v46
    %2254 = vmatprep.subr.mxu0 0.0
    %2255 = vmatpush2.msra.mxu0 0.0
    %2256 = vmatprep.subr.mxu0 0.0
    %2257 = vmatpush2.msra.mxu0 0.0
    %2258 = vmatprep.subr.mxu0 0.0
    %2259 = vmatpush2.msra.mxu0 0.0
    %2260 = vmatprep.subr.mxu0 0.0
    %2261 = vmatpush2.msra.mxu0 0.0
    %2262 = vmatprep.subr.mxu0 0.0
    %2263 = vmatpush2.msra.mxu0 0.0
    %2264 = vmatprep.subr.mxu0 0.0
    %2265 = vmatpush2.msra.mxu0 0.0
    %2266 = vmatprep.subr.mxu0 0.0
    %2267 = vmatpush2.msra.mxu0 0.0
    %2268 = vmatprep.subr.mxu0 0.0
    %2269 = vmatpush2.msra.mxu0 0.0
    %2270 = vmatprep.subr.mxu0 0.0
    %2271 = vmatpush2.msra.mxu0 0.0
    %2272 = vmatprep.subr.mxu0 0.0
    %2273 = vmatpush2.msra.mxu0 0.0
    %2274 = vmatprep.subr.mxu0 0.0
    %2275 = vmatpush2.msra.mxu0 0.0
    %2276 = vmatprep.subr.mxu0 0.0
    %2277 = vmatpush2.msra.mxu0 0.0
    %2278 = vmatprep.subr.mxu0 0.0
    %2279 = vmatpush2.msra.mxu0 0.0
    %2280 = vmatprep.subr.mxu0 0.0
    %2281 = vmatpush2.msra.mxu0 0.0
    %2282 = vmatprep.subr.mxu0 0.0
    %2283 = vmatpush2.msra.mxu0 0.0
    %2284 = vmatprep.subr.mxu0 0.0
    %2285 = vmatpush2.msra.mxu0 0.0
    %2286 = vmatprep.mubr.f32.mxu0 0.0
    %2287 = vmatmul.mubr.f32.gmra.mxu0 %v676
    %v2288 = vpop.f32.mrf.mxu0
    %v2289 = vadd.f32 %v2219, %v2288
    %v2290 = vpop.f32.mrf.mxu0
    %2291 = vdwg.mxu0
    %v2292 = vadd.f32 %v2289, %v215
    %v2293 = vxor.u32 %v2292, 2147483648
    %v2294 = vmul.f32 %v2293, 1.442695
    %v2295 = vpow.pop %v2294
    %v2296 = vadd.f32 %v2295, 1.0
    %v2297 = vrcp.pop %v2296
    %v2298 = vmul.f32 1.0, %v2297
    %v2299 = vtanh.pop %v2292
    %v2300 = vmul.f32 %v2298, %v1970
    %2302 = vrot.lane.b32.xlu0 %v2299, 64
    %v2303 = vpop.permute.xlu0 %2302
    %v2305 = vmul.f32 %v2298, %v2303
    %2307 = vrot.lane.b32.xlu0 %v2305, 32
    %v2308 = vpop.permute.xlu0 %2307
    %v2310 = vadd.f32 %v2300, %v2308
    %v2311 = vtanh.pop %v2310
    %2313 = vrot.lane.b32.xlu0 %v2311, 64
    %v2314 = vpop.permute.xlu0 %2313
    %v2316 = vmul.f32 %v2298, %v2314
    %2318 = vrot.lane.b32.xlu0 %v2146, 32
    %v2319 = vpop.permute.xlu0 %2318
    %v2320 = vsel %vm64, %v2319, 0
    %2322 = vmatprep.subr.mxu0 0.0
    %2323 = vmatpush1.msra.mxu0 0.0
    %2324 = vmatprep.subr.mxu0 0.0
    %2325 = vmatpush1.msra.mxu0 0.0
    %2326 = vmatprep.subr.mxu0 0.0
    %2327 = vmatpush1.msra.mxu0 0.0
    %2328 = vmatprep.subr.mxu0 0.0
    %2329 = vmatpush1.msra.mxu0 0.0
    %2330 = vmatprep.subr.mxu0 0.0
    %2331 = vmatpush1.msra.mxu0 0.0
    %2332 = vmatprep.subr.mxu0 0.0
    %2333 = vmatpush1.msra.mxu0 0.0
    %2334 = vmatprep.subr.mxu0 0.0
    %2335 = vmatpush1.msra.mxu0 0.0
    %2336 = vmatprep.subr.mxu0 0.0
    %2337 = vmatpush1.msra.mxu0 0.0
    %2338 = vmatprep.subr.mxu0 0.0
    %2339 = vmatpush1.msra.mxu0 0.0
    %2340 = vmatprep.subr.mxu0 0.0
    %2341 = vmatpush1.msra.mxu0 0.0
    %2342 = vmatprep.subr.mxu0 0.0
    %2343 = vmatpush1.msra.mxu0 0.0
    %2344 = vmatprep.subr.mxu0 0.0
    %2345 = vmatpush1.msra.mxu0 0.0
    %2346 = vmatprep.subr.mxu0 0.0
    %2347 = vmatpush1.msra.mxu0 %v62
    %2348 = vmatprep.subr.mxu0 0.0
    %2349 = vmatpush1.msra.mxu0 %v61
    %2350 = vmatprep.subr.mxu0 0.0
    %2351 = vmatpush1.msra.mxu0 %v60
    %2352 = vmatprep.subr.mxu0 0.0
    %2353 = vmatpush1.msra.mxu0 %v59
    %2354 = vmatprep.subr.mxu0 0.0
    %2355 = vmatpush2.msra.mxu0 0.0
    %2356 = vmatprep.subr.mxu0 0.0
    %2357 = vmatpush2.msra.mxu0 0.0
    %2358 = vmatprep.subr.mxu0 0.0
    %2359 = vmatpush2.msra.mxu0 0.0
    %2360 = vmatprep.subr.mxu0 0.0
    %2361 = vmatpush2.msra.mxu0 0.0
    %2362 = vmatprep.subr.mxu0 0.0
    %2363 = vmatpush2.msra.mxu0 0.0
    %2364 = vmatprep.subr.mxu0 0.0
    %2365 = vmatpush2.msra.mxu0 0.0
    %2366 = vmatprep.subr.mxu0 0.0
    %2367 = vmatpush2.msra.mxu0 0.0
    %2368 = vmatprep.subr.mxu0 0.0
    %2369 = vmatpush2.msra.mxu0 0.0
    %2370 = vmatprep.subr.mxu0 0.0
    %2371 = vmatpush2.msra.mxu0 0.0
    %2372 = vmatprep.subr.mxu0 0.0
    %2373 = vmatpush2.msra.mxu0 0.0
    %2374 = vmatprep.subr.mxu0 0.0
    %2375 = vmatpush2.msra.mxu0 0.0
    %2376 = vmatprep.subr.mxu0 0.0
    %2377 = vmatpush2.msra.mxu0 0.0
    %2378 = vmatprep.subr.mxu0 0.0
    %2379 = vmatpush2.msra.mxu0 0.0
    %2380 = vmatprep.subr.mxu0 0.0
    %2381 = vmatpush2.msra.mxu0 0.0
    %2382 = vmatprep.subr.mxu0 0.0
    %2383 = vmatpush2.msra.mxu0 0.0
    %2384 = vmatprep.subr.mxu0 0.0
    %2385 = vmatpush2.msra.mxu0 0.0
    %2386 = vmatprep.mubr.f32.mxu0 0.0
    %2387 = vmatmul.mubr.f32.gmra.mxu0 %v2320
    %v2388 = vpop.f32.mrf.mxu0
    %v2389 = vadd.f32 0.0, %v2388
    %v2390 = vpop.f32.mrf.mxu0
    %2391 = vdwg.mxu0
    %2392 = vmatprep.subr.mxu0 0.0
    %2393 = vmatpush1.msra.mxu0 0.0
    %2394 = vmatprep.subr.mxu0 0.0
    %2395 = vmatpush1.msra.mxu0 0.0
    %2396 = vmatprep.subr.mxu0 0.0
    %2397 = vmatpush1.msra.mxu0 0.0
    %2398 = vmatprep.subr.mxu0 0.0
    %2399 = vmatpush1.msra.mxu0 0.0
    %2400 = vmatprep.subr.mxu0 0.0
    %2401 = vmatpush1.msra.mxu0 0.0
    %2402 = vmatprep.subr.mxu0 0.0
    %2403 = vmatpush1.msra.mxu0 0.0
    %2404 = vmatprep.subr.mxu0 0.0
    %2405 = vmatpush1.msra.mxu0 0.0
    %2406 = vmatprep.subr.mxu0 0.0
    %2407 = vmatpush1.msra.mxu0 0.0
    %2408 = vmatprep.subr.mxu0 0.0
    %2409 = vmatpush1.msra.mxu0 0.0
    %2410 = vmatprep.subr.mxu0 0.0
    %2411 = vmatpush1.msra.mxu0 0.0
    %2412 = vmatprep.subr.mxu0 0.0
    %2413 = vmatpush1.msra.mxu0 0.0
    %2414 = vmatprep.subr.mxu0 0.0
    %2415 = vmatpush1.msra.mxu0 0.0
    %2416 = vmatprep.subr.mxu0 0.0
    %2417 = vmatpush1.msra.mxu0 %v58
    %2418 = vmatprep.subr.mxu0 0.0
    %2419 = vmatpush1.msra.mxu0 %v57
    %2420 = vmatprep.subr.mxu0 0.0
    %2421 = vmatpush1.msra.mxu0 %v56
    %2422 = vmatprep.subr.mxu0 0.0
    %2423 = vmatpush1.msra.mxu0 %v55
    %2424 = vmatprep.subr.mxu0 0.0
    %2425 = vmatpush2.msra.mxu0 0.0
    %2426 = vmatprep.subr.mxu0 0.0
    %2427 = vmatpush2.msra.mxu0 0.0
    %2428 = vmatprep.subr.mxu0 0.0
    %2429 = vmatpush2.msra.mxu0 0.0
    %2430 = vmatprep.subr.mxu0 0.0
    %2431 = vmatpush2.msra.mxu0 0.0
    %2432 = vmatprep.subr.mxu0 0.0
    %2433 = vmatpush2.msra.mxu0 0.0
    %2434 = vmatprep.subr.mxu0 0.0
    %2435 = vmatpush2.msra.mxu0 0.0
    %2436 = vmatprep.subr.mxu0 0.0
    %2437 = vmatpush2.msra.mxu0 0.0
    %2438 = vmatprep.subr.mxu0 0.0
    %2439 = vmatpush2.msra.mxu0 0.0
    %2440 = vmatprep.subr.mxu0 0.0
    %2441 = vmatpush2.msra.mxu0 0.0
    %2442 = vmatprep.subr.mxu0 0.0
    %2443 = vmatpush2.msra.mxu0 0.0
    %2444 = vmatprep.subr.mxu0 0.0
    %2445 = vmatpush2.msra.mxu0 0.0
    %2446 = vmatprep.subr.mxu0 0.0
    %2447 = vmatpush2.msra.mxu0 0.0
    %2448 = vmatprep.subr.mxu0 0.0
    %2449 = vmatpush2.msra.mxu0 0.0
    %2450 = vmatprep.subr.mxu0 0.0
    %2451 = vmatpush2.msra.mxu0 0.0
    %2452 = vmatprep.subr.mxu0 0.0
    %2453 = vmatpush2.msra.mxu0 0.0
    %2454 = vmatprep.subr.mxu0 0.0
    %2455 = vmatpush2.msra.mxu0 0.0
    %2456 = vmatprep.mubr.f32.mxu0 0.0
    %2457 = vmatmul.mubr.f32.gmra.mxu0 %v502
    %v2458 = vpop.f32.mrf.mxu0
    %v2459 = vadd.f32 %v2389, %v2458
    %v2460 = vpop.f32.mrf.mxu0
    %2461 = vdwg.mxu0
    %v2462 = vadd.f32 %v2459, %v398
    %v2463 = vxor.u32 %v2462, 2147483648
    %v2464 = vmul.f32 %v2463, 1.442695
    %v2465 = vpow.pop %v2464
    %v2466 = vadd.f32 %v2465, 1.0
    %v2467 = vrcp.pop %v2466
    %v2468 = vmul.f32 1.0, %v2467
    %v2469 = vtanh.pop %v2462
    %v2470 = vmul.f32 %v2468, %v2140
    %2472 = vrot.lane.b32.xlu0 %v2469, 64
    %v2473 = vpop.permute.xlu0 %2472
    %v2475 = vmul.f32 %v2468, %v2473
    %2477 = vrot.lane.b32.xlu0 %v2475, 32
    %v2478 = vpop.permute.xlu0 %2477
    %v2480 = vadd.f32 %v2470, %v2478
    %v2481 = vtanh.pop %v2480
    %2483 = vrot.lane.b32.xlu0 %v2481, 64
    %v2484 = vpop.permute.xlu0 %2483
    %v2486 = vmul.f32 %v2468, %v2484
    %2488 = vrot.lane.b32.xlu0 %v2316, 32
    %v2489 = vpop.permute.xlu0 %2488
    %v2490 = vsel %vm64, %v2489, 0
    %2492 = vmatprep.subr.mxu0 0.0
    %2493 = vmatpush1.msra.mxu0 0.0
    %2494 = vmatprep.subr.mxu0 0.0
    %2495 = vmatpush1.msra.mxu0 0.0
    %2496 = vmatprep.subr.mxu0 0.0
    %2497 = vmatpush1.msra.mxu0 0.0
    %2498 = vmatprep.subr.mxu0 0.0
    %2499 = vmatpush1.msra.mxu0 0.0
    %2500 = vmatprep.subr.mxu0 0.0
    %2501 = vmatpush1.msra.mxu0 0.0
    %2502 = vmatprep.subr.mxu0 0.0
    %2503 = vmatpush1.msra.mxu0 0.0
    %2504 = vmatprep.subr.mxu0 0.0
    %2505 = vmatpush1.msra.mxu0 0.0
    %2506 = vmatprep.subr.mxu0 0.0
    %2507 = vmatpush1.msra.mxu0 0.0
    %2508 = vmatprep.subr.mxu0 0.0
    %2509 = vmatpush1.msra.mxu0 0.0
    %2510 = vmatprep.subr.mxu0 0.0
    %2511 = vmatpush1.msra.mxu0 0.0
    %2512 = vmatprep.subr.mxu0 0.0
    %2513 = vmatpush1.msra.mxu0 0.0
    %2514 = vmatprep.subr.mxu0 0.0
    %2515 = vmatpush1.msra.mxu0 0.0
    %2516 = vmatprep.subr.mxu0 0.0
    %2517 = vmatpush1.msra.mxu0 %v53
    %2518 = vmatprep.subr.mxu0 0.0
    %2519 = vmatpush1.msra.mxu0 %v52
    %2520 = vmatprep.subr.mxu0 0.0
    %2521 = vmatpush1.msra.mxu0 %v51
    %2522 = vmatprep.subr.mxu0 0.0
    %2523 = vmatpush1.msra.mxu0 %v50
    %2524 = vmatprep.subr.mxu0 0.0
    %2525 = vmatpush2.msra.mxu0 0.0
    %2526 = vmatprep.subr.mxu0 0.0
    %2527 = vmatpush2.msra.mxu0 0.0
    %2528 = vmatprep.subr.mxu0 0.0
    %2529 = vmatpush2.msra.mxu0 0.0
    %2530 = vmatprep.subr.mxu0 0.0
    %2531 = vmatpush2.msra.mxu0 0.0
    %2532 = vmatprep.subr.mxu0 0.0
    %2533 = vmatpush2.msra.mxu0 0.0
    %2534 = vmatprep.subr.mxu0 0.0
    %2535 = vmatpush2.msra.mxu0 0.0
    %2536 = vmatprep.subr.mxu0 0.0
    %2537 = vmatpush2.msra.mxu0 0.0
    %2538 = vmatprep.subr.mxu0 0.0
    %2539 = vmatpush2.msra.mxu0 0.0
    %2540 = vmatprep.subr.mxu0 0.0
    %2541 = vmatpush2.msra.mxu0 0.0
    %2542 = vmatprep.subr.mxu0 0.0
    %2543 = vmatpush2.msra.mxu0 0.0
    %2544 = vmatprep.subr.mxu0 0.0
    %2545 = vmatpush2.msra.mxu0 0.0
    %2546 = vmatprep.subr.mxu0 0.0
    %2547 = vmatpush2.msra.mxu0 0.0
    %2548 = vmatprep.subr.mxu0 0.0
    %2549 = vmatpush2.msra.mxu0 0.0
    %2550 = vmatprep.subr.mxu0 0.0
    %2551 = vmatpush2.msra.mxu0 0.0
    %2552 = vmatprep.subr.mxu0 0.0
    %2553 = vmatpush2.msra.mxu0 0.0
    %2554 = vmatprep.subr.mxu0 0.0
    %2555 = vmatpush2.msra.mxu0 0.0
    %2556 = vmatprep.mubr.f32.mxu0 0.0
    %2557 = vmatmul.mubr.f32.gmra.mxu0 %v2490
    %v2558 = vpop.f32.mrf.mxu0
    %v2559 = vadd.f32 0.0, %v2558
    %v2560 = vpop.f32.mrf.mxu0
    %2561 = vdwg.mxu0
    %2562 = vmatprep.subr.mxu0 0.0
    %2563 = vmatpush1.msra.mxu0 0.0
    %2564 = vmatprep.subr.mxu0 0.0
    %2565 = vmatpush1.msra.mxu0 0.0
    %2566 = vmatprep.subr.mxu0 0.0
    %2567 = vmatpush1.msra.mxu0 0.0
    %2568 = vmatprep.subr.mxu0 0.0
    %2569 = vmatpush1.msra.mxu0 0.0
    %2570 = vmatprep.subr.mxu0 0.0
    %2571 = vmatpush1.msra.mxu0 0.0
    %2572 = vmatprep.subr.mxu0 0.0
    %2573 = vmatpush1.msra.mxu0 0.0
    %2574 = vmatprep.subr.mxu0 0.0
    %2575 = vmatpush1.msra.mxu0 0.0
    %2576 = vmatprep.subr.mxu0 0.0
    %2577 = vmatpush1.msra.mxu0 0.0
    %2578 = vmatprep.subr.mxu0 0.0
    %2579 = vmatpush1.msra.mxu0 0.0
    %2580 = vmatprep.subr.mxu0 0.0
    %2581 = vmatpush1.msra.mxu0 0.0
    %2582 = vmatprep.subr.mxu0 0.0
    %2583 = vmatpush1.msra.mxu0 0.0
    %2584 = vmatprep.subr.mxu0 0.0
    %2585 = vmatpush1.msra.mxu0 0.0
    %2586 = vmatprep.subr.mxu0 0.0
    %2587 = vmatpush1.msra.mxu0 %v49
    %2588 = vmatprep.subr.mxu0 0.0
    %2589 = vmatpush1.msra.mxu0 %v48
    %2590 = vmatprep.subr.mxu0 0.0
    %2591 = vmatpush1.msra.mxu0 %v47
    %2592 = vmatprep.subr.mxu0 0.0
    %2593 = vmatpush1.msra.mxu0 %v46
    %2594 = vmatprep.subr.mxu0 0.0
    %2595 = vmatpush2.msra.mxu0 0.0
    %2596 = vmatprep.subr.mxu0 0.0
    %2597 = vmatpush2.msra.mxu0 0.0
    %2598 = vmatprep.subr.mxu0 0.0
    %2599 = vmatpush2.msra.mxu0 0.0
    %2600 = vmatprep.subr.mxu0 0.0
    %2601 = vmatpush2.msra.mxu0 0.0
    %2602 = vmatprep.subr.mxu0 0.0
    %2603 = vmatpush2.msra.mxu0 0.0
    %2604 = vmatprep.subr.mxu0 0.0
    %2605 = vmatpush2.msra.mxu0 0.0
    %2606 = vmatprep.subr.mxu0 0.0
    %2607 = vmatpush2.msra.mxu0 0.0
    %2608 = vmatprep.subr.mxu0 0.0
    %2609 = vmatpush2.msra.mxu0 0.0
    %2610 = vmatprep.subr.mxu0 0.0
    %2611 = vmatpush2.msra.mxu0 0.0
    %2612 = vmatprep.subr.mxu0 0.0
    %2613 = vmatpush2.msra.mxu0 0.0
    %2614 = vmatprep.subr.mxu0 0.0
    %2615 = vmatpush2.msra.mxu0 0.0
    %2616 = vmatprep.subr.mxu0 0.0
    %2617 = vmatpush2.msra.mxu0 0.0
    %2618 = vmatprep.subr.mxu0 0.0
    %2619 = vmatpush2.msra.mxu0 0.0
    %2620 = vmatprep.subr.mxu0 0.0
    %2621 = vmatpush2.msra.mxu0 0.0
    %2622 = vmatprep.subr.mxu0 0.0
    %2623 = vmatpush2.msra.mxu0 0.0
    %2624 = vmatprep.subr.mxu0 0.0
    %2625 = vmatpush2.msra.mxu0 0.0
    %2626 = vmatprep.mubr.f32.mxu0 0.0
    %2627 = vmatmul.mubr.f32.gmra.mxu0 %v322
    %v2628 = vpop.f32.mrf.mxu0
    %v2629 = vadd.f32 %v2559, %v2628
    %v2630 = vpop.f32.mrf.mxu0
    %2631 = vdwg.mxu0
    %v2632 = vadd.f32 %v2629, %v215
    %v2633 = vxor.u32 %v2632, 2147483648
    %v2634 = vmul.f32 %v2633, 1.442695
    %v2635 = vpow.pop %v2634
    %v2636 = vadd.f32 %v2635, 1.0
    %v2637 = vrcp.pop %v2636
    %v2638 = vmul.f32 1.0, %v2637
    %v2639 = vtanh.pop %v2632
    %v2640 = vmul.f32 %v2638, %v2310
    %2642 = vrot.lane.b32.xlu0 %v2639, 64
    %v2643 = vpop.permute.xlu0 %2642
    %v2645 = vmul.f32 %v2638, %v2643
    %2647 = vrot.lane.b32.xlu0 %v2645, 32
    %v2648 = vpop.permute.xlu0 %2647
    %v2650 = vadd.f32 %v2640, %v2648
    %v2651 = vtanh.pop %v2650
    %2653 = vrot.lane.b32.xlu0 %v2651, 64
    %v2654 = vpop.permute.xlu0 %2653
    %v2656 = vmul.f32 %v2638, %v2654
    %2658 = vrot.lane.b32.xlu0 %v2486, 32
    %v2659 = vpop.permute.xlu0 %2658
    %v2660 = vsel %vm64, %v2659, 0
    %2662 = vmatprep.subr.mxu0 0.0
    %2663 = vmatpush1.msra.mxu0 0.0
    %2664 = vmatprep.subr.mxu0 0.0
    %2665 = vmatpush1.msra.mxu0 0.0
    %2666 = vmatprep.subr.mxu0 0.0
    %2667 = vmatpush1.msra.mxu0 0.0
    %2668 = vmatprep.subr.mxu0 0.0
    %2669 = vmatpush1.msra.mxu0 0.0
    %2670 = vmatprep.subr.mxu0 0.0
    %2671 = vmatpush1.msra.mxu0 0.0
    %2672 = vmatprep.subr.mxu0 0.0
    %2673 = vmatpush1.msra.mxu0 0.0
    %2674 = vmatprep.subr.mxu0 0.0
    %2675 = vmatpush1.msra.mxu0 0.0
    %2676 = vmatprep.subr.mxu0 0.0
    %2677 = vmatpush1.msra.mxu0 0.0
    %2678 = vmatprep.subr.mxu0 0.0
    %2679 = vmatpush1.msra.mxu0 0.0
    %2680 = vmatprep.subr.mxu0 0.0
    %2681 = vmatpush1.msra.mxu0 0.0
    %2682 = vmatprep.subr.mxu0 0.0
    %2683 = vmatpush1.msra.mxu0 0.0
    %2684 = vmatprep.subr.mxu0 0.0
    %2685 = vmatpush1.msra.mxu0 0.0
    %2686 = vmatprep.subr.mxu0 0.0
    %2687 = vmatpush1.msra.mxu0 %v62
    %2688 = vmatprep.subr.mxu0 0.0
    %2689 = vmatpush1.msra.mxu0 %v61
    %2690 = vmatprep.subr.mxu0 0.0
    %2691 = vmatpush1.msra.mxu0 %v60
    %2692 = vmatprep.subr.mxu0 0.0
    %2693 = vmatpush1.msra.mxu0 %v59
    %2694 = vmatprep.subr.mxu0 0.0
    %2695 = vmatpush2.msra.mxu0 0.0
    %2696 = vmatprep.subr.mxu0 0.0
    %2697 = vmatpush2.msra.mxu0 0.0
    %2698 = vmatprep.subr.mxu0 0.0
    %2699 = vmatpush2.msra.mxu0 0.0
    %2700 = vmatprep.subr.mxu0 0.0
    %2701 = vmatpush2.msra.mxu0 0.0
    %2702 = vmatprep.subr.mxu0 0.0
    %2703 = vmatpush2.msra.mxu0 0.0
    %2704 = vmatprep.subr.mxu0 0.0
    %2705 = vmatpush2.msra.mxu0 0.0
    %2706 = vmatprep.subr.mxu0 0.0
    %2707 = vmatpush2.msra.mxu0 0.0
    %2708 = vmatprep.subr.mxu0 0.0
    %2709 = vmatpush2.msra.mxu0 0.0
    %2710 = vmatprep.subr.mxu0 0.0
    %2711 = vmatpush2.msra.mxu0 0.0
    %2712 = vmatprep.subr.mxu0 0.0
    %2713 = vmatpush2.msra.mxu0 0.0
    %2714 = vmatprep.subr.mxu0 0.0
    %2715 = vmatpush2.msra.mxu0 0.0
    %2716 = vmatprep.subr.mxu0 0.0
    %2717 = vmatpush2.msra.mxu0 0.0
    %2718 = vmatprep.subr.mxu0 0.0
    %2719 = vmatpush2.msra.mxu0 0.0
    %2720 = vmatprep.subr.mxu0 0.0
    %2721 = vmatpush2.msra.mxu0 0.0
    %2722 = vmatprep.subr.mxu0 0.0
    %2723 = vmatpush2.msra.mxu0 0.0
    %2724 = vmatprep.subr.mxu0 0.0
    %2725 = vmatpush2.msra.mxu0 0.0
    %2726 = vmatprep.mubr.f32.mxu0 0.0
    %2727 = vmatmul.mubr.f32.gmra.mxu0 %v2660
    %v2728 = vpop.f32.mrf.mxu0
    %v2729 = vadd.f32 0.0, %v2728
    %v2730 = vpop.f32.mrf.mxu0
    %2731 = vdwg.mxu0
    %2732 = vmatprep.subr.mxu0 0.0
    %2733 = vmatpush1.msra.mxu0 0.0
    %2734 = vmatprep.subr.mxu0 0.0
    %2735 = vmatpush1.msra.mxu0 0.0
    %2736 = vmatprep.subr.mxu0 0.0
    %2737 = vmatpush1.msra.mxu0 0.0
    %2738 = vmatprep.subr.mxu0 0.0
    %2739 = vmatpush1.msra.mxu0 0.0
    %2740 = vmatprep.subr.mxu0 0.0
    %2741 = vmatpush1.msra.mxu0 0.0
    %2742 = vmatprep.subr.mxu0 0.0
    %2743 = vmatpush1.msra.mxu0 0.0
    %2744 = vmatprep.subr.mxu0 0.0
    %2745 = vmatpush1.msra.mxu0 0.0
    %2746 = vmatprep.subr.mxu0 0.0
    %2747 = vmatpush1.msra.mxu0 0.0
    %2748 = vmatprep.subr.mxu0 0.0
    %2749 = vmatpush1.msra.mxu0 0.0
    %2750 = vmatprep.subr.mxu0 0.0
    %2751 = vmatpush1.msra.mxu0 0.0
    %2752 = vmatprep.subr.mxu0 0.0
    %2753 = vmatpush1.msra.mxu0 0.0
    %2754 = vmatprep.subr.mxu0 0.0
    %2755 = vmatpush1.msra.mxu0 0.0
    %2756 = vmatprep.subr.mxu0 0.0
    %2757 = vmatpush1.msra.mxu0 %v58
    %2758 = vmatprep.subr.mxu0 0.0
    %2759 = vmatpush1.msra.mxu0 %v57
    %2760 = vmatprep.subr.mxu0 0.0
    %2761 = vmatpush1.msra.mxu0 %v56
    %2762 = vmatprep.subr.mxu0 0.0
    %2763 = vmatpush1.msra.mxu0 %v55
    %2764 = vmatprep.subr.mxu0 0.0
    %2765 = vmatpush2.msra.mxu0 0.0
    %2766 = vmatprep.subr.mxu0 0.0
    %2767 = vmatpush2.msra.mxu0 0.0
    %2768 = vmatprep.subr.mxu0 0.0
    %2769 = vmatpush2.msra.mxu0 0.0
    %2770 = vmatprep.subr.mxu0 0.0
    %2771 = vmatpush2.msra.mxu0 0.0
    %2772 = vmatprep.subr.mxu0 0.0
    %2773 = vmatpush2.msra.mxu0 0.0
    %2774 = vmatprep.subr.mxu0 0.0
    %2775 = vmatpush2.msra.mxu0 0.0
    %2776 = vmatprep.subr.mxu0 0.0
    %2777 = vmatpush2.msra.mxu0 0.0
    %2778 = vmatprep.subr.mxu0 0.0
    %2779 = vmatpush2.msra.mxu0 0.0
    %2780 = vmatprep.subr.mxu0 0.0
    %2781 = vmatpush2.msra.mxu0 0.0
    %2782 = vmatprep.subr.mxu0 0.0
    %2783 = vmatpush2.msra.mxu0 0.0
    %2784 = vmatprep.subr.mxu0 0.0
    %2785 = vmatpush2.msra.mxu0 0.0
    %2786 = vmatprep.subr.mxu0 0.0
    %2787 = vmatpush2.msra.mxu0 0.0
    %2788 = vmatprep.subr.mxu0 0.0
    %2789 = vmatpush2.msra.mxu0 0.0
    %2790 = vmatprep.subr.mxu0 0.0
    %2791 = vmatpush2.msra.mxu0 0.0
    %2792 = vmatprep.subr.mxu0 0.0
    %2793 = vmatpush2.msra.mxu0 0.0
    %2794 = vmatprep.subr.mxu0 0.0
    %2795 = vmatpush2.msra.mxu0 0.0
    %2796 = vmatprep.mubr.f32.mxu0 0.0
    %2797 = vmatmul.mubr.f32.gmra.mxu0 %v139
    %v2798 = vpop.f32.mrf.mxu0
    %v2799 = vadd.f32 %v2729, %v2798
    %v2800 = vpop.f32.mrf.mxu0
    %2801 = vdwg.mxu0
    %v2802 = vadd.f32 %v2799, %v398
    %v2803 = vxor.u32 %v2802, 2147483648
    %v2804 = vmul.f32 %v2803, 1.442695
    %v2805 = vpow.pop %v2804
    %v2806 = vadd.f32 %v2805, 1.0
    %v2807 = vrcp.pop %v2806
    %v2808 = vmul.f32 1.0, %v2807
    %v2809 = vtanh.pop %v2802
    %v2810 = vmul.f32 %v2808, %v2480
    %2812 = vrot.lane.b32.xlu0 %v2809, 64
    %v2813 = vpop.permute.xlu0 %2812
    %v2815 = vmul.f32 %v2808, %v2813
    %2817 = vrot.lane.b32.xlu0 %v2815, 32
    %v2818 = vpop.permute.xlu0 %2817
    %v2820 = vadd.f32 %v2810, %v2818
    %v2821 = vtanh.pop %v2820
    %2823 = vrot.lane.b32.xlu0 %v2821, 64
    %v2824 = vpop.permute.xlu0 %2823
    %v2826 = vmul.f32 %v2808, %v2824
    %v2827 = vld [vmem:[%s7] sm:$0xff]
    %v2828 = vld [vmem:[%s7 + $0x8] sm:$0xff]
    %v2829 = vld [vmem:[%s7 + $0x10] sm:$0xff]
    %v2830 = vld [vmem:[%s7 + $0x18] sm:$0xff]
    %v2831 = vld [vmem:[%s7 + $0x20] sm:$0xff]
    %v2832 = vld [vmem:[%s7 + $0x28] sm:$0xff]
    %v2833 = vld [vmem:[%s7 + $0x30] sm:$0xff]
    %v2834 = vld [vmem:[%s7 + $0x38] sm:$0xff]
    %v2835 = vld [vmem:[%s7 + $0x40] sm:$0xff]
    %v2836 = vld [vmem:[%s7 + $0x48] sm:$0xff]
    %v2837 = vld [vmem:[%s7 + $0x50] sm:$0xff]
    %v2838 = vld [vmem:[%s7 + $0x58] sm:$0xff]
    %v2839 = vld [vmem:[%s7 + $0x60] sm:$0xff]
    %v2840 = vld [vmem:[%s7 + $0x68] sm:$0xff]
    %v2841 = vld [vmem:[%s7 + $0x70] sm:$0xff]
    %v2842 = vld [vmem:[%s7 + $0x78] sm:$0xff]
    %v2843 = vld [vmem:[%s7 + $0x80] sm:$0xff]
    %v2844 = vld [vmem:[%s7 + $0x88] sm:$0xff]
    %v2845 = vld [vmem:[%s7 + $0x90] sm:$0xff]
    %v2846 = vld [vmem:[%s7 + $0x98] sm:$0xff]
    %v2847 = vld [vmem:[%s7 + $0xa0] sm:$0xff]
    %v2848 = vld [vmem:[%s7 + $0xa8] sm:$0xff]
    %v2849 = vld [vmem:[%s7 + $0xb0] sm:$0xff]
    %v2850 = vld [vmem:[%s7 + $0xb8] sm:$0xff]
    %v2851 = vld [vmem:[%s7 + $0xc0] sm:$0xff]
    %v2852 = vld [vmem:[%s7 + $0xc8] sm:$0xff]
    %v2853 = vld [vmem:[%s7 + $0xd0] sm:$0xff]
    %v2854 = vld [vmem:[%s7 + $0xd8] sm:$0xff]
    %v2855 = vld [vmem:[%s7 + $0xe0] sm:$0xff]
    %v2856 = vld [vmem:[%s7 + $0xe8] sm:$0xff]
    %v2857 = vld [vmem:[%s7 + $0xf0] sm:$0xff]
    %v2858 = vld [vmem:[%s7 + $0xf8] sm:$0xff]
    %v2859 = vld [vmem:[%s7 + $0x100] sm:$0xff]
    %v2860 = vld [vmem:[%s7 + $0x108] sm:$0xff]
    %v2861 = vld [vmem:[%s7 + $0x110] sm:$0xff]
    %v2862 = vld [vmem:[%s7 + $0x118] sm:$0xff]
    %v2863 = vld [vmem:[%s7 + $0x120] sm:$0xff]
    %v2864 = vld [vmem:[%s7 + $0x128] sm:$0xff]
    %v2865 = vld [vmem:[%s7 + $0x130] sm:$0xff]
    %v2866 = vld [vmem:[%s7 + $0x138] sm:$0xff]
    %v2867 = vld [vmem:[%s7 + $0x140] sm:$0xff]
    %v2868 = vld [vmem:[%s7 + $0x148] sm:$0xff]
    %v2869 = vld [vmem:[%s7 + $0x150] sm:$0xff]
    %v2870 = vld [vmem:[%s7 + $0x158] sm:$0xff]
    %v2871 = vld [vmem:[%s7 + $0x160] sm:$0xff]
    %v2872 = vld [vmem:[%s7 + $0x168] sm:$0xff]
    %v2873 = vld [vmem:[%s7 + $0x170] sm:$0xff]
    %v2874 = vld [vmem:[%s7 + $0x178] sm:$0xff]
    %v2875 = vld [vmem:[%s7 + $0x180] sm:$0xff]
    %v2876 = vld [vmem:[%s7 + $0x188] sm:$0xff]
    %v2877 = vld [vmem:[%s7 + $0x190] sm:$0xff]
    %v2878 = vld [vmem:[%s7 + $0x198] sm:$0xff]
    %v2879 = vld [vmem:[%s7 + $0x1a0] sm:$0xff]
    %v2880 = vld [vmem:[%s7 + $0x1a8] sm:$0xff]
    %v2881 = vld [vmem:[%s7 + $0x1b0] sm:$0xff]
    %v2882 = vld [vmem:[%s7 + $0x1b8] sm:$0xff]
    %v2883 = vld [vmem:[%s7 + $0x1c0] sm:$0xff]
    %v2884 = vld [vmem:[%s7 + $0x1c8] sm:$0xff]
    %v2885 = vld [vmem:[%s7 + $0x1d0] sm:$0xff]
    %v2886 = vld [vmem:[%s7 + $0x1d8] sm:$0xff]
    %v2887 = vld [vmem:[%s7 + $0x1e0] sm:$0xff]
    %v2888 = vld [vmem:[%s7 + $0x1e8] sm:$0xff]
    %v2889 = vld [vmem:[%s7 + $0x1f0] sm:$0xff]
    %v2890 = vld [vmem:[%s7 + $0x1f8] sm:$0xff]
    %v2891 = vld [vmem:[%s9] sm:$0xff]
    %v2892 = vld [vmem:[%s9 + $0x8] sm:$0x1]
    %v2893 = vld [vmem:[%s10] sm:$0x1]
    %v2895 = vlaneseq
    %v2896 = vshrl.u32 %v2895, 7
    %v2897 = vsub.s32 0, %v2896
    %v2898 = vrot.slane %v2893, %v2897
    %vm2900 = vcmask 72704
    %v2902 = vsel %vm2900, %v2827, 0
    %v2905 = vsel %vm2900, %v2828, 0
    %v2908 = vsel %vm2900, %v2829, 0
    %v2911 = vsel %vm2900, %v2830, 0
    %v2914 = vsel %vm2900, %v2831, 0
    %v2917 = vsel %vm2900, %v2832, 0
    %v2920 = vsel %vm2900, %v2833, 0
    %v2923 = vsel %vm2900, %v2834, 0
    %v2926 = vsel %vm2900, %v2835, 0
    %v2929 = vsel %vm2900, %v2836, 0
    %v2932 = vsel %vm2900, %v2837, 0
    %v2935 = vsel %vm2900, %v2838, 0
    %v2938 = vsel %vm2900, %v2839, 0
    %v2941 = vsel %vm2900, %v2840, 0
    %v2944 = vsel %vm2900, %v2841, 0
    %v2947 = vsel %vm2900, %v2842, 0
    %v2950 = vsel %vm2900, %v2843, 0
    %v2953 = vsel %vm2900, %v2844, 0
    %v2956 = vsel %vm2900, %v2845, 0
    %v2959 = vsel %vm2900, %v2846, 0
    %v2962 = vsel %vm2900, %v2847, 0
    %v2965 = vsel %vm2900, %v2848, 0
    %v2968 = vsel %vm2900, %v2849, 0
    %v2971 = vsel %vm2900, %v2850, 0
    %v2974 = vsel %vm2900, %v2851, 0
    %v2977 = vsel %vm2900, %v2852, 0
    %v2980 = vsel %vm2900, %v2853, 0
    %v2983 = vsel %vm2900, %v2854, 0
    %v2986 = vsel %vm2900, %v2855, 0
    %v2989 = vsel %vm2900, %v2856, 0
    %v2992 = vsel %vm2900, %v2857, 0
    %v2995 = vsel %vm2900, %v2858, 0
    %v2998 = vsel %vm2900, %v2859, 0
    %v3001 = vsel %vm2900, %v2860, 0
    %v3004 = vsel %vm2900, %v2861, 0
    %v3007 = vsel %vm2900, %v2862, 0
    %v3010 = vsel %vm2900, %v2863, 0
    %v3013 = vsel %vm2900, %v2864, 0
    %v3016 = vsel %vm2900, %v2865, 0
    %v3019 = vsel %vm2900, %v2866, 0
    %v3022 = vsel %vm2900, %v2867, 0
    %v3025 = vsel %vm2900, %v2868, 0
    %v3028 = vsel %vm2900, %v2869, 0
    %v3031 = vsel %vm2900, %v2870, 0
    %v3034 = vsel %vm2900, %v2871, 0
    %v3037 = vsel %vm2900, %v2872, 0
    %v3040 = vsel %vm2900, %v2873, 0
    %v3043 = vsel %vm2900, %v2874, 0
    %v3046 = vsel %vm2900, %v2875, 0
    %v3049 = vsel %vm2900, %v2876, 0
    %v3052 = vsel %vm2900, %v2877, 0
    %v3055 = vsel %vm2900, %v2878, 0
    %v3058 = vsel %vm2900, %v2879, 0
    %v3061 = vsel %vm2900, %v2880, 0
    %v3064 = vsel %vm2900, %v2881, 0
    %v3067 = vsel %vm2900, %v2882, 0
    %v3070 = vsel %vm2900, %v2883, 0
    %v3073 = vsel %vm2900, %v2884, 0
    %v3076 = vsel %vm2900, %v2885, 0
    %v3079 = vsel %vm2900, %v2886, 0
    %v3082 = vsel %vm2900, %v2887, 0
    %v3085 = vsel %vm2900, %v2888, 0
    %v3088 = vsel %vm2900, %v2889, 0
    %v3091 = vsel %vm2900, %v2890, 0
    %vm3093 = vcmask 1040384
    %v3095 = vsel %vm3093, %v2892, 0
    %3097 = vmatprep.subr.mxu0 0.0
    %3098 = vmatpush1.msra.mxu0 0.0
    %3099 = vmatprep.subr.mxu0 0.0
    %3100 = vmatpush1.msra.mxu0 0.0
    %3101 = vmatprep.subr.mxu0 0.0
    %3102 = vmatpush1.msra.mxu0 0.0
    %3103 = vmatprep.subr.mxu0 0.0
    %3104 = vmatpush1.msra.mxu0 0.0
    %3105 = vmatprep.subr.mxu0 0.0
    %3106 = vmatpush1.msra.mxu0 0.0
    %3107 = vmatprep.subr.mxu0 0.0
    %3108 = vmatpush1.msra.mxu0 0.0
    %3109 = vmatprep.subr.mxu0 0.0
    %3110 = vmatpush1.msra.mxu0 0.0
    %3111 = vmatprep.subr.mxu0 0.0
    %3112 = vmatpush1.msra.mxu0 0.0
    %3113 = vmatprep.subr.mxu0 0.0
    %3114 = vmatpush1.msra.mxu0 0.0
    %3115 = vmatprep.subr.mxu0 0.0
    %3116 = vmatpush1.msra.mxu0 0.0
    %3117 = vmatprep.subr.mxu0 0.0
    %3118 = vmatpush1.msra.mxu0 0.0
    %3119 = vmatprep.subr.mxu0 0.0
    %3120 = vmatpush1.msra.mxu0 0.0
    %3121 = vmatprep.subr.mxu0 0.0
    %3122 = vmatpush1.msra.mxu0 0.0
    %3123 = vmatprep.subr.mxu0 0.0
    %3124 = vmatpush1.msra.mxu0 0.0
    %3125 = vmatprep.subr.mxu0 0.0
    %3126 = vmatpush1.msra.mxu0 %v3095
    %3127 = vmatprep.subr.mxu0 0.0
    %3128 = vmatpush1.msra.mxu0 %v2891
    %3129 = vmatprep.subr.mxu0 0.0
    %3130 = vmatpush2.msra.mxu0 0.0
    %3131 = vmatprep.subr.mxu0 0.0
    %3132 = vmatpush2.msra.mxu0 0.0
    %3133 = vmatprep.subr.mxu0 0.0
    %3134 = vmatpush2.msra.mxu0 0.0
    %3135 = vmatprep.subr.mxu0 0.0
    %3136 = vmatpush2.msra.mxu0 0.0
    %3137 = vmatprep.subr.mxu0 0.0
    %3138 = vmatpush2.msra.mxu0 0.0
    %3139 = vmatprep.subr.mxu0 0.0
    %3140 = vmatpush2.msra.mxu0 0.0
    %3141 = vmatprep.subr.mxu0 0.0
    %3142 = vmatpush2.msra.mxu0 0.0
    %3143 = vmatprep.subr.mxu0 0.0
    %3144 = vmatpush2.msra.mxu0 0.0
    %3145 = vmatprep.subr.mxu0 0.0
    %3146 = vmatpush2.msra.mxu0 0.0
    %3147 = vmatprep.subr.mxu0 0.0
    %3148 = vmatpush2.msra.mxu0 0.0
    %3149 = vmatprep.subr.mxu0 0.0
    %3150 = vmatpush2.msra.mxu0 0.0
    %3151 = vmatprep.subr.mxu0 0.0
    %3152 = vmatpush2.msra.mxu0 0.0
    %3153 = vmatprep.subr.mxu0 0.0
    %3154 = vmatpush2.msra.mxu0 0.0
    %3155 = vmatprep.subr.mxu0 0.0
    %3156 = vmatpush2.msra.mxu0 0.0
    %3157 = vmatprep.subr.mxu0 0.0
    %3158 = vmatpush2.msra.mxu0 0.0
    %3159 = vmatprep.subr.mxu0 0.0
    %3160 = vmatpush2.msra.mxu0 0.0
    %3161 = vmatprep.mubr.f32.mxu0 0.0
    %3162 = vmatmul.mubr.f32.gmra.mxu0 %v2902
    %v3163 = vpop.f32.mrf.mxu0
    %v3164 = vadd.f32 %v2898, %v3163
    %v3165 = vpop.f32.mrf.mxu0
    %3166 = vmatprep.mubr.f32.mxu0 0.0
    %3167 = vmatmul.mubr.f32.gmra.mxu0 %v2905
    %v3168 = vpop.f32.mrf.mxu0
    %v3169 = vadd.f32 %v2898, %v3168
    %v3170 = vpop.f32.mrf.mxu0
    %3171 = vmatprep.mubr.f32.mxu0 0.0
    %3172 = vmatmul.mubr.f32.gmra.mxu0 %v2908
    %v3173 = vpop.f32.mrf.mxu0
    %v3174 = vadd.f32 %v2898, %v3173
    %v3175 = vpop.f32.mrf.mxu0
    %3176 = vmatprep.mubr.f32.mxu0 0.0
    %3177 = vmatmul.mubr.f32.gmra.mxu0 %v2911
    %v3178 = vpop.f32.mrf.mxu0
    %v3179 = vadd.f32 %v2898, %v3178
    %v3180 = vpop.f32.mrf.mxu0
    %3181 = vmatprep.mubr.f32.mxu0 0.0
    %3182 = vmatmul.mubr.f32.gmra.mxu0 %v2914
    %v3183 = vpop.f32.mrf.mxu0
    %v3184 = vadd.f32 %v2898, %v3183
    %v3185 = vpop.f32.mrf.mxu0
    %3186 = vmatprep.mubr.f32.mxu0 0.0
    %3187 = vmatmul.mubr.f32.gmra.mxu0 %v2917
    %v3188 = vpop.f32.mrf.mxu0
    %v3189 = vadd.f32 %v2898, %v3188
    %v3190 = vpop.f32.mrf.mxu0
    %3191 = vmatprep.mubr.f32.mxu0 0.0
    %3192 = vmatmul.mubr.f32.gmra.mxu0 %v2920
    %v3193 = vpop.f32.mrf.mxu0
    %v3194 = vadd.f32 %v2898, %v3193
    %v3195 = vpop.f32.mrf.mxu0
    %3196 = vmatprep.mubr.f32.mxu0 0.0
    %3197 = vmatmul.mubr.f32.gmra.mxu0 %v2923
    %v3198 = vpop.f32.mrf.mxu0
    %v3199 = vadd.f32 %v2898, %v3198
    %v3200 = vpop.f32.mrf.mxu0
    %3201 = vmatprep.mubr.f32.mxu0 0.0
    %3202 = vmatmul.mubr.f32.gmra.mxu0 %v2926
    %v3203 = vpop.f32.mrf.mxu0
    %v3204 = vadd.f32 %v2898, %v3203
    %v3205 = vpop.f32.mrf.mxu0
    %3206 = vmatprep.mubr.f32.mxu0 0.0
    %3207 = vmatmul.mubr.f32.gmra.mxu0 %v2929
    %v3208 = vpop.f32.mrf.mxu0
    %v3209 = vadd.f32 %v2898, %v3208
    %v3210 = vpop.f32.mrf.mxu0
    %3211 = vmatprep.mubr.f32.mxu0 0.0
    %3212 = vmatmul.mubr.f32.gmra.mxu0 %v2932
    %v3213 = vpop.f32.mrf.mxu0
    %v3214 = vadd.f32 %v2898, %v3213
    %v3215 = vpop.f32.mrf.mxu0
    %3216 = vmatprep.mubr.f32.mxu0 0.0
    %3217 = vmatmul.mubr.f32.gmra.mxu0 %v2935
    %v3218 = vpop.f32.mrf.mxu0
    %v3219 = vadd.f32 %v2898, %v3218
    %v3220 = vpop.f32.mrf.mxu0
    %3221 = vmatprep.mubr.f32.mxu0 0.0
    %3222 = vmatmul.mubr.f32.gmra.mxu0 %v2938
    %v3223 = vpop.f32.mrf.mxu0
    %v3224 = vadd.f32 %v2898, %v3223
    %v3225 = vpop.f32.mrf.mxu0
    %3226 = vmatprep.mubr.f32.mxu0 0.0
    %3227 = vmatmul.mubr.f32.gmra.mxu0 %v2941
    %v3228 = vpop.f32.mrf.mxu0
    %v3229 = vadd.f32 %v2898, %v3228
    %v3230 = vpop.f32.mrf.mxu0
    %3231 = vmatprep.mubr.f32.mxu0 0.0
    %3232 = vmatmul.mubr.f32.gmra.mxu0 %v2944
    %v3233 = vpop.f32.mrf.mxu0
    %v3234 = vadd.f32 %v2898, %v3233
    %v3235 = vpop.f32.mrf.mxu0
    %3236 = vmatprep.mubr.f32.mxu0 0.0
    %3237 = vmatmul.mubr.f32.gmra.mxu0 %v2947
    %v3238 = vpop.f32.mrf.mxu0
    %v3239 = vadd.f32 %v2898, %v3238
    %v3240 = vpop.f32.mrf.mxu0
    %3241 = vmatprep.mubr.f32.mxu0 0.0
    %3242 = vmatmul.mubr.f32.gmra.mxu0 %v2950
    %v3243 = vpop.f32.mrf.mxu0
    %v3244 = vadd.f32 %v2898, %v3243
    %v3245 = vpop.f32.mrf.mxu0
    %3246 = vmatprep.mubr.f32.mxu0 0.0
    %3247 = vmatmul.mubr.f32.gmra.mxu0 %v2953
    %v3248 = vpop.f32.mrf.mxu0
    %v3249 = vadd.f32 %v2898, %v3248
    %v3250 = vpop.f32.mrf.mxu0
    %3251 = vmatprep.mubr.f32.mxu0 0.0
    %3252 = vmatmul.mubr.f32.gmra.mxu0 %v2956
    %v3253 = vpop.f32.mrf.mxu0
    %v3254 = vadd.f32 %v2898, %v3253
    %v3255 = vpop.f32.mrf.mxu0
    %3256 = vmatprep.mubr.f32.mxu0 0.0
    %3257 = vmatmul.mubr.f32.gmra.mxu0 %v2959
    %v3258 = vpop.f32.mrf.mxu0
    %v3259 = vadd.f32 %v2898, %v3258
    %v3260 = vpop.f32.mrf.mxu0
    %3261 = vmatprep.mubr.f32.mxu0 0.0
    %3262 = vmatmul.mubr.f32.gmra.mxu0 %v2962
    %v3263 = vpop.f32.mrf.mxu0
    %v3264 = vadd.f32 %v2898, %v3263
    %v3265 = vpop.f32.mrf.mxu0
    %3266 = vmatprep.mubr.f32.mxu0 0.0
    %3267 = vmatmul.mubr.f32.gmra.mxu0 %v2965
    %v3268 = vpop.f32.mrf.mxu0
    %v3269 = vadd.f32 %v2898, %v3268
    %v3270 = vpop.f32.mrf.mxu0
    %3271 = vmatprep.mubr.f32.mxu0 0.0
    %3272 = vmatmul.mubr.f32.gmra.mxu0 %v2968
    %v3273 = vpop.f32.mrf.mxu0
    %v3274 = vadd.f32 %v2898, %v3273
    %v3275 = vpop.f32.mrf.mxu0
    %3276 = vmatprep.mubr.f32.mxu0 0.0
    %3277 = vmatmul.mubr.f32.gmra.mxu0 %v2971
    %v3278 = vpop.f32.mrf.mxu0
    %v3279 = vadd.f32 %v2898, %v3278
    %v3280 = vpop.f32.mrf.mxu0
    %3281 = vmatprep.mubr.f32.mxu0 0.0
    %3282 = vmatmul.mubr.f32.gmra.mxu0 %v2974
    %v3283 = vpop.f32.mrf.mxu0
    %v3284 = vadd.f32 %v2898, %v3283
    %v3285 = vpop.f32.mrf.mxu0
    %3286 = vmatprep.mubr.f32.mxu0 0.0
    %3287 = vmatmul.mubr.f32.gmra.mxu0 %v2977
    %v3288 = vpop.f32.mrf.mxu0
    %v3289 = vadd.f32 %v2898, %v3288
    %v3290 = vpop.f32.mrf.mxu0
    %3291 = vmatprep.mubr.f32.mxu0 0.0
    %3292 = vmatmul.mubr.f32.gmra.mxu0 %v2980
    %v3293 = vpop.f32.mrf.mxu0
    %v3294 = vadd.f32 %v2898, %v3293
    %v3295 = vpop.f32.mrf.mxu0
    %3296 = vmatprep.mubr.f32.mxu0 0.0
    %3297 = vmatmul.mubr.f32.gmra.mxu0 %v2983
    %v3298 = vpop.f32.mrf.mxu0
    %v3299 = vadd.f32 %v2898, %v3298
    %v3300 = vpop.f32.mrf.mxu0
    %3301 = vmatprep.mubr.f32.mxu0 0.0
    %3302 = vmatmul.mubr.f32.gmra.mxu0 %v2986
    %v3303 = vpop.f32.mrf.mxu0
    %v3304 = vadd.f32 %v2898, %v3303
    %v3305 = vpop.f32.mrf.mxu0
    %3306 = vmatprep.mubr.f32.mxu0 0.0
    %3307 = vmatmul.mubr.f32.gmra.mxu0 %v2989
    %v3308 = vpop.f32.mrf.mxu0
    %v3309 = vadd.f32 %v2898, %v3308
    %v3310 = vpop.f32.mrf.mxu0
    %3311 = vmatprep.mubr.f32.mxu0 0.0
    %3312 = vmatmul.mubr.f32.gmra.mxu0 %v2992
    %v3313 = vpop.f32.mrf.mxu0
    %v3314 = vadd.f32 %v2898, %v3313
    %v3315 = vpop.f32.mrf.mxu0
    %3316 = vmatprep.mubr.f32.mxu0 0.0
    %3317 = vmatmul.mubr.f32.gmra.mxu0 %v2995
    %v3318 = vpop.f32.mrf.mxu0
    %v3319 = vadd.f32 %v2898, %v3318
    %v3320 = vpop.f32.mrf.mxu0
    %3321 = vmatprep.mubr.f32.mxu0 0.0
    %3322 = vmatmul.mubr.f32.gmra.mxu0 %v2998
    %v3323 = vpop.f32.mrf.mxu0
    %v3324 = vadd.f32 %v2898, %v3323
    %v3325 = vpop.f32.mrf.mxu0
    %3326 = vmatprep.mubr.f32.mxu0 0.0
    %3327 = vmatmul.mubr.f32.gmra.mxu0 %v3001
    %v3328 = vpop.f32.mrf.mxu0
    %v3329 = vadd.f32 %v2898, %v3328
    %v3330 = vpop.f32.mrf.mxu0
    %3331 = vmatprep.mubr.f32.mxu0 0.0
    %3332 = vmatmul.mubr.f32.gmra.mxu0 %v3004
    %v3333 = vpop.f32.mrf.mxu0
    %v3334 = vadd.f32 %v2898, %v3333
    %v3335 = vpop.f32.mrf.mxu0
    %3336 = vmatprep.mubr.f32.mxu0 0.0
    %3337 = vmatmul.mubr.f32.gmra.mxu0 %v3007
    %v3338 = vpop.f32.mrf.mxu0
    %v3339 = vadd.f32 %v2898, %v3338
    %v3340 = vpop.f32.mrf.mxu0
    %3341 = vmatprep.mubr.f32.mxu0 0.0
    %3342 = vmatmul.mubr.f32.gmra.mxu0 %v3010
    %v3343 = vpop.f32.mrf.mxu0
    %v3344 = vadd.f32 %v2898, %v3343
    %v3345 = vpop.f32.mrf.mxu0
    %3346 = vmatprep.mubr.f32.mxu0 0.0
    %3347 = vmatmul.mubr.f32.gmra.mxu0 %v3013
    %v3348 = vpop.f32.mrf.mxu0
    %v3349 = vadd.f32 %v2898, %v3348
    %v3350 = vpop.f32.mrf.mxu0
    %3351 = vmatprep.mubr.f32.mxu0 0.0
    %3352 = vmatmul.mubr.f32.gmra.mxu0 %v3016
    %v3353 = vpop.f32.mrf.mxu0
    %v3354 = vadd.f32 %v2898, %v3353
    %v3355 = vpop.f32.mrf.mxu0
    %3356 = vmatprep.mubr.f32.mxu0 0.0
    %3357 = vmatmul.mubr.f32.gmra.mxu0 %v3019
    %v3358 = vpop.f32.mrf.mxu0
    %v3359 = vadd.f32 %v2898, %v3358
    %v3360 = vpop.f32.mrf.mxu0
    %3361 = vmatprep.mubr.f32.mxu0 0.0
    %3362 = vmatmul.mubr.f32.gmra.mxu0 %v3022
    %v3363 = vpop.f32.mrf.mxu0
    %v3364 = vadd.f32 %v2898, %v3363
    %v3365 = vpop.f32.mrf.mxu0
    %3366 = vmatprep.mubr.f32.mxu0 0.0
    %3367 = vmatmul.mubr.f32.gmra.mxu0 %v3025
    %v3368 = vpop.f32.mrf.mxu0
    %v3369 = vadd.f32 %v2898, %v3368
    %v3370 = vpop.f32.mrf.mxu0
    %3371 = vmatprep.mubr.f32.mxu0 0.0
    %3372 = vmatmul.mubr.f32.gmra.mxu0 %v3028
    %v3373 = vpop.f32.mrf.mxu0
    %v3374 = vadd.f32 %v2898, %v3373
    %v3375 = vpop.f32.mrf.mxu0
    %3376 = vmatprep.mubr.f32.mxu0 0.0
    %3377 = vmatmul.mubr.f32.gmra.mxu0 %v3031
    %v3378 = vpop.f32.mrf.mxu0
    %v3379 = vadd.f32 %v2898, %v3378
    %v3380 = vpop.f32.mrf.mxu0
    %3381 = vmatprep.mubr.f32.mxu0 0.0
    %3382 = vmatmul.mubr.f32.gmra.mxu0 %v3034
    %v3383 = vpop.f32.mrf.mxu0
    %v3384 = vadd.f32 %v2898, %v3383
    %v3385 = vpop.f32.mrf.mxu0
    %3386 = vmatprep.mubr.f32.mxu0 0.0
    %3387 = vmatmul.mubr.f32.gmra.mxu0 %v3037
    %v3388 = vpop.f32.mrf.mxu0
    %v3389 = vadd.f32 %v2898, %v3388
    %v3390 = vpop.f32.mrf.mxu0
    %3391 = vmatprep.mubr.f32.mxu0 0.0
    %3392 = vmatmul.mubr.f32.gmra.mxu0 %v3040
    %v3393 = vpop.f32.mrf.mxu0
    %v3394 = vadd.f32 %v2898, %v3393
    %v3395 = vpop.f32.mrf.mxu0
    %3396 = vmatprep.mubr.f32.mxu0 0.0
    %3397 = vmatmul.mubr.f32.gmra.mxu0 %v3043
    %v3398 = vpop.f32.mrf.mxu0
    %v3399 = vadd.f32 %v2898, %v3398
    %v3400 = vpop.f32.mrf.mxu0
    %3401 = vmatprep.mubr.f32.mxu0 0.0
    %3402 = vmatmul.mubr.f32.gmra.mxu0 %v3046
    %v3403 = vpop.f32.mrf.mxu0
    %v3404 = vadd.f32 %v2898, %v3403
    %v3405 = vpop.f32.mrf.mxu0
    %3406 = vmatprep.mubr.f32.mxu0 0.0
    %3407 = vmatmul.mubr.f32.gmra.mxu0 %v3049
    %v3408 = vpop.f32.mrf.mxu0
    %v3409 = vadd.f32 %v2898, %v3408
    %v3410 = vpop.f32.mrf.mxu0
    %3411 = vmatprep.mubr.f32.mxu0 0.0
    %3412 = vmatmul.mubr.f32.gmra.mxu0 %v3052
    %v3413 = vpop.f32.mrf.mxu0
    %v3414 = vadd.f32 %v2898, %v3413
    %v3415 = vpop.f32.mrf.mxu0
    %3416 = vmatprep.mubr.f32.mxu0 0.0
    %3417 = vmatmul.mubr.f32.gmra.mxu0 %v3055
    %v3418 = vpop.f32.mrf.mxu0
    %v3419 = vadd.f32 %v2898, %v3418
    %v3420 = vpop.f32.mrf.mxu0
    %3421 = vmatprep.mubr.f32.mxu0 0.0
    %3422 = vmatmul.mubr.f32.gmra.mxu0 %v3058
    %v3423 = vpop.f32.mrf.mxu0
    %v3424 = vadd.f32 %v2898, %v3423
    %v3425 = vpop.f32.mrf.mxu0
    %3426 = vmatprep.mubr.f32.mxu0 0.0
    %3427 = vmatmul.mubr.f32.gmra.mxu0 %v3061
    %v3428 = vpop.f32.mrf.mxu0
    %v3429 = vadd.f32 %v2898, %v3428
    %v3430 = vpop.f32.mrf.mxu0
    %3431 = vmatprep.mubr.f32.mxu0 0.0
    %3432 = vmatmul.mubr.f32.gmra.mxu0 %v3064
    %v3433 = vpop.f32.mrf.mxu0
    %v3434 = vadd.f32 %v2898, %v3433
    %v3435 = vpop.f32.mrf.mxu0
    %3436 = vmatprep.mubr.f32.mxu0 0.0
    %3437 = vmatmul.mubr.f32.gmra.mxu0 %v3067
    %v3438 = vpop.f32.mrf.mxu0
    %v3439 = vadd.f32 %v2898, %v3438
    %v3440 = vpop.f32.mrf.mxu0
    %3441 = vmatprep.mubr.f32.mxu0 0.0
    %3442 = vmatmul.mubr.f32.gmra.mxu0 %v3070
    %v3443 = vpop.f32.mrf.mxu0
    %v3444 = vadd.f32 %v2898, %v3443
    %v3445 = vpop.f32.mrf.mxu0
    %3446 = vmatprep.mubr.f32.mxu0 0.0
    %3447 = vmatmul.mubr.f32.gmra.mxu0 %v3073
    %v3448 = vpop.f32.mrf.mxu0
    %v3449 = vadd.f32 %v2898, %v3448
    %v3450 = vpop.f32.mrf.mxu0
    %3451 = vmatprep.mubr.f32.mxu0 0.0
    %3452 = vmatmul.mubr.f32.gmra.mxu0 %v3076
    %v3453 = vpop.f32.mrf.mxu0
    %v3454 = vadd.f32 %v2898, %v3453
    %v3455 = vpop.f32.mrf.mxu0
    %3456 = vmatprep.mubr.f32.mxu0 0.0
    %3457 = vmatmul.mubr.f32.gmra.mxu0 %v3079
    %v3458 = vpop.f32.mrf.mxu0
    %v3459 = vadd.f32 %v2898, %v3458
    %v3460 = vpop.f32.mrf.mxu0
    %3461 = vmatprep.mubr.f32.mxu0 0.0
    %3462 = vmatmul.mubr.f32.gmra.mxu0 %v3082
    %v3463 = vpop.f32.mrf.mxu0
    %v3464 = vadd.f32 %v2898, %v3463
    %v3465 = vpop.f32.mrf.mxu0
    %3466 = vmatprep.mubr.f32.mxu0 0.0
    %3467 = vmatmul.mubr.f32.gmra.mxu0 %v3085
    %v3468 = vpop.f32.mrf.mxu0
    %v3469 = vadd.f32 %v2898, %v3468
    %v3470 = vpop.f32.mrf.mxu0
    %3471 = vmatprep.mubr.f32.mxu0 0.0
    %3472 = vmatmul.mubr.f32.gmra.mxu0 %v3088
    %v3473 = vpop.f32.mrf.mxu0
    %v3474 = vadd.f32 %v2898, %v3473
    %v3475 = vpop.f32.mrf.mxu0
    %3476 = vmatprep.mubr.f32.mxu0 0.0
    %3477 = vmatmul.mubr.f32.gmra.mxu0 %v3091
    %v3478 = vpop.f32.mrf.mxu0
    %v3479 = vadd.f32 %v2898, %v3478
    %v3480 = vpop.f32.mrf.mxu0
    %3481 = vdwg.mxu0
    %v3482 = vmax.f32 %v3164, 0.0
    %v3483 = vmax.f32 %v3169, 0.0
    %v3484 = vmax.f32 %v3174, 0.0
    %v3485 = vmax.f32 %v3179, 0.0
    %v3486 = vmax.f32 %v3184, 0.0
    %v3487 = vmax.f32 %v3189, 0.0
    %v3488 = vmax.f32 %v3194, 0.0
    %v3489 = vmax.f32 %v3199, 0.0
    %v3490 = vmax.f32 %v3204, 0.0
    %v3491 = vmax.f32 %v3209, 0.0
    %v3492 = vmax.f32 %v3214, 0.0
    %v3493 = vmax.f32 %v3219, 0.0
    %v3494 = vmax.f32 %v3224, 0.0
    %v3495 = vmax.f32 %v3229, 0.0
    %v3496 = vmax.f32 %v3234, 0.0
    %v3497 = vmax.f32 %v3239, 0.0
    %v3498 = vmax.f32 %v3244, 0.0
    %v3499 = vmax.f32 %v3249, 0.0
    %v3500 = vmax.f32 %v3254, 0.0
    %v3501 = vmax.f32 %v3259, 0.0
    %v3502 = vmax.f32 %v3264, 0.0
    %v3503 = vmax.f32 %v3269, 0.0
    %v3504 = vmax.f32 %v3274, 0.0
    %v3505 = vmax.f32 %v3279, 0.0
    %v3506 = vmax.f32 %v3284, 0.0
    %v3507 = vmax.f32 %v3289, 0.0
    %v3508 = vmax.f32 %v3294, 0.0
    %v3509 = vmax.f32 %v3299, 0.0
    %v3510 = vmax.f32 %v3304, 0.0
    %v3511 = vmax.f32 %v3309, 0.0
    %v3512 = vmax.f32 %v3314, 0.0
    %v3513 = vmax.f32 %v3319, 0.0
    %v3514 = vmax.f32 %v3324, 0.0
    %v3515 = vmax.f32 %v3329, 0.0
    %v3516 = vmax.f32 %v3334, 0.0
    %v3517 = vmax.f32 %v3339, 0.0
    %v3518 = vmax.f32 %v3344, 0.0
    %v3519 = vmax.f32 %v3349, 0.0
    %v3520 = vmax.f32 %v3354, 0.0
    %v3521 = vmax.f32 %v3359, 0.0
    %v3522 = vmax.f32 %v3364, 0.0
    %v3523 = vmax.f32 %v3369, 0.0
    %v3524 = vmax.f32 %v3374, 0.0
    %v3525 = vmax.f32 %v3379, 0.0
    %v3526 = vmax.f32 %v3384, 0.0
    %v3527 = vmax.f32 %v3389, 0.0
    %v3528 = vmax.f32 %v3394, 0.0
    %v3529 = vmax.f32 %v3399, 0.0
    %v3530 = vmax.f32 %v3404, 0.0
    %v3531 = vmax.f32 %v3409, 0.0
    %v3532 = vmax.f32 %v3414, 0.0
    %v3533 = vmax.f32 %v3419, 0.0
    %v3534 = vmax.f32 %v3424, 0.0
    %v3535 = vmax.f32 %v3429, 0.0
    %v3536 = vmax.f32 %v3434, 0.0
    %v3537 = vmax.f32 %v3439, 0.0
    %v3538 = vmax.f32 %v3444, 0.0
    %v3539 = vmax.f32 %v3449, 0.0
    %v3540 = vmax.f32 %v3454, 0.0
    %v3541 = vmax.f32 %v3459, 0.0
    %v3542 = vmax.f32 %v3464, 0.0
    %v3543 = vmax.f32 %v3469, 0.0
    %v3544 = vmax.f32 %v3474, 0.0
    %v3545 = vmax.f32 %v3479, 0.0
    %v3546 = vld [vmem:[%s8] sm:$0xff]
    %v3548 = vcombine.high %v3546, %v3546
    %v3550 = vunpack.c.l.s4 1983009808
    %v3551 = vunpack.c.0.s8 %v3550
    %v3552 = vlaneseq
    %v3553 = vshrl.u32 %v3552, 7
    %v3554 = vsub.s32 %v3551, %v3553
    %v3555 = vrot.slane %v3546, %v3554
    %v3557 = vunpack.c.l.s4 1983009808
    %v3558 = vunpack.c.0.s8 %v3557
    %v3559 = vlaneseq
    %v3560 = vshrl.u32 %v3559, 7
    %v3561 = vsub.s32 %v3558, %v3560
    %v3562 = vrot.slane %v3548, %v3561
    %v3563 = vcombine.high %v3555, %v3555
    %v3564 = vcombine.high %v3562, %v3562
    %3569 = vmatprep.subr.mxu0 0.0
    %3570 = vmatpush1.msra.mxu0 %v3497
    %3571 = vmatprep.subr.mxu0 0.0
    %3572 = vmatpush1.msra.mxu0 %v3496
    %3573 = vmatprep.subr.mxu0 0.0
    %3574 = vmatpush1.msra.mxu0 %v3495
    %3575 = vmatprep.subr.mxu0 0.0
    %3576 = vmatpush1.msra.mxu0 %v3494
    %3577 = vmatprep.subr.mxu0 0.0
    %3578 = vmatpush1.msra.mxu0 %v3493
    %3579 = vmatprep.subr.mxu0 0.0
    %3580 = vmatpush1.msra.mxu0 %v3492
    %3581 = vmatprep.subr.mxu0 0.0
    %3582 = vmatpush1.msra.mxu0 %v3491
    %3583 = vmatprep.subr.mxu0 0.0
    %3584 = vmatpush1.msra.mxu0 %v3490
    %3585 = vmatprep.subr.mxu0 0.0
    %3586 = vmatpush1.msra.mxu0 %v3489
    %3587 = vmatprep.subr.mxu0 0.0
    %3588 = vmatpush1.msra.mxu0 %v3488
    %3589 = vmatprep.subr.mxu0 0.0
    %3590 = vmatpush1.msra.mxu0 %v3487
    %3591 = vmatprep.subr.mxu0 0.0
    %3592 = vmatpush1.msra.mxu0 %v3486
    %3593 = vmatprep.subr.mxu0 0.0
    %3594 = vmatpush1.msra.mxu0 %v3485
    %3595 = vmatprep.subr.mxu0 0.0
    %3596 = vmatpush1.msra.mxu0 %v3484
    %3597 = vmatprep.subr.mxu0 0.0
    %3598 = vmatpush1.msra.mxu0 %v3483
    %3599 = vmatprep.subr.mxu0 0.0
    %3600 = vmatpush1.msra.mxu0 %v3482
    %3601 = vmatprep.subr.mxu0 0.0
    %3602 = vmatpush2.msra.mxu0 %v3513
    %3603 = vmatprep.subr.mxu0 0.0
    %3604 = vmatpush2.msra.mxu0 %v3512
    %3605 = vmatprep.subr.mxu0 0.0
    %3606 = vmatpush2.msra.mxu0 %v3511
    %3607 = vmatprep.subr.mxu0 0.0
    %3608 = vmatpush2.msra.mxu0 %v3510
    %3609 = vmatprep.subr.mxu0 0.0
    %3610 = vmatpush2.msra.mxu0 %v3509
    %3611 = vmatprep.subr.mxu0 0.0
    %3612 = vmatpush2.msra.mxu0 %v3508
    %3613 = vmatprep.subr.mxu0 0.0
    %3614 = vmatpush2.msra.mxu0 %v3507
    %3615 = vmatprep.subr.mxu0 0.0
    %3616 = vmatpush2.msra.mxu0 %v3506
    %3617 = vmatprep.subr.mxu0 0.0
    %3618 = vmatpush2.msra.mxu0 %v3505
    %3619 = vmatprep.subr.mxu0 0.0
    %3620 = vmatpush2.msra.mxu0 %v3504
    %3621 = vmatprep.subr.mxu0 0.0
    %3622 = vmatpush2.msra.mxu0 %v3503
    %3623 = vmatprep.subr.mxu0 0.0
    %3624 = vmatpush2.msra.mxu0 %v3502
    %3625 = vmatprep.subr.mxu0 0.0
    %3626 = vmatpush2.msra.mxu0 %v3501
    %3627 = vmatprep.subr.mxu0 0.0
    %3628 = vmatpush2.msra.mxu0 %v3500
    %3629 = vmatprep.subr.mxu0 0.0
    %3630 = vmatpush2.msra.mxu0 %v3499
    %3631 = vmatprep.subr.mxu0 0.0
    %3632 = vmatpush2.msra.mxu0 %v3498
    %3633 = vmatprep.mubr.f32.mxu0 %v3563
    %3634 = vmatmul.mubr.f32.gmra.mxu0 %v3555
    %v3635 = vpop.f32.mrf.mxu0
    %v3636 = vadd.f32 0.0, %v3635
    %v3637 = vpop.f32.mrf.mxu0
    %3638 = vdwg.mxu0
    %3639 = vmatprep.subr.mxu0 0.0
    %3640 = vmatpush1.msra.mxu0 %v3529
    %3641 = vmatprep.subr.mxu0 0.0
    %3642 = vmatpush1.msra.mxu0 %v3528
    %3643 = vmatprep.subr.mxu0 0.0
    %3644 = vmatpush1.msra.mxu0 %v3527
    %3645 = vmatprep.subr.mxu0 0.0
    %3646 = vmatpush1.msra.mxu0 %v3526
    %3647 = vmatprep.subr.mxu0 0.0
    %3648 = vmatpush1.msra.mxu0 %v3525
    %3649 = vmatprep.subr.mxu0 0.0
    %3650 = vmatpush1.msra.mxu0 %v3524
    %3651 = vmatprep.subr.mxu0 0.0
    %3652 = vmatpush1.msra.mxu0 %v3523
    %3653 = vmatprep.subr.mxu0 0.0
    %3654 = vmatpush1.msra.mxu0 %v3522
    %3655 = vmatprep.subr.mxu0 0.0
    %3656 = vmatpush1.msra.mxu0 %v3521
    %3657 = vmatprep.subr.mxu0 0.0
    %3658 = vmatpush1.msra.mxu0 %v3520
    %3659 = vmatprep.subr.mxu0 0.0
    %3660 = vmatpush1.msra.mxu0 %v3519
    %3661 = vmatprep.subr.mxu0 0.0
    %3662 = vmatpush1.msra.mxu0 %v3518
    %3663 = vmatprep.subr.mxu0 0.0
    %3664 = vmatpush1.msra.mxu0 %v3517
    %3665 = vmatprep.subr.mxu0 0.0
    %3666 = vmatpush1.msra.mxu0 %v3516
    %3667 = vmatprep.subr.mxu0 0.0
    %3668 = vmatpush1.msra.mxu0 %v3515
    %3669 = vmatprep.subr.mxu0 0.0
    %3670 = vmatpush1.msra.mxu0 %v3514
    %3671 = vmatprep.subr.mxu0 0.0
    %3672 = vmatpush2.msra.mxu0 %v3545
    %3673 = vmatprep.subr.mxu0 0.0
    %3674 = vmatpush2.msra.mxu0 %v3544
    %3675 = vmatprep.subr.mxu0 0.0
    %3676 = vmatpush2.msra.mxu0 %v3543
    %3677 = vmatprep.subr.mxu0 0.0
    %3678 = vmatpush2.msra.mxu0 %v3542
    %3679 = vmatprep.subr.mxu0 0.0
    %3680 = vmatpush2.msra.mxu0 %v3541
    %3681 = vmatprep.subr.mxu0 0.0
    %3682 = vmatpush2.msra.mxu0 %v3540
    %3683 = vmatprep.subr.mxu0 0.0
    %3684 = vmatpush2.msra.mxu0 %v3539
    %3685 = vmatprep.subr.mxu0 0.0
    %3686 = vmatpush2.msra.mxu0 %v3538
    %3687 = vmatprep.subr.mxu0 0.0
    %3688 = vmatpush2.msra.mxu0 %v3537
    %3689 = vmatprep.subr.mxu0 0.0
    %3690 = vmatpush2.msra.mxu0 %v3536
    %3691 = vmatprep.subr.mxu0 0.0
    %3692 = vmatpush2.msra.mxu0 %v3535
    %3693 = vmatprep.subr.mxu0 0.0
    %3694 = vmatpush2.msra.mxu0 %v3534
    %3695 = vmatprep.subr.mxu0 0.0
    %3696 = vmatpush2.msra.mxu0 %v3533
    %3697 = vmatprep.subr.mxu0 0.0
    %3698 = vmatpush2.msra.mxu0 %v3532
    %3699 = vmatprep.subr.mxu0 0.0
    %3700 = vmatpush2.msra.mxu0 %v3531
    %3701 = vmatprep.subr.mxu0 0.0
    %3702 = vmatpush2.msra.mxu0 %v3530
    %3703 = vmatprep.mubr.f32.mxu0 %v3564
    %3704 = vmatmul.mubr.f32.gmra.mxu0 %v3562
    %v3705 = vpop.f32.mrf.mxu0
    %v3706 = vadd.f32 %v3636, %v3705
    %v3707 = vpop.f32.mrf.mxu0
    %3708 = vdwg.mxu0
    %v3709 = vld [vmem:[%s11] sm:$0xff]
    %v3710 = vld [vmem:[%s11 + $0x8] sm:$0xff]
    %v3711 = vld [vmem:[%s12] sm:$0x1]
    %v3713 = vlaneseq
    %v3714 = vshrl.u32 %v3713, 7
    %v3715 = vsub.s32 0, %v3714
    %v3716 = vrot.slane %v3711, %v3715
    %vm3718 = vcmask 130048
    %v3720 = vsel %vm3718, %v3706, 0
    %3722 = vmatprep.subr.mxu0 0.0
    %3723 = vmatpush1.msra.mxu0 0.0
    %3724 = vmatprep.subr.mxu0 0.0
    %3725 = vmatpush1.msra.mxu0 0.0
    %3726 = vmatprep.subr.mxu0 0.0
    %3727 = vmatpush1.msra.mxu0 0.0
    %3728 = vmatprep.subr.mxu0 0.0
    %3729 = vmatpush1.msra.mxu0 0.0
    %3730 = vmatprep.subr.mxu0 0.0
    %3731 = vmatpush1.msra.mxu0 0.0
    %3732 = vmatprep.subr.mxu0 0.0
    %3733 = vmatpush1.msra.mxu0 0.0
    %3734 = vmatprep.subr.mxu0 0.0
    %3735 = vmatpush1.msra.mxu0 0.0
    %3736 = vmatprep.subr.mxu0 0.0
    %3737 = vmatpush1.msra.mxu0 0.0
    %3738 = vmatprep.subr.mxu0 0.0
    %3739 = vmatpush1.msra.mxu0 0.0
    %3740 = vmatprep.subr.mxu0 0.0
    %3741 = vmatpush1.msra.mxu0 0.0
    %3742 = vmatprep.subr.mxu0 0.0
    %3743 = vmatpush1.msra.mxu0 0.0
    %3744 = vmatprep.subr.mxu0 0.0
    %3745 = vmatpush1.msra.mxu0 0.0
    %3746 = vmatprep.subr.mxu0 0.0
    %3747 = vmatpush1.msra.mxu0 0.0
    %3748 = vmatprep.subr.mxu0 0.0
    %3749 = vmatpush1.msra.mxu0 0.0
    %3750 = vmatprep.subr.mxu0 0.0
    %3751 = vmatpush1.msra.mxu0 %v3710
    %3752 = vmatprep.subr.mxu0 0.0
    %3753 = vmatpush1.msra.mxu0 %v3709
    %3754 = vmatprep.subr.mxu0 0.0
    %3755 = vmatpush2.msra.mxu0 0.0
    %3756 = vmatprep.subr.mxu0 0.0
    %3757 = vmatpush2.msra.mxu0 0.0
    %3758 = vmatprep.subr.mxu0 0.0
    %3759 = vmatpush2.msra.mxu0 0.0
    %3760 = vmatprep.subr.mxu0 0.0
    %3761 = vmatpush2.msra.mxu0 0.0
    %3762 = vmatprep.subr.mxu0 0.0
    %3763 = vmatpush2.msra.mxu0 0.0
    %3764 = vmatprep.subr.mxu0 0.0
    %3765 = vmatpush2.msra.mxu0 0.0
    %3766 = vmatprep.subr.mxu0 0.0
    %3767 = vmatpush2.msra.mxu0 0.0
    %3768 = vmatprep.subr.mxu0 0.0
    %3769 = vmatpush2.msra.mxu0 0.0
    %3770 = vmatprep.subr.mxu0 0.0
    %3771 = vmatpush2.msra.mxu0 0.0
    %3772 = vmatprep.subr.mxu0 0.0
    %3773 = vmatpush2.msra.mxu0 0.0
    %3774 = vmatprep.subr.mxu0 0.0
    %3775 = vmatpush2.msra.mxu0 0.0
    %3776 = vmatprep.subr.mxu0 0.0
    %3777 = vmatpush2.msra.mxu0 0.0
    %3778 = vmatprep.subr.mxu0 0.0
    %3779 = vmatpush2.msra.mxu0 0.0
    %3780 = vmatprep.subr.mxu0 0.0
    %3781 = vmatpush2.msra.mxu0 0.0
    %3782 = vmatprep.subr.mxu0 0.0
    %3783 = vmatpush2.msra.mxu0 0.0
    %3784 = vmatprep.subr.mxu0 0.0
    %3785 = vmatpush2.msra.mxu0 0.0
    %3786 = vmatprep.mubr.f32.mxu0 0.0
    %3787 = vmatmul.mubr.f32.gmra.mxu0 %v3720
    %v3788 = vpop.f32.mrf.mxu0
    %v3789 = vadd.f32 %v3716, %v3788
    %v3790 = vpop.f32.mrf.mxu0
    %3791 = vdwg.mxu0
    %3793 = vrot.lane.b32.xlu0 %v2656, 32
    %v3794 = vpop.permute.xlu0 %3793
    %3797 = vrot.lane.b32.xlu0 %v2826, 64
    %v3798 = vpop.permute.xlu0 %3797
    %3801 = vrot.lane.b32.xlu0 %v3789, 64
    %v3802 = vpop.permute.xlu0 %3801
    %v3804 = vsel %vm64, %v3794, %v3798
    %vm3805 = vcmask 523264
    %v3806 = vsel %vm3805, %v3804, %v3802
    %v3808 = vcombine.low %v3806, %v3802
    %v3810 = vunpack.c.l.s4 1983009808
    %v3811 = vunpack.c.0.s8 %v3810
    %v3812 = vlaneseq
    %v3813 = vshrl.u32 %v3812, 7
    %v3814 = vsub.s32 %v3811, %v3813
    %v3815 = vrot.slane %v3808, %v3814
    %vm3817 = vcmask 1041408
    %vm3818 = vcmask 519170
    %vm3819 = vmor %vm3818, %vm3817
    %3820 = vst.msk [vmem:[#allocation2] sm:$0xf] %vm3819, %v3815
    // Predicated region
    $region54: #{gait_fc_forward.1} parent=1 // pred_check
      _
    $region55: #{gait_fc_forward.1} parent=1 // pred_check_branch
      %3822 = sbr.rel (0) target = $region57
    $region56: #{gait_fc_forward.1} parent=1 // pred_region
      %s3824 = ssub.s32 64, 64
      %3825 = vsyncadd [#allocation3], %s3824
      %s3827 = sshll.u32 [#allocation2], 4
      %s3828 = int_to_ptr.vmem [resolvable:$true] %s3827
      %3830 = dma.vmem_to_hbm [thread:$0]  %s3828, 64, %s13, [#allocation3]
    $region57: #{gait_fc_forward.1} parent=1 // pred_fallthru
      _
    // Predicated region
    $region58: #{gait_fc_forward.1} parent=1 // pred_check
      _
    $region59: #{gait_fc_forward.1} parent=1 // pred_check_branch
      %3832 = sbr.rel (0) target = $region61
    $region60: #{gait_fc_forward.1} parent=1 // pred_region
      %3833 = dma.done [#allocation3], 64
    $region61: #{gait_fc_forward.1} parent=1 // pred_fallthru
      _
    %3834 = vsyncpa [#allocation3], 1

</llo_original>
